<compile_context>
chip_gen: v7x
topology: tpu7x:2x2x1
jax: 0.10.0
libtpu: 0.0.40
codegen_flags: <defaults>
</compile_context>

<pallas_src>
import functools
import math

import jax
import jax.numpy as jnp
from jax.experimental import pallas as pl
from jax.experimental.pallas import tpu as pltpu


# ------------------------------- small helpers -------------------------------

def _pick_tile(dim, pref, quantum):
    """Largest tile <= pref that is a multiple of `quantum` and divides `dim`,
    falling back to the full dim (keeps the (8,128) BlockSpec rule satisfied)."""
    if dim <= pref:
        return dim
    t = (min(pref, dim) // quantum) * quantum
    while t >= quantum:
        if dim % t == 0:
            return t
        t -= quantum
    return dim


def _layernorm_f32(x, g, b, eps):
    """LayerNorm over the last axis, all in f32 (x: (rows, H), g/b: (1, H))."""
    mean = jnp.mean(x, axis=-1, keepdims=True)
    var = jnp.mean(jnp.square(x - mean), axis=-1, keepdims=True)
    inv = jax.lax.rsqrt(var + eps)
    return (x - mean) * inv * g.astype(jnp.float32) + b.astype(jnp.float32)


def _gelu(y):
    # TODO(synk): HF BERT uses erf-GELU; the tanh approximation differs by ~1e-3.
    return 0.5 * y * (1.0 + jnp.tanh(0.7978845608028654
                                     * (y + 0.044715 * y * y * y)))


# ------------------------- embedding LayerNorm kernel -------------------------

def _ln_kernel(x_ref, g_ref, b_ref, o_ref, *, eps):
    x = x_ref[...].astype(jnp.float32)
    o_ref[...] = _layernorm_f32(x, g_ref[...], b_ref[...], eps).astype(o_ref.dtype)


def layernorm(x, g, b, eps=1e-12, out_dtype=jnp.bfloat16):
    M, H = x.shape
    tm = _pick_tile(M, 1024, 8)
    return pl.pallas_call(
        functools.partial(_ln_kernel, eps=eps),
        out_shape=jax.ShapeDtypeStruct((M, H), out_dtype),
        grid_spec=pltpu.PrefetchScalarGridSpec(
            num_scalar_prefetch=0, grid=(M // tm,),
            in_specs=[pl.BlockSpec((tm, H), lambda i: (i, 0)),
                      pl.BlockSpec((1, H), lambda i: (0, 0)),
                      pl.BlockSpec((1, H), lambda i: (0, 0))],
            out_specs=pl.BlockSpec((tm, H), lambda i: (i, 0))),
        compiler_params=pltpu.CompilerParams(dimension_semantics=("parallel",)),
    )(x, g.reshape(1, H), b.reshape(1, H))


# ------------------------ fully fused encoder layer ---------------------------
# One pallas_call per layer: QKV -> attention -> o_proj -> add&LN -> FFN -> add&LN.
# Grid is (batch,), everything for one sequence lives in VMEM for the whole layer.

def _encoder_layer_kernel(x_ref, m_ref,
                          qkv_w_ref, qkv_b_ref,
                          o_w_ref, o_b_ref,
                          ln1_g_ref, ln1_b_ref,
                          ff1_w_ref, ff1_b_ref,
                          ff2_w_ref, ff2_b_ref,
                          ln2_g_ref, ln2_b_ref,
                          o_ref, ctx_ref,
                          *, n_heads, dh, eps):
    H = n_heads * dh
    scale = 1.0 / math.sqrt(dh)

    x = x_ref[...]                                   # (S, H) bf16
    x_f32 = x.astype(jnp.float32)                    # f32 residual stream
    mask = m_ref[...].astype(jnp.float32)            # (1, S) additive key mask

    # ---- fused QKV projection: one MXU matmul, f32 accumulate, no K-grid loop ----
    qkv = (jnp.dot(x, qkv_w_ref[...], preferred_element_type=jnp.float32)
           + qkv_b_ref[...].astype(jnp.float32)).astype(jnp.bfloat16)   # (S, 3H)

    # ---- per-head attention; each head's context goes straight into its lane slice
    #      of the VMEM scratch (single lane-dense (S, H) consumer afterwards) ----
    for h in range(n_heads):                          # static unroll (n_heads is small)
        q = qkv[:, h * dh:(h + 1) * dh]                          # (S, dh)
        k = qkv[:, H + h * dh:H + (h + 1) * dh]                  # (S, dh)
        v = qkv[:, 2 * H + h * dh:2 * H + (h + 1) * dh]          # (S, dh)
        # contract on dh without transposing k (no XLU transpose)
        s = jax.lax.dot_general(q, k, (((1,), (1,)), ((), ())),
                                preferred_element_type=jnp.float32) * scale
        s = s + mask                                  # broadcast over query rows
        s = s - jnp.max(s, axis=-1, keepdims=True)
        p = jnp.exp(s)                                # f32 softmax
        p = p * pl.reciprocal(jnp.sum(p, axis=-1, keepdims=True), approx=True)
        ctx_ref[:, h * dh:(h + 1) * dh] = jnp.dot(
            p.astype(jnp.bfloat16), v,
            preferred_element_type=jnp.float32).astype(ctx_ref.dtype)

    ctx = ctx_ref[...]                                # (S, H) bf16

    # ---- output projection + residual + LayerNorm, all fused in f32 ----
    attn = (jnp.dot(ctx, o_w_ref[...], preferred_element_type=jnp.float32)
            + o_b_ref[...].astype(jnp.float32) + x_f32)
    x1 = _layernorm_f32(attn, ln1_g_ref[...], ln1_b_ref[...], eps)   # (S, H) f32

    # ---- FFN: the (S, inter) intermediate never leaves VMEM ----
    mid = (jnp.dot(x1.astype(jnp.bfloat16), ff1_w_ref[...],
                   preferred_element_type=jnp.float32)
           + ff1_b_ref[...].astype(jnp.float32))
    mid = _gelu(mid)
    ff = (jnp.dot(mid.astype(jnp.bfloat16), ff2_w_ref[...],
                  preferred_element_type=jnp.float32)
          + ff2_b_ref[...].astype(jnp.float32) + x1)
    x2 = _layernorm_f32(ff, ln2_g_ref[...], ln2_b_ref[...], eps)

    o_ref[...] = x2.astype(o_ref.dtype)               # single lane-dense store


def encoder_layer(x, add_mask, lp, *, n_heads, dh, eps=1e-12):
    B, S, H = x.shape
    inter = lp["ff1_w"].shape[1]

    def wspec(shape):
        return pl.BlockSpec(shape, lambda b: (0, 0))

    in_specs = [
        pl.BlockSpec((None, S, H), lambda b: (b, 0, 0)),     # x         (per batch)
        pl.BlockSpec((None, 1, S), lambda b: (b, 0, 0)),     # add. mask (per batch)
        wspec((H, 3 * H)), wspec((1, 3 * H)),                # qkv
        wspec((H, H)), wspec((1, H)),                        # o_proj
        wspec((1, H)), wspec((1, H)),                        # ln1
        wspec((H, inter)), wspec((1, inter)),                # ff1
        wspec((inter, H)), wspec((1, H)),                    # ff2
        wspec((1, H)), wspec((1, H)),                        # ln2
    ]
    return pl.pallas_call(
        functools.partial(_encoder_layer_kernel, n_heads=n_heads, dh=dh, eps=eps),
        out_shape=jax.ShapeDtypeStruct((B, S, H), jnp.bfloat16),
        grid_spec=pltpu.PrefetchScalarGridSpec(
            num_scalar_prefetch=0, grid=(B,),
            in_specs=in_specs,
            out_specs=pl.BlockSpec((None, S, H), lambda b: (b, 0, 0)),
            scratch_shapes=[pltpu.VMEM((S, H), jnp.bfloat16)]),
        compiler_params=pltpu.CompilerParams(
            dimension_semantics=("parallel",)),   # batch grid -> both TCs on v7x
    )(x, add_mask,
      lp["qkv_w"], lp["qkv_b"].reshape(1, -1),
      lp["o_w"], lp["o_b"].reshape(1, -1),
      lp["ln1_g"].reshape(1, -1), lp["ln1_b"].reshape(1, -1),
      lp["ff1_w"], lp["ff1_b"].reshape(1, -1),
      lp["ff2_w"], lp["ff2_b"].reshape(1, -1),
      lp["ln2_g"].reshape(1, -1), lp["ln2_b"].reshape(1, -1))


# ----------------------- fused pooler + classifier head -----------------------

def _head_kernel(cls_ref, pw_ref, pb_ref, w1_ref, b1_ref,
                 w2_ref, b2_ref, w3_ref, b3_ref, o_ref):
    x = cls_ref[...]                                                    # (B, H) bf16
    pooled = jnp.tanh(jnp.dot(x, pw_ref[...], preferred_element_type=jnp.float32)
                      + pb_ref[...].astype(jnp.float32))
    h = jnp.dot(pooled.astype(jnp.bfloat16), w1_ref[...],
                preferred_element_type=jnp.float32) + b1_ref[...].astype(jnp.float32)
    h = jnp.maximum(h, 0.0)                                             # ReLU (+Dropout=id)
    h = jnp.dot(h.astype(jnp.bfloat16), w2_ref[...],
                preferred_element_type=jnp.float32) + b2_ref[...].astype(jnp.float32)
    h = jnp.maximum(h, 0.0)
    logits = jnp.dot(h.astype(jnp.bfloat16), w3_ref[...],
                     preferred_element_type=jnp.float32) + b3_ref[...].astype(jnp.float32)
    o_ref[...] = logits


def classifier_head(cls, p, num_classes):
    B = cls.shape[0]
    n_pad = p["c3_w"].shape[1]          # num_classes padded to a multiple of 128 lanes
    args = [cls,
            p["pooler_w"], p["pooler_b"].reshape(1, -1),
            p["c1_w"], p["c1_b"].reshape(1, -1),
            p["c2_w"], p["c2_b"].reshape(1, -1),
            p["c3_w"], p["c3_b"].reshape(1, -1)]
    in_specs = [pl.BlockSpec(a.shape, lambda i: (0, 0)) for a in args]
    out = pl.pallas_call(
        _head_kernel,
        out_shape=jax.ShapeDtypeStruct((B, n_pad), jnp.float32),
        grid_spec=pltpu.PrefetchScalarGridSpec(
            num_scalar_prefetch=0, grid=(1,),
            in_specs=in_specs,
            out_specs=pl.BlockSpec((B, n_pad), lambda i: (0, 0))),
    )(*args)
    return out[:, :num_classes]


# --------------------------- model (plain-JAX glue) ---------------------------

def init_params(key, *, vocab, H, n_heads, inter, n_layers, max_pos, num_classes):
    std = 0.02
    keys = iter(jax.random.split(key, 16 + 8 * n_layers))

    def w(shape):
        return std * jax.random.normal(next(keys), shape, jnp.float32)

    bf = lambda a: a.astype(jnp.bfloat16)
    zeros = lambda s: jnp.zeros(s, jnp.float32)
    ones = lambda s: jnp.ones(s, jnp.float32)

    n_pad = ((num_classes + 127) // 128) * 128
    c3 = w((256, num_classes))
    c3_pad = jnp.zeros((256, n_pad), jnp.float32).at[:, :num_classes].set(c3)

    p = {
        "word_emb": bf(w((vocab, H))),
        "pos_emb": bf(w((max_pos, H))),
        "tok_emb": bf(w((2, H))),
        "emb_ln_g": ones((H,)), "emb_ln_b": zeros((H,)),
        "layers": [],
        "pooler_w": bf(w((H, H))), "pooler_b": zeros((H,)),
        "c1_w": bf(w((H, 512))), "c1_b": zeros((512,)),
        "c2_w": bf(w((512, 256))), "c2_b": zeros((256,)),
        "c3_w": bf(c3_pad), "c3_b": zeros((n_pad,)),
    }
    for _ in range(n_layers):
        qw, kw, vw = w((H, H)), w((H, H)), w((H, H))
        p["layers"].append({
            "qkv_w": bf(jnp.concatenate([qw, kw, vw], axis=1)),   # (H, 3H)
            "qkv_b": zeros((3 * H,)),
            "o_w": bf(w((H, H))), "o_b": zeros((H,)),
            "ln1_g": ones((H,)), "ln1_b": zeros((H,)),
            "ff1_w": bf(w((H, inter))), "ff1_b": zeros((inter,)),
            "ff2_w": bf(w((inter, H))), "ff2_b": zeros((H,)),
            "ln2_g": ones((H,)), "ln2_b": zeros((H,)),
        })
    return p


def bert_classifier_forward(params, input_ids, attention_mask, *, n_heads, num_classes):
    B, S = input_ids.shape
    H = params["word_emb"].shape[1]
    dh = H // n_heads

    # Embeddings (gather stays in plain JAX) + LayerNorm (Pallas).
    x = (params["word_emb"][input_ids].astype(jnp.float32)
         + params["pos_emb"][:S][None, :, :].astype(jnp.float32)
         + params["tok_emb"][0][None, None, :].astype(jnp.float32))  # token_type_ids = 0
    x = layernorm(x.reshape(B * S, H), params["emb_ln_g"], params["emb_ln_b"])
    x = x.reshape(B, S, H)                                           # bf16

    # Additive key mask, computed once and reused by every layer.
    add_mask = ((1.0 - attention_mask.astype(jnp.float32)) * -1e9)[:, None, :]  # (B,1,S)

    # One fused pallas_call per encoder layer.
    for lp in params["layers"]:
        x = encoder_layer(x, add_mask, lp, n_heads=n_heads, dh=dh)

    cls = x[:, 0, :]                                                 # [CLS] (B, H)
    # pooler(tanh) + Linear/ReLU/Dropout x2 + final Linear, fused in one kernel.
    return classifier_head(cls, params, num_classes)


# ----------------------------------- main -------------------------------------

if __name__ == "__main__":
    # Small, deterministic config (bert-base-uncased shrunk: 768->32 hidden,
    # 12->2 layers, 12->2 heads, inter 4*H=128, vocab 30522->128).
    B, S, H, N_HEADS, INTER, N_LAYERS, VOCAB, NUM_CLASSES = 2, 8, 32, 2, 128, 2, 128, 3

    key = jax.random.PRNGKey(0)
    k_param, k_ids = jax.random.split(key)
    params = init_params(k_param, vocab=VOCAB, H=H, n_heads=N_HEADS,
                         inter=INTER, n_layers=N_LAYERS, max_pos=S,
                         num_classes=NUM_CLASSES)

    input_ids = jax.random.randint(k_ids, (B, S), 0, VOCAB, dtype=jnp.int32)
    attention_mask = jnp.array([[1, 1, 1, 1, 1, 1, 0, 0],
                                [1, 1, 1, 1, 1, 1, 1, 1]], dtype=jnp.int32)

    fwd = jax.jit(functools.partial(bert_classifier_forward,
                                    n_heads=N_HEADS, num_classes=NUM_CLASSES))
    logits = fwd(params, input_ids, attention_mask)
    logits = jax.block_until_ready(logits)
    assert logits.shape == (B, NUM_CLASSES)
    assert bool(jnp.all(jnp.isfinite(logits)))
    print("KERNEL_OK")
</pallas_src>

<mosaic_0001>
module attributes {stable_mosaic.version = 11 : i64} {
  func.func @_ln_kernel(%arg0: i32, %arg1: memref<16x32xf32, #tpu.memory_space<vmem>>, %arg2: memref<1x32xf32, #tpu.memory_space<vmem>>, %arg3: memref<1x32xf32, #tpu.memory_space<vmem>>, %arg4: memref<16x32xbf16, #tpu.memory_space<vmem>>) attributes {dimension_semantics = [#tpu.dimension_semantics<parallel>], iteration_bounds = array<i64: 1>, scalar_prefetch = 0 : i64, scratch_operands = 0 : i64, tpu.core_type = #tpu.core_type<tc>, window_params = [{transform_indices = @transform_0, window_bounds = array<i64: 16, 32>}, {pipeline_mode = #tpu.pipeline_mode<synchronous>, transform_indices = @transform_1, window_bounds = array<i64: 1, 32>}, {pipeline_mode = #tpu.pipeline_mode<synchronous>, transform_indices = @transform_2, window_bounds = array<i64: 1, 32>}, {transform_indices = @transform_3, window_bounds = array<i64: 16, 32>}]} {
    %c0 = arith.constant 0 : index
    %c0_0 = arith.constant 0 : index
    %0 = vector.load %arg1[%c0, %c0_0] : memref<16x32xf32, #tpu.memory_space<vmem>>, vector<16x32xf32>
    %c0_1 = arith.constant 0 : index
    %c0_2 = arith.constant 0 : index
    %1 = vector.load %arg2[%c0_1, %c0_2] : memref<1x32xf32, #tpu.memory_space<vmem>>, vector<1x32xf32>
    %c0_3 = arith.constant 0 : index
    %c0_4 = arith.constant 0 : index
    %2 = vector.load %arg3[%c0_3, %c0_4] : memref<1x32xf32, #tpu.memory_space<vmem>>, vector<1x32xf32>
    %cst = arith.constant dense<0.000000e+00> : vector<16xf32>
    %3 = vector.multi_reduction <add>, %0, %cst [1] : vector<16x32xf32> to vector<16xf32>
    %4 = vector.shape_cast %3 : vector<16xf32> to vector<16x1xf32>
    %cst_5 = arith.constant 3.200000e+01 : f32
    %5 = vector.broadcast %cst_5 : f32 to vector<16x1xf32>
    %6 = arith.divf %4, %5 : vector<16x1xf32>
    %7 = vector.broadcast %6 : vector<16x1xf32> to vector<16x32xf32>
    %8 = arith.subf %0, %7 : vector<16x32xf32>
    %9 = arith.mulf %8, %8 : vector<16x32xf32>
    %cst_6 = arith.constant dense<0.000000e+00> : vector<16xf32>
    %10 = vector.multi_reduction <add>, %9, %cst_6 [1] : vector<16x32xf32> to vector<16xf32>
    %11 = vector.shape_cast %10 : vector<16xf32> to vector<16x1xf32>
    %cst_7 = arith.constant 3.200000e+01 : f32
    %12 = vector.broadcast %cst_7 : f32 to vector<16x1xf32>
    %13 = arith.divf %11, %12 : vector<16x1xf32>
    %cst_8 = arith.constant 9.99999996E-13 : f32
    %14 = vector.broadcast %cst_8 : f32 to vector<16x1xf32>
    %15 = arith.addf %13, %14 : vector<16x1xf32>
    %16 = math.rsqrt %15 : vector<16x1xf32>
    %17 = vector.broadcast %6 : vector<16x1xf32> to vector<16x32xf32>
    %18 = arith.subf %0, %17 : vector<16x32xf32>
    %19 = vector.broadcast %16 : vector<16x1xf32> to vector<16x32xf32>
    %20 = arith.mulf %18, %19 : vector<16x32xf32>
    %21 = vector.broadcast %1 : vector<1x32xf32> to vector<16x32xf32>
    %22 = arith.mulf %20, %21 : vector<16x32xf32>
    %23 = vector.broadcast %2 : vector<1x32xf32> to vector<16x32xf32>
    %24 = arith.addf %22, %23 : vector<16x32xf32>
    %25 = arith.truncf %24 : vector<16x32xf32> to vector<16x32xbf16>
    %c0_9 = arith.constant 0 : index
    %c0_10 = arith.constant 0 : index
    %26 = vector.load %arg4[%c0_9, %c0_10] : memref<16x32xbf16, #tpu.memory_space<vmem>>, vector<16x32xbf16>
    tpu.vector_store %arg4[%c0_9, %c0_10], %25 {strides = array<i32>} : memref<16x32xbf16, #tpu.memory_space<vmem>>, vector<16x32xbf16>,
    return
  }
  func.func @transform_0(%arg0: i32) -> (i32, i32) {
    %c0_i32 = arith.constant 0 : i32
    %c0_i32_0 = arith.constant 0 : i32
    return %arg0, %c0_i32 : i32, i32
  }
  func.func @transform_1(%arg0: i32) -> (i32, i32) {
    %c0_i32 = arith.constant 0 : i32
    %c0_i32_0 = arith.constant 0 : i32
    %c0_i32_1 = arith.constant 0 : i32
    return %c0_i32, %c0_i32_0 : i32, i32
  }
  func.func @transform_2(%arg0: i32) -> (i32, i32) {
    %c0_i32 = arith.constant 0 : i32
    %c0_i32_0 = arith.constant 0 : i32
    %c0_i32_1 = arith.constant 0 : i32
    return %c0_i32, %c0_i32_0 : i32, i32
  }
  func.func @transform_3(%arg0: i32) -> (i32, i32) {
    %c0_i32 = arith.constant 0 : i32
    %c0_i32_0 = arith.constant 0 : i32
    return %arg0, %c0_i32 : i32, i32
  }
}

module attributes {stable_mosaic.version = 11 : i64} {
  func.func @_encoder_layer_kernel(%arg0: i32, %arg1: memref<1x8x32xbf16, #tpu.memory_space<vmem>>, %arg2: memref<1x1x8xf32, #tpu.memory_space<vmem>>, %arg3: memref<32x96xbf16, #tpu.memory_space<vmem>>, %arg4: memref<1x96xf32, #tpu.memory_space<vmem>>, %arg5: memref<32x32xbf16, #tpu.memory_space<vmem>>, %arg6: memref<1x32xf32, #tpu.memory_space<vmem>>, %arg7: memref<1x32xf32, #tpu.memory_space<vmem>>, %arg8: memref<1x32xf32, #tpu.memory_space<vmem>>, %arg9: memref<32x128xbf16, #tpu.memory_space<vmem>>, %arg10: memref<1x128xf32, #tpu.memory_space<vmem>>, %arg11: memref<128x32xbf16, #tpu.memory_space<vmem>>, %arg12: memref<1x32xf32, #tpu.memory_space<vmem>>, %arg13: memref<1x32xf32, #tpu.memory_space<vmem>>, %arg14: memref<1x32xf32, #tpu.memory_space<vmem>>, %arg15: memref<1x8x32xbf16, #tpu.memory_space<vmem>>, %arg16: memref<8x32xbf16, #tpu.memory_space<vmem>>) attributes {dimension_semantics = [#tpu.dimension_semantics<parallel>], iteration_bounds = array<i64: 2>, scalar_prefetch = 0 : i64, scratch_operands = 1 : i64, tpu.core_type = #tpu.core_type<tc>, window_params = [{transform_indices = @transform_0, window_bounds = array<i64: 1, 8, 32>}, {transform_indices = @transform_1, window_bounds = array<i64: 1, 1, 8>}, {pipeline_mode = #tpu.pipeline_mode<synchronous>, transform_indices = @transform_2, window_bounds = array<i64: 32, 96>}, {pipeline_mode = #tpu.pipeline_mode<synchronous>, transform_indices = @transform_3, window_bounds = array<i64: 1, 96>}, {pipeline_mode = #tpu.pipeline_mode<synchronous>, transform_indices = @transform_4, window_bounds = array<i64: 32, 32>}, {pipeline_mode = #tpu.pipeline_mode<synchronous>, transform_indices = @transform_5, window_bounds = array<i64: 1, 32>}, {pipeline_mode = #tpu.pipeline_mode<synchronous>, transform_indices = @transform_6, window_bounds = array<i64: 1, 32>}, {pipeline_mode = #tpu.pipeline_mode<synchronous>, transform_indices = @transform_7, window_bounds = array<i64: 1, 32>}, {pipeline_mode = #tpu.pipeline_mode<synchronous>, transform_indices = @transform_8, window_bounds = array<i64: 32, 128>}, {pipeline_mode = #tpu.pipeline_mode<synchronous>, transform_indices = @transform_9, window_bounds = array<i64: 1, 128>}, {pipeline_mode = #tpu.pipeline_mode<synchronous>, transform_indices = @transform_10, window_bounds = array<i64: 128, 32>}, {pipeline_mode = #tpu.pipeline_mode<synchronous>, transform_indices = @transform_11, window_bounds = array<i64: 1, 32>}, {pipeline_mode = #tpu.pipeline_mode<synchronous>, transform_indices = @transform_12, window_bounds = array<i64: 1, 32>}, {pipeline_mode = #tpu.pipeline_mode<synchronous>, transform_indices = @transform_13, window_bounds = array<i64: 1, 32>}, {transform_indices = @transform_14, window_bounds = array<i64: 1, 8, 32>}]} {
    %c0 = arith.constant 0 : index
    %c0_0 = arith.constant 0 : index
    %c0_1 = arith.constant 0 : index
    %0 = vector.load %arg1[%c0, %c0_0, %c0_1] : memref<1x8x32xbf16, #tpu.memory_space<vmem>>, vector<1x8x32xbf16>
    %1 = vector.shape_cast %0 : vector<1x8x32xbf16> to vector<8x32xbf16>
    %2 = arith.extf %1 : vector<8x32xbf16> to vector<8x32xf32>
    %c0_2 = arith.constant 0 : index
    %c0_3 = arith.constant 0 : index
    %c0_4 = arith.constant 0 : index
    %3 = vector.load %arg2[%c0_2, %c0_3, %c0_4] : memref<1x1x8xf32, #tpu.memory_space<vmem>>, vector<1x1x8xf32>
    %4 = vector.shape_cast %3 : vector<1x1x8xf32> to vector<1x8xf32>
    %c0_5 = arith.constant 0 : index
    %c0_6 = arith.constant 0 : index
    %5 = vector.load %arg3[%c0_5, %c0_6] : memref<32x96xbf16, #tpu.memory_space<vmem>>, vector<32x96xbf16>
    %cst = arith.constant dense<0.000000e+00> : vector<8x96xf32>
    %6 = tpu.matmul %1, %5, %cst {dimension_numbers = #tpu.dot_dimension_numbers<[1], [0], [0], [1], [0, 0, 1, 1], [], []>} : vector<8x32xbf16>, vector<32x96xbf16>, vector<8x96xf32> -> vector<8x96xf32>
    %c0_7 = arith.constant 0 : index
    %c0_8 = arith.constant 0 : index
    %7 = vector.load %arg4[%c0_7, %c0_8] : memref<1x96xf32, #tpu.memory_space<vmem>>, vector<1x96xf32>
    %8 = vector.broadcast %7 : vector<1x96xf32> to vector<8x96xf32>
    %9 = arith.addf %6, %8 : vector<8x96xf32>
    %10 = arith.truncf %9 : vector<8x96xf32> to vector<8x96xbf16>
    %11 = vector.extract_strided_slice %10 {offsets = [0, 0], sizes = [8, 16], strides = [1, 1]} : vector<8x96xbf16> to vector<8x16xbf16>
    %12 = vector.extract_strided_slice %10 {offsets = [0, 32], sizes = [8, 16], strides = [1, 1]} : vector<8x96xbf16> to vector<8x16xbf16>
    %13 = vector.extract_strided_slice %10 {offsets = [0, 64], sizes = [8, 16], strides = [1, 1]} : vector<8x96xbf16> to vector<8x16xbf16>
    %cst_9 = arith.constant dense<0.000000e+00> : vector<8x8xf32>
    %14 = tpu.matmul %11, %12, %cst_9 {dimension_numbers = #tpu.dot_dimension_numbers<[1], [1], [0], [0], [0, 0, 1, 0], [], []>} : vector<8x16xbf16>, vector<8x16xbf16>, vector<8x8xf32> -> vector<8x8xf32>
    %cst_10 = arith.constant 2.500000e-01 : f32
    %15 = vector.broadcast %cst_10 : f32 to vector<8x8xf32>
    %16 = arith.mulf %14, %15 : vector<8x8xf32>
    %17 = vector.broadcast %4 : vector<1x8xf32> to vector<8x8xf32>
    %18 = arith.addf %16, %17 : vector<8x8xf32>
    %cst_11 = arith.constant dense<0xFF800000> : vector<8xf32>
    %19 = vector.multi_reduction <maximumf>, %18, %cst_11 [1] : vector<8x8xf32> to vector<8xf32>
    %20 = vector.shape_cast %19 : vector<8xf32> to vector<8x1xf32>
    %21 = vector.broadcast %20 : vector<8x1xf32> to vector<8x8xf32>
    %22 = arith.subf %18, %21 : vector<8x8xf32>
    %23 = math.exp %22 : vector<8x8xf32>
    %cst_12 = arith.constant dense<0.000000e+00> : vector<8xf32>
    %24 = vector.multi_reduction <add>, %23, %cst_12 [1] : vector<8x8xf32> to vector<8xf32>
    %25 = vector.shape_cast %24 : vector<8xf32> to vector<8x1xf32>
    %26 = tpu.reciprocal %25 {approx = true} : vector<8x1xf32> -> vector<8x1xf32>
    %27 = vector.broadcast %26 : vector<8x1xf32> to vector<8x8xf32>
    %28 = arith.mulf %23, %27 : vector<8x8xf32>
    %29 = arith.truncf %28 : vector<8x8xf32> to vector<8x8xbf16>
    %cst_13 = arith.constant dense<0.000000e+00> : vector<8x16xf32>
    %30 = tpu.matmul %29, %13, %cst_13 {dimension_numbers = #tpu.dot_dimension_numbers<[1], [0], [0], [1], [0, 0, 1, 1], [], []>} : vector<8x8xbf16>, vector<8x16xbf16>, vector<8x16xf32> -> vector<8x16xf32>
    %31 = arith.truncf %30 : vector<8x16xf32> to vector<8x16xbf16>
    %c0_14 = arith.constant 0 : index
    %c0_15 = arith.constant 0 : index
    %32 = vector.load %arg16[%c0_14, %c0_15] : memref<8x32xbf16, #tpu.memory_space<vmem>>, vector<8x16xbf16>
    tpu.vector_store %arg16[%c0_14, %c0_15], %31 {strides = array<i32>} : memref<8x32xbf16, #tpu.memory_space<vmem>>, vector<8x16xbf16>,
    %33 = vector.extract_strided_slice %10 {offsets = [0, 16], sizes = [8, 16], strides = [1, 1]} : vector<8x96xbf16> to vector<8x16xbf16>
    %34 = vector.extract_strided_slice %10 {offsets = [0, 48], sizes = [8, 16], strides = [1, 1]} : vector<8x96xbf16> to vector<8x16xbf16>
    %35 = vector.extract_strided_slice %10 {offsets = [0, 80], sizes = [8, 16], strides = [1, 1]} : vector<8x96xbf16> to vector<8x16xbf16>
    %cst_16 = arith.constant dense<0.000000e+00> : vector<8x8xf32>
    %36 = tpu.matmul %33, %34, %cst_16 {dimension_numbers = #tpu.dot_dimension_numbers<[1], [1], [0], [0], [0, 0, 1, 0], [], []>} : vector<8x16xbf16>, vector<8x16xbf16>, vector<8x8xf32> -> vector<8x8xf32>
    %cst_17 = arith.constant 2.500000e-01 : f32
    %37 = vector.broadcast %cst_17 : f32 to vector<8x8xf32>
    %38 = arith.mulf %36, %37 : vector<8x8xf32>
    %39 = vector.broadcast %4 : vector<1x8xf32> to vector<8x8xf32>
    %40 = arith.addf %38, %39 : vector<8x8xf32>
    %cst_18 = arith.constant dense<0xFF800000> : vector<8xf32>
    %41 = vector.multi_reduction <maximumf>, %40, %cst_18 [1] : vector<8x8xf32> to vector<8xf32>
    %42 = vector.shape_cast %41 : vector<8xf32> to vector<8x1xf32>
    %43 = vector.broadcast %42 : vector<8x1xf32> to vector<8x8xf32>
    %44 = arith.subf %40, %43 : vector<8x8xf32>
    %45 = math.exp %44 : vector<8x8xf32>
    %cst_19 = arith.constant dense<0.000000e+00> : vector<8xf32>
    %46 = vector.multi_reduction <add>, %45, %cst_19 [1] : vector<8x8xf32> to vector<8xf32>
    %47 = vector.shape_cast %46 : vector<8xf32> to vector<8x1xf32>
    %48 = tpu.reciprocal %47 {approx = true} : vector<8x1xf32> -> vector<8x1xf32>
    %49 = vector.broadcast %48 : vector<8x1xf32> to vector<8x8xf32>
    %50 = arith.mulf %45, %49 : vector<8x8xf32>
    %51 = arith.truncf %50 : vector<8x8xf32> to vector<8x8xbf16>
    %cst_20 = arith.constant dense<0.000000e+00> : vector<8x16xf32>
    %52 = tpu.matmul %51, %35, %cst_20 {dimension_numbers = #tpu.dot_dimension_numbers<[1], [0], [0], [1], [0, 0, 1, 1], [], []>} : vector<8x8xbf16>, vector<8x16xbf16>, vector<8x16xf32> -> vector<8x16xf32>
    %53 = arith.truncf %52 : vector<8x16xf32> to vector<8x16xbf16>
    %c0_21 = arith.constant 0 : index
    %c16 = arith.constant 16 : index
    %54 = vector.load %arg16[%c0_21, %c16] : memref<8x32xbf16, #tpu.memory_space<vmem>>, vector<8x16xbf16>
    tpu.vector_store %arg16[%c0_21, %c16], %53 {strides = array<i32>} : memref<8x32xbf16, #tpu.memory_space<vmem>>, vector<8x16xbf16>,
    %c0_22 = arith.constant 0 : index
    %c0_23 = arith.constant 0 : index
    %55 = vector.load %arg16[%c0_22, %c0_23] : memref<8x32xbf16, #tpu.memory_space<vmem>>, vector<8x32xbf16>
    %c0_24 = arith.constant 0 : index
    %c0_25 = arith.constant 0 : index
    %56 = vector.load %arg5[%c0_24, %c0_25] : memref<32x32xbf16, #tpu.memory_space<vmem>>, vector<32x32xbf16>
    %cst_26 = arith.constant dense<0.000000e+00> : vector<8x32xf32>
    %57 = tpu.matmul %55, %56, %cst_26 {dimension_numbers = #tpu.dot_dimension_numbers<[1], [0], [0], [1], [0, 0, 1, 1], [], []>} : vector<8x32xbf16>, vector<32x32xbf16>, vector<8x32xf32> -> vector<8x32xf32>
    %c0_27 = arith.constant 0 : index
    %c0_28 = arith.constant 0 : index
    %58 = vector.load %arg6[%c0_27, %c0_28] : memref<1x32xf32, #tpu.memory_space<vmem>>, vector<1x32xf32>
    %59 = vector.broadcast %58 : vector<1x32xf32> to vector<8x32xf32>
    %60 = arith.addf %57, %59 : vector<8x32xf32>
    %61 = arith.addf %60, %2 : vector<8x32xf32>
    %c0_29 = arith.constant 0 : index
    %c0_30 = arith.constant 0 : index
    %62 = vector.load %arg7[%c0_29, %c0_30] : memref<1x32xf32, #tpu.memory_space<vmem>>, vector<1x32xf32>
    %c0_31 = arith.constant 0 : index
    %c0_32 = arith.constant 0 : index
    %63 = vector.load %arg8[%c0_31, %c0_32] : memref<1x32xf32, #tpu.memory_space<vmem>>, vector<1x32xf32>
    %cst_33 = arith.constant dense<0.000000e+00> : vector<8xf32>
    %64 = vector.multi_reduction <add>, %61, %cst_33 [1] : vector<8x32xf32> to vector<8xf32>
    %65 = vector.shape_cast %64 : vector<8xf32> to vector<8x1xf32>
    %cst_34 = arith.constant 3.200000e+01 : f32
    %66 = vector.broadcast %cst_34 : f32 to vector<8x1xf32>
    %67 = arith.divf %65, %66 : vector<8x1xf32>
    %68 = vector.broadcast %67 : vector<8x1xf32> to vector<8x32xf32>
    %69 = arith.subf %61, %68 : vector<8x32xf32>
    %70 = arith.mulf %69, %69 : vector<8x32xf32>
    %cst_35 = arith.constant dense<0.000000e+00> : vector<8xf32>
    %71 = vector.multi_reduction <add>, %70, %cst_35 [1] : vector<8x32xf32> to vector<8xf32>
    %72 = vector.shape_cast %71 : vector<8xf32> to vector<8x1xf32>
    %cst_36 = arith.constant 3.200000e+01 : f32
    %73 = vector.broadcast %cst_36 : f32 to vector<8x1xf32>
    %74 = arith.divf %72, %73 : vector<8x1xf32>
    %cst_37 = arith.constant 9.99999996E-13 : f32
    %75 = vector.broadcast %cst_37 : f32 to vector<8x1xf32>
    %76 = arith.addf %74, %75 : vector<8x1xf32>
    %77 = math.rsqrt %76 : vector<8x1xf32>
    %78 = vector.broadcast %67 : vector<8x1xf32> to vector<8x32xf32>
    %79 = arith.subf %61, %78 : vector<8x32xf32>
    %80 = vector.broadcast %77 : vector<8x1xf32> to vector<8x32xf32>
    %81 = arith.mulf %79, %80 : vector<8x32xf32>
    %82 = vector.broadcast %62 : vector<1x32xf32> to vector<8x32xf32>
    %83 = arith.mulf %81, %82 : vector<8x32xf32>
    %84 = vector.broadcast %63 : vector<1x32xf32> to vector<8x32xf32>
    %85 = arith.addf %83, %84 : vector<8x32xf32>
    %86 = arith.truncf %85 : vector<8x32xf32> to vector<8x32xbf16>
    %c0_38 = arith.constant 0 : index
    %c0_39 = arith.constant 0 : index
    %87 = vector.load %arg9[%c0_38, %c0_39] : memref<32x128xbf16, #tpu.memory_space<vmem>>, vector<32x128xbf16>
    %cst_40 = arith.constant dense<0.000000e+00> : vector<8x128xf32>
    %88 = tpu.matmul %86, %87, %cst_40 {dimension_numbers = #tpu.dot_dimension_numbers<[1], [0], [0], [1], [0, 0, 1, 1], [], []>} : vector<8x32xbf16>, vector<32x128xbf16>, vector<8x128xf32> -> vector<8x128xf32>
    %c0_41 = arith.constant 0 : index
    %c0_42 = arith.constant 0 : index
    %89 = vector.load %arg10[%c0_41, %c0_42] : memref<1x128xf32, #tpu.memory_space<vmem>>, vector<1x128xf32>
    %90 = vector.broadcast %89 : vector<1x128xf32> to vector<8x128xf32>
    %91 = arith.addf %88, %90 : vector<8x128xf32>
    %cst_43 = arith.constant 5.000000e-01 : f32
    %92 = vector.broadcast %cst_43 : f32 to vector<8x128xf32>
    %93 = arith.mulf %92, %91 : vector<8x128xf32>
    %cst_44 = arith.constant 4.471500e-02 : f32
    %94 = vector.broadcast %cst_44 : f32 to vector<8x128xf32>
    %95 = arith.mulf %94, %91 : vector<8x128xf32>
    %96 = arith.mulf %95, %91 : vector<8x128xf32>
    %97 = arith.mulf %96, %91 : vector<8x128xf32>
    %98 = arith.addf %91, %97 : vector<8x128xf32>
    %cst_45 = arith.constant 0.797884583 : f32
    %99 = vector.broadcast %cst_45 : f32 to vector<8x128xf32>
    %100 = arith.mulf %99, %98 : vector<8x128xf32>
    %101 = math.tanh %100 : vector<8x128xf32>
    %cst_46 = arith.constant 1.000000e+00 : f32
    %102 = vector.broadcast %cst_46 : f32 to vector<8x128xf32>
    %103 = arith.addf %102, %101 : vector<8x128xf32>
    %104 = arith.mulf %93, %103 : vector<8x128xf32>
    %105 = arith.truncf %104 : vector<8x128xf32> to vector<8x128xbf16>
    %c0_47 = arith.constant 0 : index
    %c0_48 = arith.constant 0 : index
    %106 = vector.load %arg11[%c0_47, %c0_48] : memref<128x32xbf16, #tpu.memory_space<vmem>>, vector<128x32xbf16>
    %cst_49 = arith.constant dense<0.000000e+00> : vector<8x32xf32>
    %107 = tpu.matmul %105, %106, %cst_49 {dimension_numbers = #tpu.dot_dimension_numbers<[1], [0], [0], [1], [0, 0, 1, 1], [], []>} : vector<8x128xbf16>, vector<128x32xbf16>, vector<8x32xf32> -> vector<8x32xf32>
    %c0_50 = arith.constant 0 : index
    %c0_51 = arith.constant 0 : index
    %108 = vector.load %arg12[%c0_50, %c0_51] : memref<1x32xf32, #tpu.memory_space<vmem>>, vector<1x32xf32>
    %109 = vector.broadcast %108 : vector<1x32xf32> to vector<8x32xf32>
    %110 = arith.addf %107, %109 : vector<8x32xf32>
    %111 = arith.addf %110, %85 : vector<8x32xf32>
    %c0_52 = arith.constant 0 : index
    %c0_53 = arith.constant 0 : index
    %112 = vector.load %arg13[%c0_52, %c0_53] : memref<1x32xf32, #tpu.memory_space<vmem>>, vector<1x32xf32>
    %c0_54 = arith.constant 0 : index
    %c0_55 = arith.constant 0 : index
    %113 = vector.load %arg14[%c0_54, %c0_55] : memref<1x32xf32, #tpu.memory_space<vmem>>, vector<1x32xf32>
    %cst_56 = arith.constant dense<0.000000e+00> : vector<8xf32>
    %114 = vector.multi_reduction <add>, %111, %cst_56 [1] : vector<8x32xf32> to vector<8xf32>
    %115 = vector.shape_cast %114 : vector<8xf32> to vector<8x1xf32>
    %cst_57 = arith.constant 3.200000e+01 : f32
    %116 = vector.broadcast %cst_57 : f32 to vector<8x1xf32>
    %117 = arith.divf %115, %116 : vector<8x1xf32>
    %118 = vector.broadcast %117 : vector<8x1xf32> to vector<8x32xf32>
    %119 = arith.subf %111, %118 : vector<8x32xf32>
    %120 = arith.mulf %119, %119 : vector<8x32xf32>
    %cst_58 = arith.constant dense<0.000000e+00> : vector<8xf32>
    %121 = vector.multi_reduction <add>, %120, %cst_58 [1] : vector<8x32xf32> to vector<8xf32>
    %122 = vector.shape_cast %121 : vector<8xf32> to vector<8x1xf32>
    %cst_59 = arith.constant 3.200000e+01 : f32
    %123 = vector.broadcast %cst_59 : f32 to vector<8x1xf32>
    %124 = arith.divf %122, %123 : vector<8x1xf32>
    %cst_60 = arith.constant 9.99999996E-13 : f32
    %125 = vector.broadcast %cst_60 : f32 to vector<8x1xf32>
    %126 = arith.addf %124, %125 : vector<8x1xf32>
    %127 = math.rsqrt %126 : vector<8x1xf32>
    %128 = vector.broadcast %117 : vector<8x1xf32> to vector<8x32xf32>
    %129 = arith.subf %111, %128 : vector<8x32xf32>
    %130 = vector.broadcast %127 : vector<8x1xf32> to vector<8x32xf32>
    %131 = arith.mulf %129, %130 : vector<8x32xf32>
    %132 = vector.broadcast %112 : vector<1x32xf32> to vector<8x32xf32>
    %133 = arith.mulf %131, %132 : vector<8x32xf32>
    %134 = vector.broadcast %113 : vector<1x32xf32> to vector<8x32xf32>
    %135 = arith.addf %133, %134 : vector<8x32xf32>
    %136 = arith.truncf %135 : vector<8x32xf32> to vector<8x32xbf16>
    %c0_61 = arith.constant 0 : index
    %c0_62 = arith.constant 0 : index
    %c0_63 = arith.constant 0 : index
    %137 = vector.load %arg15[%c0_61, %c0_62, %c0_63] : memref<1x8x32xbf16, #tpu.memory_space<vmem>>, vector<1x8x32xbf16>
    %138 = vector.shape_cast %137 : vector<1x8x32xbf16> to vector<8x32xbf16>
    %139 = vector.shape_cast %136 : vector<8x32xbf16> to vector<1x8x32xbf16>
    tpu.vector_store %arg15[%c0_61, %c0_62, %c0_63], %139 {strides = array<i32>} : memref<1x8x32xbf16, #tpu.memory_space<vmem>>, vector<1x8x32xbf16>,
    return
  }
  func.func @transform_0(%arg0: i32) -> (i32, i32, i32) {
    %c0_i32 = arith.constant 0 : i32
    %c0_i32_0 = arith.constant 0 : i32
    %c0_i32_1 = arith.constant 0 : i32
    return %arg0, %c0_i32, %c0_i32_0 : i32, i32, i32
  }
  func.func @transform_1(%arg0: i32) -> (i32, i32, i32) {
    %c0_i32 = arith.constant 0 : i32
    %c0_i32_0 = arith.constant 0 : i32
    %c0_i32_1 = arith.constant 0 : i32
    return %arg0, %c0_i32, %c0_i32_0 : i32, i32, i32
  }
  func.func @transform_2(%arg0: i32) -> (i32, i32) {
    %c0_i32 = arith.constant 0 : i32
    %c0_i32_0 = arith.constant 0 : i32
    %c0_i32_1 = arith.constant 0 : i32
    return %c0_i32, %c0_i32_0 : i32, i32
  }
  func.func @transform_3(%arg0: i32) -> (i32, i32) {
    %c0_i32 = arith.constant 0 : i32
    %c0_i32_0 = arith.constant 0 : i32
    %c0_i32_1 = arith.constant 0 : i32
    return %c0_i32, %c0_i32_0 : i32, i32
  }
  func.func @transform_4(%arg0: i32) -> (i32, i32) {
    %c0_i32 = arith.constant 0 : i32
    %c0_i32_0 = arith.constant 0 : i32
    %c0_i32_1 = arith.constant 0 : i32
    return %c0_i32, %c0_i32_0 : i32, i32
  }
  func.func @transform_5(%arg0: i32) -> (i32, i32) {
    %c0_i32 = arith.constant 0 : i32
    %c0_i32_0 = arith.constant 0 : i32
    %c0_i32_1 = arith.constant 0 : i32
    return %c0_i32, %c0_i32_0 : i32, i32
  }
  func.func @transform_6(%arg0: i32) -> (i32, i32) {
    %c0_i32 = arith.constant 0 : i32
    %c0_i32_0 = arith.constant 0 : i32
    %c0_i32_1 = arith.constant 0 : i32
    return %c0_i32, %c0_i32_0 : i32, i32
  }
  func.func @transform_7(%arg0: i32) -> (i32, i32) {
    %c0_i32 = arith.constant 0 : i32
    %c0_i32_0 = arith.constant 0 : i32
    %c0_i32_1 = arith.constant 0 : i32
    return %c0_i32, %c0_i32_0 : i32, i32
  }
  func.func @transform_8(%arg0: i32) -> (i32, i32) {
    %c0_i32 = arith.constant 0 : i32
    %c0_i32_0 = arith.constant 0 : i32
    %c0_i32_1 = arith.constant 0 : i32
    return %c0_i32, %c0_i32_0 : i32, i32
  }
  func.func @transform_9(%arg0: i32) -> (i32, i32) {
    %c0_i32 = arith.constant 0 : i32
    %c0_i32_0 = arith.constant 0 : i32
    %c0_i32_1 = arith.constant 0 : i32
    return %c0_i32, %c0_i32_0 : i32, i32
  }
  func.func @transform_10(%arg0: i32) -> (i32, i32) {
    %c0_i32 = arith.constant 0 : i32
    %c0_i32_0 = arith.constant 0 : i32
    %c0_i32_1 = arith.constant 0 : i32
    return %c0_i32, %c0_i32_0 : i32, i32
  }
  func.func @transform_11(%arg0: i32) -> (i32, i32) {
    %c0_i32 = arith.constant 0 : i32
    %c0_i32_0 = arith.constant 0 : i32
    %c0_i32_1 = arith.constant 0 : i32
    return %c0_i32, %c0_i32_0 : i32, i32
  }
  func.func @transform_12(%arg0: i32) -> (i32, i32) {
    %c0_i32 = arith.constant 0 : i32
    %c0_i32_0 = arith.constant 0 : i32
    %c0_i32_1 = arith.constant 0 : i32
    return %c0_i32, %c0_i32_0 : i32, i32
  }
  func.func @transform_13(%arg0: i32) -> (i32, i32) {
    %c0_i32 = arith.constant 0 : i32
    %c0_i32_0 = arith.constant 0 : i32
    %c0_i32_1 = arith.constant 0 : i32
    return %c0_i32, %c0_i32_0 : i32, i32
  }
  func.func @transform_14(%arg0: i32) -> (i32, i32, i32) {
    %c0_i32 = arith.constant 0 : i32
    %c0_i32_0 = arith.constant 0 : i32
    %c0_i32_1 = arith.constant 0 : i32
    return %arg0, %c0_i32, %c0_i32_0 : i32, i32, i32
  }
}

module attributes {stable_mosaic.version = 11 : i64} {
  func.func @_encoder_layer_kernel(%arg0: i32, %arg1: memref<1x8x32xbf16, #tpu.memory_space<vmem>>, %arg2: memref<1x1x8xf32, #tpu.memory_space<vmem>>, %arg3: memref<32x96xbf16, #tpu.memory_space<vmem>>, %arg4: memref<1x96xf32, #tpu.memory_space<vmem>>, %arg5: memref<32x32xbf16, #tpu.memory_space<vmem>>, %arg6: memref<1x32xf32, #tpu.memory_space<vmem>>, %arg7: memref<1x32xf32, #tpu.memory_space<vmem>>, %arg8: memref<1x32xf32, #tpu.memory_space<vmem>>, %arg9: memref<32x128xbf16, #tpu.memory_space<vmem>>, %arg10: memref<1x128xf32, #tpu.memory_space<vmem>>, %arg11: memref<128x32xbf16, #tpu.memory_space<vmem>>, %arg12: memref<1x32xf32, #tpu.memory_space<vmem>>, %arg13: memref<1x32xf32, #tpu.memory_space<vmem>>, %arg14: memref<1x32xf32, #tpu.memory_space<vmem>>, %arg15: memref<1x8x32xbf16, #tpu.memory_space<vmem>>, %arg16: memref<8x32xbf16, #tpu.memory_space<vmem>>) attributes {dimension_semantics = [#tpu.dimension_semantics<parallel>], iteration_bounds = array<i64: 2>, scalar_prefetch = 0 : i64, scratch_operands = 1 : i64, tpu.core_type = #tpu.core_type<tc>, window_params = [{transform_indices = @transform_0, window_bounds = array<i64: 1, 8, 32>}, {transform_indices = @transform_1, window_bounds = array<i64: 1, 1, 8>}, {pipeline_mode = #tpu.pipeline_mode<synchronous>, transform_indices = @transform_2, window_bounds = array<i64: 32, 96>}, {pipeline_mode = #tpu.pipeline_mode<synchronous>, transform_indices = @transform_3, window_bounds = array<i64: 1, 96>}, {pipeline_mode = #tpu.pipeline_mode<synchronous>, transform_indices = @transform_4, window_bounds = array<i64: 32, 32>}, {pipeline_mode = #tpu.pipeline_mode<synchronous>, transform_indices = @transform_5, window_bounds = array<i64: 1, 32>}, {pipeline_mode = #tpu.pipeline_mode<synchronous>, transform_indices = @transform_6, window_bounds = array<i64: 1, 32>}, {pipeline_mode = #tpu.pipeline_mode<synchronous>, transform_indices = @transform_7, window_bounds = array<i64: 1, 32>}, {pipeline_mode = #tpu.pipeline_mode<synchronous>, transform_indices = @transform_8, window_bounds = array<i64: 32, 128>}, {pipeline_mode = #tpu.pipeline_mode<synchronous>, transform_indices = @transform_9, window_bounds = array<i64: 1, 128>}, {pipeline_mode = #tpu.pipeline_mode<synchronous>, transform_indices = @transform_10, window_bounds = array<i64: 128, 32>}, {pipeline_mode = #tpu.pipeline_mode<synchronous>, transform_indices = @transform_11, window_bounds = array<i64: 1, 32>}, {pipeline_mode = #tpu.pipeline_mode<synchronous>, transform_indices = @transform_12, window_bounds = array<i64: 1, 32>}, {pipeline_mode = #tpu.pipeline_mode<synchronous>, transform_indices = @transform_13, window_bounds = array<i64: 1, 32>}, {transform_indices = @transform_14, window_bounds = array<i64: 1, 8, 32>}]} {
    %c0 = arith.constant 0 : index
    %c0_0 = arith.constant 0 : index
    %c0_1 = arith.constant 0 : index
    %0 = vector.load %arg1[%c0, %c0_0, %c0_1] : memref<1x8x32xbf16, #tpu.memory_space<vmem>>, vector<1x8x32xbf16>
    %1 = vector.shape_cast %0 : vector<1x8x32xbf16> to vector<8x32xbf16>
    %2 = arith.extf %1 : vector<8x32xbf16> to vector<8x32xf32>
    %c0_2 = arith.constant 0 : index
    %c0_3 = arith.constant 0 : index
    %c0_4 = arith.constant 0 : index
    %3 = vector.load %arg2[%c0_2, %c0_3, %c0_4] : memref<1x1x8xf32, #tpu.memory_space<vmem>>, vector<1x1x8xf32>
    %4 = vector.shape_cast %3 : vector<1x1x8xf32> to vector<1x8xf32>
    %c0_5 = arith.constant 0 : index
    %c0_6 = arith.constant 0 : index
    %5 = vector.load %arg3[%c0_5, %c0_6] : memref<32x96xbf16, #tpu.memory_space<vmem>>, vector<32x96xbf16>
    %cst = arith.constant dense<0.000000e+00> : vector<8x96xf32>
    %6 = tpu.matmul %1, %5, %cst {dimension_numbers = #tpu.dot_dimension_numbers<[1], [0], [0], [1], [0, 0, 1, 1], [], []>} : vector<8x32xbf16>, vector<32x96xbf16>, vector<8x96xf32> -> vector<8x96xf32>
    %c0_7 = arith.constant 0 : index
    %c0_8 = arith.constant 0 : index
    %7 = vector.load %arg4[%c0_7, %c0_8] : memref<1x96xf32, #tpu.memory_space<vmem>>, vector<1x96xf32>
    %8 = vector.broadcast %7 : vector<1x96xf32> to vector<8x96xf32>
    %9 = arith.addf %6, %8 : vector<8x96xf32>
    %10 = arith.truncf %9 : vector<8x96xf32> to vector<8x96xbf16>
    %11 = vector.extract_strided_slice %10 {offsets = [0, 0], sizes = [8, 16], strides = [1, 1]} : vector<8x96xbf16> to vector<8x16xbf16>
    %12 = vector.extract_strided_slice %10 {offsets = [0, 32], sizes = [8, 16], strides = [1, 1]} : vector<8x96xbf16> to vector<8x16xbf16>
    %13 = vector.extract_strided_slice %10 {offsets = [0, 64], sizes = [8, 16], strides = [1, 1]} : vector<8x96xbf16> to vector<8x16xbf16>
    %cst_9 = arith.constant dense<0.000000e+00> : vector<8x8xf32>
    %14 = tpu.matmul %11, %12, %cst_9 {dimension_numbers = #tpu.dot_dimension_numbers<[1], [1], [0], [0], [0, 0, 1, 0], [], []>} : vector<8x16xbf16>, vector<8x16xbf16>, vector<8x8xf32> -> vector<8x8xf32>
    %cst_10 = arith.constant 2.500000e-01 : f32
    %15 = vector.broadcast %cst_10 : f32 to vector<8x8xf32>
    %16 = arith.mulf %14, %15 : vector<8x8xf32>
    %17 = vector.broadcast %4 : vector<1x8xf32> to vector<8x8xf32>
    %18 = arith.addf %16, %17 : vector<8x8xf32>
    %cst_11 = arith.constant dense<0xFF800000> : vector<8xf32>
    %19 = vector.multi_reduction <maximumf>, %18, %cst_11 [1] : vector<8x8xf32> to vector<8xf32>
    %20 = vector.shape_cast %19 : vector<8xf32> to vector<8x1xf32>
    %21 = vector.broadcast %20 : vector<8x1xf32> to vector<8x8xf32>
    %22 = arith.subf %18, %21 : vector<8x8xf32>
    %23 = math.exp %22 : vector<8x8xf32>
    %cst_12 = arith.constant dense<0.000000e+00> : vector<8xf32>
    %24 = vector.multi_reduction <add>, %23, %cst_12 [1] : vector<8x8xf32> to vector<8xf32>
    %25 = vector.shape_cast %24 : vector<8xf32> to vector<8x1xf32>
    %26 = tpu.reciprocal %25 {approx = true} : vector<8x1xf32> -> vector<8x1xf32>
    %27 = vector.broadcast %26 : vector<8x1xf32> to vector<8x8xf32>
    %28 = arith.mulf %23, %27 : vector<8x8xf32>
    %29 = arith.truncf %28 : vector<8x8xf32> to vector<8x8xbf16>
    %cst_13 = arith.constant dense<0.000000e+00> : vector<8x16xf32>
    %30 = tpu.matmul %29, %13, %cst_13 {dimension_numbers = #tpu.dot_dimension_numbers<[1], [0], [0], [1], [0, 0, 1, 1], [], []>} : vector<8x8xbf16>, vector<8x16xbf16>, vector<8x16xf32> -> vector<8x16xf32>
    %31 = arith.truncf %30 : vector<8x16xf32> to vector<8x16xbf16>
    %c0_14 = arith.constant 0 : index
    %c0_15 = arith.constant 0 : index
    %32 = vector.load %arg16[%c0_14, %c0_15] : memref<8x32xbf16, #tpu.memory_space<vmem>>, vector<8x16xbf16>
    tpu.vector_store %arg16[%c0_14, %c0_15], %31 {strides = array<i32>} : memref<8x32xbf16, #tpu.memory_space<vmem>>, vector<8x16xbf16>,
    %33 = vector.extract_strided_slice %10 {offsets = [0, 16], sizes = [8, 16], strides = [1, 1]} : vector<8x96xbf16> to vector<8x16xbf16>
    %34 = vector.extract_strided_slice %10 {offsets = [0, 48], sizes = [8, 16], strides = [1, 1]} : vector<8x96xbf16> to vector<8x16xbf16>
    %35 = vector.extract_strided_slice %10 {offsets = [0, 80], sizes = [8, 16], strides = [1, 1]} : vector<8x96xbf16> to vector<8x16xbf16>
    %cst_16 = arith.constant dense<0.000000e+00> : vector<8x8xf32>
    %36 = tpu.matmul %33, %34, %cst_16 {dimension_numbers = #tpu.dot_dimension_numbers<[1], [1], [0], [0], [0, 0, 1, 0], [], []>} : vector<8x16xbf16>, vector<8x16xbf16>, vector<8x8xf32> -> vector<8x8xf32>
    %cst_17 = arith.constant 2.500000e-01 : f32
    %37 = vector.broadcast %cst_17 : f32 to vector<8x8xf32>
    %38 = arith.mulf %36, %37 : vector<8x8xf32>
    %39 = vector.broadcast %4 : vector<1x8xf32> to vector<8x8xf32>
    %40 = arith.addf %38, %39 : vector<8x8xf32>
    %cst_18 = arith.constant dense<0xFF800000> : vector<8xf32>
    %41 = vector.multi_reduction <maximumf>, %40, %cst_18 [1] : vector<8x8xf32> to vector<8xf32>
    %42 = vector.shape_cast %41 : vector<8xf32> to vector<8x1xf32>
    %43 = vector.broadcast %42 : vector<8x1xf32> to vector<8x8xf32>
    %44 = arith.subf %40, %43 : vector<8x8xf32>
    %45 = math.exp %44 : vector<8x8xf32>
    %cst_19 = arith.constant dense<0.000000e+00> : vector<8xf32>
    %46 = vector.multi_reduction <add>, %45, %cst_19 [1] : vector<8x8xf32> to vector<8xf32>
    %47 = vector.shape_cast %46 : vector<8xf32> to vector<8x1xf32>
    %48 = tpu.reciprocal %47 {approx = true} : vector<8x1xf32> -> vector<8x1xf32>
    %49 = vector.broadcast %48 : vector<8x1xf32> to vector<8x8xf32>
    %50 = arith.mulf %45, %49 : vector<8x8xf32>
    %51 = arith.truncf %50 : vector<8x8xf32> to vector<8x8xbf16>
    %cst_20 = arith.constant dense<0.000000e+00> : vector<8x16xf32>
    %52 = tpu.matmul %51, %35, %cst_20 {dimension_numbers = #tpu.dot_dimension_numbers<[1], [0], [0], [1], [0, 0, 1, 1], [], []>} : vector<8x8xbf16>, vector<8x16xbf16>, vector<8x16xf32> -> vector<8x16xf32>
    %53 = arith.truncf %52 : vector<8x16xf32> to vector<8x16xbf16>
    %c0_21 = arith.constant 0 : index
    %c16 = arith.constant 16 : index
    %54 = vector.load %arg16[%c0_21, %c16] : memref<8x32xbf16, #tpu.memory_space<vmem>>, vector<8x16xbf16>
    tpu.vector_store %arg16[%c0_21, %c16], %53 {strides = array<i32>} : memref<8x32xbf16, #tpu.memory_space<vmem>>, vector<8x16xbf16>,
    %c0_22 = arith.constant 0 : index
    %c0_23 = arith.constant 0 : index
    %55 = vector.load %arg16[%c0_22, %c0_23] : memref<8x32xbf16, #tpu.memory_space<vmem>>, vector<8x32xbf16>
    %c0_24 = arith.constant 0 : index
    %c0_25 = arith.constant 0 : index
    %56 = vector.load %arg5[%c0_24, %c0_25] : memref<32x32xbf16, #tpu.memory_space<vmem>>, vector<32x32xbf16>
    %cst_26 = arith.constant dense<0.000000e+00> : vector<8x32xf32>
    %57 = tpu.matmul %55, %56, %cst_26 {dimension_numbers = #tpu.dot_dimension_numbers<[1], [0], [0], [1], [0, 0, 1, 1], [], []>} : vector<8x32xbf16>, vector<32x32xbf16>, vector<8x32xf32> -> vector<8x32xf32>
    %c0_27 = arith.constant 0 : index
    %c0_28 = arith.constant 0 : index
    %58 = vector.load %arg6[%c0_27, %c0_28] : memref<1x32xf32, #tpu.memory_space<vmem>>, vector<1x32xf32>
    %59 = vector.broadcast %58 : vector<1x32xf32> to vector<8x32xf32>
    %60 = arith.addf %57, %59 : vector<8x32xf32>
    %61 = arith.addf %60, %2 : vector<8x32xf32>
    %c0_29 = arith.constant 0 : index
    %c0_30 = arith.constant 0 : index
    %62 = vector.load %arg7[%c0_29, %c0_30] : memref<1x32xf32, #tpu.memory_space<vmem>>, vector<1x32xf32>
    %c0_31 = arith.constant 0 : index
    %c0_32 = arith.constant 0 : index
    %63 = vector.load %arg8[%c0_31, %c0_32] : memref<1x32xf32, #tpu.memory_space<vmem>>, vector<1x32xf32>
    %cst_33 = arith.constant dense<0.000000e+00> : vector<8xf32>
    %64 = vector.multi_reduction <add>, %61, %cst_33 [1] : vector<8x32xf32> to vector<8xf32>
    %65 = vector.shape_cast %64 : vector<8xf32> to vector<8x1xf32>
    %cst_34 = arith.constant 3.200000e+01 : f32
    %66 = vector.broadcast %cst_34 : f32 to vector<8x1xf32>
    %67 = arith.divf %65, %66 : vector<8x1xf32>
    %68 = vector.broadcast %67 : vector<8x1xf32> to vector<8x32xf32>
    %69 = arith.subf %61, %68 : vector<8x32xf32>
    %70 = arith.mulf %69, %69 : vector<8x32xf32>
    %cst_35 = arith.constant dense<0.000000e+00> : vector<8xf32>
    %71 = vector.multi_reduction <add>, %70, %cst_35 [1] : vector<8x32xf32> to vector<8xf32>
    %72 = vector.shape_cast %71 : vector<8xf32> to vector<8x1xf32>
    %cst_36 = arith.constant 3.200000e+01 : f32
    %73 = vector.broadcast %cst_36 : f32 to vector<8x1xf32>
    %74 = arith.divf %72, %73 : vector<8x1xf32>
    %cst_37 = arith.constant 9.99999996E-13 : f32
    %75 = vector.broadcast %cst_37 : f32 to vector<8x1xf32>
    %76 = arith.addf %74, %75 : vector<8x1xf32>
    %77 = math.rsqrt %76 : vector<8x1xf32>
    %78 = vector.broadcast %67 : vector<8x1xf32> to vector<8x32xf32>
    %79 = arith.subf %61, %78 : vector<8x32xf32>
    %80 = vector.broadcast %77 : vector<8x1xf32> to vector<8x32xf32>
    %81 = arith.mulf %79, %80 : vector<8x32xf32>
    %82 = vector.broadcast %62 : vector<1x32xf32> to vector<8x32xf32>
    %83 = arith.mulf %81, %82 : vector<8x32xf32>
    %84 = vector.broadcast %63 : vector<1x32xf32> to vector<8x32xf32>
    %85 = arith.addf %83, %84 : vector<8x32xf32>
    %86 = arith.truncf %85 : vector<8x32xf32> to vector<8x32xbf16>
    %c0_38 = arith.constant 0 : index
    %c0_39 = arith.constant 0 : index
    %87 = vector.load %arg9[%c0_38, %c0_39] : memref<32x128xbf16, #tpu.memory_space<vmem>>, vector<32x128xbf16>
    %cst_40 = arith.constant dense<0.000000e+00> : vector<8x128xf32>
    %88 = tpu.matmul %86, %87, %cst_40 {dimension_numbers = #tpu.dot_dimension_numbers<[1], [0], [0], [1], [0, 0, 1, 1], [], []>} : vector<8x32xbf16>, vector<32x128xbf16>, vector<8x128xf32> -> vector<8x128xf32>
    %c0_41 = arith.constant 0 : index
    %c0_42 = arith.constant 0 : index
    %89 = vector.load %arg10[%c0_41, %c0_42] : memref<1x128xf32, #tpu.memory_space<vmem>>, vector<1x128xf32>
    %90 = vector.broadcast %89 : vector<1x128xf32> to vector<8x128xf32>
    %91 = arith.addf %88, %90 : vector<8x128xf32>
    %cst_43 = arith.constant 5.000000e-01 : f32
    %92 = vector.broadcast %cst_43 : f32 to vector<8x128xf32>
    %93 = arith.mulf %92, %91 : vector<8x128xf32>
    %cst_44 = arith.constant 4.471500e-02 : f32
    %94 = vector.broadcast %cst_44 : f32 to vector<8x128xf32>
    %95 = arith.mulf %94, %91 : vector<8x128xf32>
    %96 = arith.mulf %95, %91 : vector<8x128xf32>
    %97 = arith.mulf %96, %91 : vector<8x128xf32>
    %98 = arith.addf %91, %97 : vector<8x128xf32>
    %cst_45 = arith.constant 0.797884583 : f32
    %99 = vector.broadcast %cst_45 : f32 to vector<8x128xf32>
    %100 = arith.mulf %99, %98 : vector<8x128xf32>
    %101 = math.tanh %100 : vector<8x128xf32>
    %cst_46 = arith.constant 1.000000e+00 : f32
    %102 = vector.broadcast %cst_46 : f32 to vector<8x128xf32>
    %103 = arith.addf %102, %101 : vector<8x128xf32>
    %104 = arith.mulf %93, %103 : vector<8x128xf32>
    %105 = arith.truncf %104 : vector<8x128xf32> to vector<8x128xbf16>
    %c0_47 = arith.constant 0 : index
    %c0_48 = arith.constant 0 : index
    %106 = vector.load %arg11[%c0_47, %c0_48] : memref<128x32xbf16, #tpu.memory_space<vmem>>, vector<128x32xbf16>
    %cst_49 = arith.constant dense<0.000000e+00> : vector<8x32xf32>
    %107 = tpu.matmul %105, %106, %cst_49 {dimension_numbers = #tpu.dot_dimension_numbers<[1], [0], [0], [1], [0, 0, 1, 1], [], []>} : vector<8x128xbf16>, vector<128x32xbf16>, vector<8x32xf32> -> vector<8x32xf32>
    %c0_50 = arith.constant 0 : index
    %c0_51 = arith.constant 0 : index
    %108 = vector.load %arg12[%c0_50, %c0_51] : memref<1x32xf32, #tpu.memory_space<vmem>>, vector<1x32xf32>
    %109 = vector.broadcast %108 : vector<1x32xf32> to vector<8x32xf32>
    %110 = arith.addf %107, %109 : vector<8x32xf32>
    %111 = arith.addf %110, %85 : vector<8x32xf32>
    %c0_52 = arith.constant 0 : index
    %c0_53 = arith.constant 0 : index
    %112 = vector.load %arg13[%c0_52, %c0_53] : memref<1x32xf32, #tpu.memory_space<vmem>>, vector<1x32xf32>
    %c0_54 = arith.constant 0 : index
    %c0_55 = arith.constant 0 : index
    %113 = vector.load %arg14[%c0_54, %c0_55] : memref<1x32xf32, #tpu.memory_space<vmem>>, vector<1x32xf32>
    %cst_56 = arith.constant dense<0.000000e+00> : vector<8xf32>
    %114 = vector.multi_reduction <add>, %111, %cst_56 [1] : vector<8x32xf32> to vector<8xf32>
    %115 = vector.shape_cast %114 : vector<8xf32> to vector<8x1xf32>
    %cst_57 = arith.constant 3.200000e+01 : f32
    %116 = vector.broadcast %cst_57 : f32 to vector<8x1xf32>
    %117 = arith.divf %115, %116 : vector<8x1xf32>
    %118 = vector.broadcast %117 : vector<8x1xf32> to vector<8x32xf32>
    %119 = arith.subf %111, %118 : vector<8x32xf32>
    %120 = arith.mulf %119, %119 : vector<8x32xf32>
    %cst_58 = arith.constant dense<0.000000e+00> : vector<8xf32>
    %121 = vector.multi_reduction <add>, %120, %cst_58 [1] : vector<8x32xf32> to vector<8xf32>
    %122 = vector.shape_cast %121 : vector<8xf32> to vector<8x1xf32>
    %cst_59 = arith.constant 3.200000e+01 : f32
    %123 = vector.broadcast %cst_59 : f32 to vector<8x1xf32>
    %124 = arith.divf %122, %123 : vector<8x1xf32>
    %cst_60 = arith.constant 9.99999996E-13 : f32
    %125 = vector.broadcast %cst_60 : f32 to vector<8x1xf32>
    %126 = arith.addf %124, %125 : vector<8x1xf32>
    %127 = math.rsqrt %126 : vector<8x1xf32>
    %128 = vector.broadcast %117 : vector<8x1xf32> to vector<8x32xf32>
    %129 = arith.subf %111, %128 : vector<8x32xf32>
    %130 = vector.broadcast %127 : vector<8x1xf32> to vector<8x32xf32>
    %131 = arith.mulf %129, %130 : vector<8x32xf32>
    %132 = vector.broadcast %112 : vector<1x32xf32> to vector<8x32xf32>
    %133 = arith.mulf %131, %132 : vector<8x32xf32>
    %134 = vector.broadcast %113 : vector<1x32xf32> to vector<8x32xf32>
    %135 = arith.addf %133, %134 : vector<8x32xf32>
    %136 = arith.truncf %135 : vector<8x32xf32> to vector<8x32xbf16>
    %c0_61 = arith.constant 0 : index
    %c0_62 = arith.constant 0 : index
    %c0_63 = arith.constant 0 : index
    %137 = vector.load %arg15[%c0_61, %c0_62, %c0_63] : memref<1x8x32xbf16, #tpu.memory_space<vmem>>, vector<1x8x32xbf16>
    %138 = vector.shape_cast %137 : vector<1x8x32xbf16> to vector<8x32xbf16>
    %139 = vector.shape_cast %136 : vector<8x32xbf16> to vector<1x8x32xbf16>
    tpu.vector_store %arg15[%c0_61, %c0_62, %c0_63], %139 {strides = array<i32>} : memref<1x8x32xbf16, #tpu.memory_space<vmem>>, vector<1x8x32xbf16>,
    return
  }
  func.func @transform_0(%arg0: i32) -> (i32, i32, i32) {
    %c0_i32 = arith.constant 0 : i32
    %c0_i32_0 = arith.constant 0 : i32
    %c0_i32_1 = arith.constant 0 : i32
    return %arg0, %c0_i32, %c0_i32_0 : i32, i32, i32
  }
  func.func @transform_1(%arg0: i32) -> (i32, i32, i32) {
    %c0_i32 = arith.constant 0 : i32
    %c0_i32_0 = arith.constant 0 : i32
    %c0_i32_1 = arith.constant 0 : i32
    return %arg0, %c0_i32, %c0_i32_0 : i32, i32, i32
  }
  func.func @transform_2(%arg0: i32) -> (i32, i32) {
    %c0_i32 = arith.constant 0 : i32
    %c0_i32_0 = arith.constant 0 : i32
    %c0_i32_1 = arith.constant 0 : i32
    return %c0_i32, %c0_i32_0 : i32, i32
  }
  func.func @transform_3(%arg0: i32) -> (i32, i32) {
    %c0_i32 = arith.constant 0 : i32
    %c0_i32_0 = arith.constant 0 : i32
    %c0_i32_1 = arith.constant 0 : i32
    return %c0_i32, %c0_i32_0 : i32, i32
  }
  func.func @transform_4(%arg0: i32) -> (i32, i32) {
    %c0_i32 = arith.constant 0 : i32
    %c0_i32_0 = arith.constant 0 : i32
    %c0_i32_1 = arith.constant 0 : i32
    return %c0_i32, %c0_i32_0 : i32, i32
  }
  func.func @transform_5(%arg0: i32) -> (i32, i32) {
    %c0_i32 = arith.constant 0 : i32
    %c0_i32_0 = arith.constant 0 : i32
    %c0_i32_1 = arith.constant 0 : i32
    return %c0_i32, %c0_i32_0 : i32, i32
  }
  func.func @transform_6(%arg0: i32) -> (i32, i32) {
    %c0_i32 = arith.constant 0 : i32
    %c0_i32_0 = arith.constant 0 : i32
    %c0_i32_1 = arith.constant 0 : i32
    return %c0_i32, %c0_i32_0 : i32, i32
  }
  func.func @transform_7(%arg0: i32) -> (i32, i32) {
    %c0_i32 = arith.constant 0 : i32
    %c0_i32_0 = arith.constant 0 : i32
    %c0_i32_1 = arith.constant 0 : i32
    return %c0_i32, %c0_i32_0 : i32, i32
  }
  func.func @transform_8(%arg0: i32) -> (i32, i32) {
    %c0_i32 = arith.constant 0 : i32
    %c0_i32_0 = arith.constant 0 : i32
    %c0_i32_1 = arith.constant 0 : i32
    return %c0_i32, %c0_i32_0 : i32, i32
  }
  func.func @transform_9(%arg0: i32) -> (i32, i32) {
    %c0_i32 = arith.constant 0 : i32
    %c0_i32_0 = arith.constant 0 : i32
    %c0_i32_1 = arith.constant 0 : i32
    return %c0_i32, %c0_i32_0 : i32, i32
  }
  func.func @transform_10(%arg0: i32) -> (i32, i32) {
    %c0_i32 = arith.constant 0 : i32
    %c0_i32_0 = arith.constant 0 : i32
    %c0_i32_1 = arith.constant 0 : i32
    return %c0_i32, %c0_i32_0 : i32, i32
  }
  func.func @transform_11(%arg0: i32) -> (i32, i32) {
    %c0_i32 = arith.constant 0 : i32
    %c0_i32_0 = arith.constant 0 : i32
    %c0_i32_1 = arith.constant 0 : i32
    return %c0_i32, %c0_i32_0 : i32, i32
  }
  func.func @transform_12(%arg0: i32) -> (i32, i32) {
    %c0_i32 = arith.constant 0 : i32
    %c0_i32_0 = arith.constant 0 : i32
    %c0_i32_1 = arith.constant 0 : i32
    return %c0_i32, %c0_i32_0 : i32, i32
  }
  func.func @transform_13(%arg0: i32) -> (i32, i32) {
    %c0_i32 = arith.constant 0 : i32
    %c0_i32_0 = arith.constant 0 : i32
    %c0_i32_1 = arith.constant 0 : i32
    return %c0_i32, %c0_i32_0 : i32, i32
  }
  func.func @transform_14(%arg0: i32) -> (i32, i32, i32) {
    %c0_i32 = arith.constant 0 : i32
    %c0_i32_0 = arith.constant 0 : i32
    %c0_i32_1 = arith.constant 0 : i32
    return %arg0, %c0_i32, %c0_i32_0 : i32, i32, i32
  }
}

module attributes {stable_mosaic.version = 11 : i64} {
  func.func @_head_kernel(%arg0: i32, %arg1: memref<2x32xbf16, #tpu.memory_space<vmem>>, %arg2: memref<32x32xbf16, #tpu.memory_space<vmem>>, %arg3: memref<1x32xf32, #tpu.memory_space<vmem>>, %arg4: memref<32x512xbf16, #tpu.memory_space<vmem>>, %arg5: memref<1x512xf32, #tpu.memory_space<vmem>>, %arg6: memref<512x256xbf16, #tpu.memory_space<vmem>>, %arg7: memref<1x256xf32, #tpu.memory_space<vmem>>, %arg8: memref<256x128xbf16, #tpu.memory_space<vmem>>, %arg9: memref<1x128xf32, #tpu.memory_space<vmem>>, %arg10: memref<2x128xf32, #tpu.memory_space<vmem>>) attributes {dimension_semantics = [#tpu.dimension_semantics<arbitrary>], iteration_bounds = array<i64: 1>, scalar_prefetch = 0 : i64, scratch_operands = 0 : i64, tpu.core_type = #tpu.core_type<tc>, window_params = [{pipeline_mode = #tpu.pipeline_mode<synchronous>, transform_indices = @transform_0, window_bounds = array<i64: 2, 32>}, {pipeline_mode = #tpu.pipeline_mode<synchronous>, transform_indices = @transform_1, window_bounds = array<i64: 32, 32>}, {pipeline_mode = #tpu.pipeline_mode<synchronous>, transform_indices = @transform_2, window_bounds = array<i64: 1, 32>}, {pipeline_mode = #tpu.pipeline_mode<synchronous>, transform_indices = @transform_3, window_bounds = array<i64: 32, 512>}, {pipeline_mode = #tpu.pipeline_mode<synchronous>, transform_indices = @transform_4, window_bounds = array<i64: 1, 512>}, {pipeline_mode = #tpu.pipeline_mode<synchronous>, transform_indices = @transform_5, window_bounds = array<i64: 512, 256>}, {pipeline_mode = #tpu.pipeline_mode<synchronous>, transform_indices = @transform_6, window_bounds = array<i64: 1, 256>}, {pipeline_mode = #tpu.pipeline_mode<synchronous>, transform_indices = @transform_7, window_bounds = array<i64: 256, 128>}, {pipeline_mode = #tpu.pipeline_mode<synchronous>, transform_indices = @transform_8, window_bounds = array<i64: 1, 128>}, {pipeline_mode = #tpu.pipeline_mode<synchronous>, transform_indices = @transform_9, window_bounds = array<i64: 2, 128>}]} {
    %c0 = arith.constant 0 : index
    %c0_0 = arith.constant 0 : index
    %0 = vector.load %arg1[%c0, %c0_0] : memref<2x32xbf16, #tpu.memory_space<vmem>>, vector<2x32xbf16>
    %c0_1 = arith.constant 0 : index
    %c0_2 = arith.constant 0 : index
    %1 = vector.load %arg2[%c0_1, %c0_2] : memref<32x32xbf16, #tpu.memory_space<vmem>>, vector<32x32xbf16>
    %cst = arith.constant dense<0.000000e+00> : vector<2x32xf32>
    %2 = tpu.matmul %0, %1, %cst {dimension_numbers = #tpu.dot_dimension_numbers<[1], [0], [0], [1], [0, 0, 1, 1], [], []>} : vector<2x32xbf16>, vector<32x32xbf16>, vector<2x32xf32> -> vector<2x32xf32>
    %c0_3 = arith.constant 0 : index
    %c0_4 = arith.constant 0 : index
    %3 = vector.load %arg3[%c0_3, %c0_4] : memref<1x32xf32, #tpu.memory_space<vmem>>, vector<1x32xf32>
    %4 = vector.broadcast %3 : vector<1x32xf32> to vector<2x32xf32>
    %5 = arith.addf %2, %4 : vector<2x32xf32>
    %6 = math.tanh %5 : vector<2x32xf32>
    %7 = arith.truncf %6 : vector<2x32xf32> to vector<2x32xbf16>
    %c0_5 = arith.constant 0 : index
    %c0_6 = arith.constant 0 : index
    %8 = vector.load %arg4[%c0_5, %c0_6] : memref<32x512xbf16, #tpu.memory_space<vmem>>, vector<32x512xbf16>
    %cst_7 = arith.constant dense<0.000000e+00> : vector<2x512xf32>
    %9 = tpu.matmul %7, %8, %cst_7 {dimension_numbers = #tpu.dot_dimension_numbers<[1], [0], [0], [1], [0, 0, 1, 1], [], []>} : vector<2x32xbf16>, vector<32x512xbf16>, vector<2x512xf32> -> vector<2x512xf32>
    %c0_8 = arith.constant 0 : index
    %c0_9 = arith.constant 0 : index
    %10 = vector.load %arg5[%c0_8, %c0_9] : memref<1x512xf32, #tpu.memory_space<vmem>>, vector<1x512xf32>
    %11 = vector.broadcast %10 : vector<1x512xf32> to vector<2x512xf32>
    %12 = arith.addf %9, %11 : vector<2x512xf32>
    %cst_10 = arith.constant 0.000000e+00 : f32
    %13 = vector.broadcast %cst_10 : f32 to vector<2x512xf32>
    %14 = arith.maximumf %12, %13 : vector<2x512xf32>
    %15 = arith.truncf %14 : vector<2x512xf32> to vector<2x512xbf16>
    %c0_11 = arith.constant 0 : index
    %c0_12 = arith.constant 0 : index
    %16 = vector.load %arg6[%c0_11, %c0_12] : memref<512x256xbf16, #tpu.memory_space<vmem>>, vector<512x256xbf16>
    %cst_13 = arith.constant dense<0.000000e+00> : vector<2x256xf32>
    %17 = tpu.matmul %15, %16, %cst_13 {dimension_numbers = #tpu.dot_dimension_numbers<[1], [0], [0], [1], [0, 0, 1, 1], [], []>} : vector<2x512xbf16>, vector<512x256xbf16>, vector<2x256xf32> -> vector<2x256xf32>
    %c0_14 = arith.constant 0 : index
    %c0_15 = arith.constant 0 : index
    %18 = vector.load %arg7[%c0_14, %c0_15] : memref<1x256xf32, #tpu.memory_space<vmem>>, vector<1x256xf32>
    %19 = vector.broadcast %18 : vector<1x256xf32> to vector<2x256xf32>
    %20 = arith.addf %17, %19 : vector<2x256xf32>
    %cst_16 = arith.constant 0.000000e+00 : f32
    %21 = vector.broadcast %cst_16 : f32 to vector<2x256xf32>
    %22 = arith.maximumf %20, %21 : vector<2x256xf32>
    %23 = arith.truncf %22 : vector<2x256xf32> to vector<2x256xbf16>
    %c0_17 = arith.constant 0 : index
    %c0_18 = arith.constant 0 : index
    %24 = vector.load %arg8[%c0_17, %c0_18] : memref<256x128xbf16, #tpu.memory_space<vmem>>, vector<256x128xbf16>
    %cst_19 = arith.constant dense<0.000000e+00> : vector<2x128xf32>
    %25 = tpu.matmul %23, %24, %cst_19 {dimension_numbers = #tpu.dot_dimension_numbers<[1], [0], [0], [1], [0, 0, 1, 1], [], []>} : vector<2x256xbf16>, vector<256x128xbf16>, vector<2x128xf32> -> vector<2x128xf32>
    %c0_20 = arith.constant 0 : index
    %c0_21 = arith.constant 0 : index
    %26 = vector.load %arg9[%c0_20, %c0_21] : memref<1x128xf32, #tpu.memory_space<vmem>>, vector<1x128xf32>
    %27 = vector.broadcast %26 : vector<1x128xf32> to vector<2x128xf32>
    %28 = arith.addf %25, %27 : vector<2x128xf32>
    %c0_22 = arith.constant 0 : index
    %c0_23 = arith.constant 0 : index
    %29 = vector.load %arg10[%c0_22, %c0_23] : memref<2x128xf32, #tpu.memory_space<vmem>>, vector<2x128xf32>
    tpu.vector_store %arg10[%c0_22, %c0_23], %28 {strides = array<i32>} : memref<2x128xf32, #tpu.memory_space<vmem>>, vector<2x128xf32>,
    return
  }
  func.func @transform_0(%arg0: i32) -> (i32, i32) {
    %c0_i32 = arith.constant 0 : i32
    %c0_i32_0 = arith.constant 0 : i32
    %c0_i32_1 = arith.constant 0 : i32
    return %c0_i32, %c0_i32_0 : i32, i32
  }
  func.func @transform_1(%arg0: i32) -> (i32, i32) {
    %c0_i32 = arith.constant 0 : i32
    %c0_i32_0 = arith.constant 0 : i32
    %c0_i32_1 = arith.constant 0 : i32
    return %c0_i32, %c0_i32_0 : i32, i32
  }
  func.func @transform_2(%arg0: i32) -> (i32, i32) {
    %c0_i32 = arith.constant 0 : i32
    %c0_i32_0 = arith.constant 0 : i32
    %c0_i32_1 = arith.constant 0 : i32
    return %c0_i32, %c0_i32_0 : i32, i32
  }
  func.func @transform_3(%arg0: i32) -> (i32, i32) {
    %c0_i32 = arith.constant 0 : i32
    %c0_i32_0 = arith.constant 0 : i32
    %c0_i32_1 = arith.constant 0 : i32
    return %c0_i32, %c0_i32_0 : i32, i32
  }
  func.func @transform_4(%arg0: i32) -> (i32, i32) {
    %c0_i32 = arith.constant 0 : i32
    %c0_i32_0 = arith.constant 0 : i32
    %c0_i32_1 = arith.constant 0 : i32
    return %c0_i32, %c0_i32_0 : i32, i32
  }
  func.func @transform_5(%arg0: i32) -> (i32, i32) {
    %c0_i32 = arith.constant 0 : i32
    %c0_i32_0 = arith.constant 0 : i32
    %c0_i32_1 = arith.constant 0 : i32
    return %c0_i32, %c0_i32_0 : i32, i32
  }
  func.func @transform_6(%arg0: i32) -> (i32, i32) {
    %c0_i32 = arith.constant 0 : i32
    %c0_i32_0 = arith.constant 0 : i32
    %c0_i32_1 = arith.constant 0 : i32
    return %c0_i32, %c0_i32_0 : i32, i32
  }
  func.func @transform_7(%arg0: i32) -> (i32, i32) {
    %c0_i32 = arith.constant 0 : i32
    %c0_i32_0 = arith.constant 0 : i32
    %c0_i32_1 = arith.constant 0 : i32
    return %c0_i32, %c0_i32_0 : i32, i32
  }
  func.func @transform_8(%arg0: i32) -> (i32, i32) {
    %c0_i32 = arith.constant 0 : i32
    %c0_i32_0 = arith.constant 0 : i32
    %c0_i32_1 = arith.constant 0 : i32
    return %c0_i32, %c0_i32_0 : i32, i32
  }
  func.func @transform_9(%arg0: i32) -> (i32, i32) {
    %c0_i32 = arith.constant 0 : i32
    %c0_i32_0 = arith.constant 0 : i32
    %c0_i32_1 = arith.constant 0 : i32
    return %c0_i32, %c0_i32_0 : i32, i32
  }
}

</mosaic_0001>

<llo_original>
// kernel: bert_classifier_forward.4
$region0: #{bert_classifier_forward.4}
  #allocation0 [shape = 'u32[]', space=smem, size = 0x4, offset = 0x4, fixed_abs, tag = 'smem constant byte address 0x4 - core index']
  #allocation1 [shape = 'u32[144,128]{1,0:T(1,128)}', space=vmem, size = 0x12000, scoped, tag = 'internal scratch']
  %s0 = inlined_call_operand.vmem [shape: f32[16,32], index: 0, kind: input, shape index: {}]
  %s1 = inlined_call_operand.vmem [shape: f32[1,32], index: 1, kind: input, shape index: {}]
  %s2 = inlined_call_operand.vmem [shape: f32[1,32], index: 2, kind: input, shape index: {}]
  %s3 = inlined_call_operand.vmem [shape: bf16[16,32], index: 3, kind: output, shape index: {}]
  %s4 = sld [smem:[#allocation0]]
  $region22: #{bert_classifier_forward.4} parent=0
    _
  %s6 = ssub.s32 1, %s4
  %s7 = scalar_select 0, %s6, %s4
  // Predicated region
  $region2: #{bert_classifier_forward.4} parent=0 // pred_check
    _
  $region3: #{bert_classifier_forward.4} parent=0 // pred_check_branch
    %9 = sbr.rel (0) target = $region5
  $region4: #{bert_classifier_forward.4} parent=0 // pred_region
    _
  $region5: #{bert_classifier_forward.4} parent=0 // pred_fallthru
    _
  // Predicated region
  $region6: #{bert_classifier_forward.4} parent=0 // pred_check
    _
  $region7: #{bert_classifier_forward.4} parent=0 // pred_check_branch
    %11 = sbr.rel (0) target = $region9
  $region8: #{bert_classifier_forward.4} parent=0 // pred_region
    _
  $region9: #{bert_classifier_forward.4} parent=0 // pred_fallthru
    _
  // Predicated region
  $region10: #{bert_classifier_forward.4} parent=0 // pred_check
    _
  $region11: #{bert_classifier_forward.4} parent=0 // pred_check_branch
    %13 = sbr.rel (0) target = $region13
  $region12: #{bert_classifier_forward.4} parent=0 // pred_region
    _
  $region13: #{bert_classifier_forward.4} parent=0 // pred_fallthru
    _
  %v14 = vld [vmem:[%s0] sm:$0xff]
  %v15 = vld [vmem:[%s0 + $0x8] sm:$0xff]
  %v16 = vld [vmem:[%s1] sm:$0x1]
  %v17 = vld [vmem:[%s2] sm:$0x1]
  %vm18 = vcmask 261120
  %v19 = vsel %vm18, %v14, 0.0
  %20 = vadd.xlane.f32.xlu0 %v19
  %v21 = vpop.xlane.xlu0 %20
  %v22 = vsel %vm18, %v15, 0.0
  %23 = vadd.xlane.f32.xlu0 %v22
  %v24 = vpop.xlane.xlu0 %23
  %v25 = vrcp.pop 32.0
  %v26 = vmul.f32 %v21, %v25
  %v27 = vmul.f32 %v24, %v25
  %v28 = vsub.f32 %v14, %v26
  %v29 = vsub.f32 %v15, %v27
  %v30 = vmul.f32 %v28, %v28
  %v31 = vmul.f32 %v29, %v29
  %v32 = vsel %vm18, %v30, 0.0
  %33 = vadd.xlane.f32.xlu0 %v32
  %v34 = vpop.xlane.xlu0 %33
  %v35 = vsel %vm18, %v31, 0.0
  %36 = vadd.xlane.f32.xlu0 %v35
  %v37 = vpop.xlane.xlu0 %36
  %v38 = vmul.f32 %v34, %v25
  %v39 = vmul.f32 %v37, %v25
  %v40 = vadd.f32 %v38, 1e-12
  %v41 = vadd.f32 %v39, 1e-12
  %v42 = vrsqrt.pop %v40
  %v43 = vrsqrt.pop %v41
  %v44 = vmul.f32 %v28, %v42
  %v45 = vmul.f32 %v29, %v43
  %v47 = vlaneseq
  %v48 = vshrl.u32 %v47, 7
  %v49 = vsub.s32 0, %v48
  %v50 = vrot.slane %v16, %v49
  %v52 = vmul.f32 %v44, %v50
  %v53 = vmul.f32 %v45, %v50
  %v55 = vlaneseq
  %v56 = vshrl.u32 %v55, 7
  %v57 = vsub.s32 0, %v56
  %v58 = vrot.slane %v17, %v57
  %v60 = vadd.f32 %v52, %v58
  %v61 = vadd.f32 %v53, %v58
  %v62 = vpack.c.bf16 %v61, %v60
  %v64 = vunpack.c.l.b16 %v62
  %v65 = vunpack.c.h.b16 %v62
  %v66 = vpack.c.b16 %v64, %v64
  %v67 = vpack.c.b16 %v65, %v65
  %vm70 = vcmask 257024
  %71 = vst.msk [vmem:[%s3] sm:$0xf] %vm70, %v66
  %72 = vst.msk [vmem:[%s3 + $0x4] sm:$0xf] %vm70, %v67
  // Predicated region
  $region14: #{bert_classifier_forward.4} parent=0 // pred_check
    _
  $region15: #{bert_classifier_forward.4} parent=0 // pred_check_branch
    %74 = sbr.rel (0) target = $region17
  $region16: #{bert_classifier_forward.4} parent=0 // pred_region
    _
  $region17: #{bert_classifier_forward.4} parent=0 // pred_fallthru
    _
  // Predicated region
  $region18: #{bert_classifier_forward.4} parent=0 // pred_check
    _
  $region19: #{bert_classifier_forward.4} parent=0 // pred_check_branch
    %76 = sbr.rel (0) target = $region21
  $region20: #{bert_classifier_forward.4} parent=0 // pred_region
    _
  $region21: #{bert_classifier_forward.4} parent=0 // pred_fallthru
    _

// kernel: bert_classifier_forward.5
$region0: #{bert_classifier_forward.5}
  #allocation0 [shape = 'u32[]', space=smem, size = 0x4, offset = 0x4, fixed_abs, tag = 'smem constant byte address 0x4 - core index']
  #allocation1 [shape = 'u32[144,128]{1,0:T(1,128)}', space=vmem, size = 0x12000, scoped, tag = 'internal scratch']
  #allocation2 [shape = 'bf16[8,32]{1,0:T(8,128)(2,1)}', space=vmem, size = 0x800, scoped, tag = 'scratch operand']
  %s0 = inlined_call_operand.vmem [shape: bf16[2,8,32], index: 0, kind: input, shape index: {}]
  %s1 = inlined_call_operand.vmem [shape: f32[2,1,8], index: 1, kind: input, shape index: {}]
  %s2 = inlined_call_operand.vmem [shape: bf16[32,96], index: 2, kind: input, shape index: {}]
  %s3 = inlined_call_operand.vmem [shape: f32[1,96], index: 3, kind: input, shape index: {}]
  %s4 = inlined_call_operand.vmem [shape: bf16[32,32], index: 4, kind: input, shape index: {}]
  %s5 = inlined_call_operand.vmem [shape: f32[1,32], index: 5, kind: input, shape index: {}]
  %s6 = inlined_call_operand.vmem [shape: f32[1,32], index: 6, kind: input, shape index: {}]
  %s7 = inlined_call_operand.vmem [shape: f32[1,32], index: 7, kind: input, shape index: {}]
  %s8 = inlined_call_operand.vmem [shape: bf16[32,128], index: 8, kind: input, shape index: {}]
  %s9 = inlined_call_operand.vmem [shape: f32[1,128], index: 9, kind: input, shape index: {}]
  %s10 = inlined_call_operand.vmem [shape: bf16[128,32], index: 10, kind: input, shape index: {}]
  %s11 = inlined_call_operand.vmem [shape: f32[1,32], index: 11, kind: input, shape index: {}]
  %s12 = inlined_call_operand.vmem [shape: f32[1,32], index: 12, kind: input, shape index: {}]
  %s13 = inlined_call_operand.vmem [shape: f32[1,32], index: 13, kind: input, shape index: {}]
  %s14 = inlined_call_operand.vmem [shape: bf16[2,8,32], index: 14, kind: output, shape index: {}]
  %s15 = sld [smem:[#allocation0]]
  $region89: #{bert_classifier_forward.5} parent=0
    _
  %s17 = ssub.s32 1, %s15
  %s18 = scalar_select 0, %s17, %s15
  loop: start=0, step=1, limit=4
  $region2: #{bert_classifier_forward.5} parent=0 // loop_pre_header
    _
  $region3: #{bert_classifier_forward.5} parent=0 // loop_header
    %s20 = sphi 0, %s24
    %p21 = scmp.ge.s32.totalorder %s20, 4
    %s30 = sphi 0, %s32
    %s33 = sphi 0, %s30
    %s34 = sphi 0, %s33
    %s50 = sphi 0, %s34
    %s56 = sphi 0, %s58
    %s59 = sphi 0, %s56
    %s60 = sphi 0, %s59
    %s76 = sphi 0, %s60
    %s80 = sphi 0, %s80
    %s82 = sphi 0, %s80
    %s83 = sphi 0, %s82
    %s97 = sphi 0, %s83
    %s101 = sphi 0, %s101
    %s103 = sphi 0, %s101
    %s104 = sphi 0, %s103
    %s118 = sphi 0, %s104
    %s122 = sphi 0, %s122
    %s124 = sphi 0, %s122
    %s125 = sphi 0, %s124
    %s139 = sphi 0, %s125
    %s143 = sphi 0, %s143
    %s145 = sphi 0, %s143
    %s146 = sphi 0, %s145
    %s160 = sphi 0, %s146
    %s164 = sphi 0, %s164
    %s166 = sphi 0, %s164
    %s167 = sphi 0, %s166
    %s181 = sphi 0, %s167
    %s185 = sphi 0, %s185
    %s187 = sphi 0, %s185
    %s188 = sphi 0, %s187
    %s202 = sphi 0, %s188
    %s206 = sphi 0, %s206
    %s208 = sphi 0, %s206
    %s209 = sphi 0, %s208
    %s223 = sphi 0, %s209
    %s227 = sphi 0, %s227
    %s229 = sphi 0, %s227
    %s230 = sphi 0, %s229
    %s244 = sphi 0, %s230
    %s248 = sphi 0, %s248
    %s250 = sphi 0, %s248
    %s251 = sphi 0, %s250
    %s265 = sphi 0, %s251
    %s269 = sphi 0, %s269
    %s271 = sphi 0, %s269
    %s272 = sphi 0, %s271
    %s286 = sphi 0, %s272
    %s290 = sphi 0, %s290
    %s292 = sphi 0, %s290
    %s293 = sphi 0, %s292
    %s307 = sphi 0, %s293
    %s311 = sphi 0, %s311
    %s313 = sphi 0, %s311
    %s314 = sphi 0, %s313
    %s328 = sphi 0, %s314
    %s334 = sphi 0, %s336
    %s337 = sphi 0, %s334
    %s338 = sphi 0, %s337
    %s354 = sphi 0, %s338
  $region4: #{bert_classifier_forward.5} parent=0 // loop_header_branch
    %23 = sbr.rel (%p21) target = $region8
  $region5: #{bert_classifier_forward.5} parent=0 // loop_body
    %s25 = ssub.s32 %s20, 1
    %s26 = ssub.s32 %s20, 2
    %s27 = sadd.s32 %s20, 1
    %s28 = ssub.s32 %s20, %s27
    %p29 = scmp.eq.s32.totalorder %s28, 0
    %s31 = sadd.s32 %s30, 1
    %s32 = scalar_select %p29, %s30, %s31
    %p35 = pneg %p29
    %p36 = scmp.eq.s32.totalorder %s20, 1
    %p37 = por %p35, %p36
    %p38 = scmp.ne.s32.totalorder %s30, %s33
    %p39 = scmp.eq.s32.totalorder %s20, 0
    %p40 = por %p38, %p39
    %p41 = scmp.ne.s32.totalorder %s30, %s33
    %p42 = scmp.eq.s32.totalorder %s25, 1
    %p43 = por %p41, %p42
    %p44 = scmp.ne.s32.totalorder %s33, %s34
    %p45 = scmp.eq.s32.totalorder %s25, 0
    %p46 = por %p44, %p45
    %p47 = scmp.ne.s32.totalorder %s33, %s34
    %p48 = scmp.eq.s32.totalorder %s26, 1
    %p49 = por %p47, %p48
    %p51 = scmp.ne.s32.totalorder %s34, %s50
    %p52 = scmp.eq.s32.totalorder %s26, 0
    %p53 = por %p51, %p52
    %s54 = ssub.s32 %s20, %s27
    %p55 = scmp.eq.s32.totalorder %s54, 0
    %s57 = sadd.s32 %s56, 1
    %s58 = scalar_select %p55, %s56, %s57
    %p61 = pneg %p55
    %p62 = scmp.eq.s32.totalorder %s20, 1
    %p63 = por %p61, %p62
    %p64 = scmp.ne.s32.totalorder %s56, %s59
    %p65 = scmp.eq.s32.totalorder %s20, 0
    %p66 = por %p64, %p65
    %p67 = scmp.ne.s32.totalorder %s56, %s59
    %p68 = scmp.eq.s32.totalorder %s25, 1
    %p69 = por %p67, %p68
    %p70 = scmp.ne.s32.totalorder %s59, %s60
    %p71 = scmp.eq.s32.totalorder %s25, 0
    %p72 = por %p70, %p71
    %p73 = scmp.ne.s32.totalorder %s59, %s60
    %p74 = scmp.eq.s32.totalorder %s26, 1
    %p75 = por %p73, %p74
    %p77 = scmp.ne.s32.totalorder %s60, %s76
    %p78 = scmp.eq.s32.totalorder %s26, 0
    %p79 = por %p77, %p78
    %s81 = sadd.s32 %s80, 1
    %p84 = scmp.eq.s32.totalorder %s20, 1
    %p85 = scmp.ne.s32.totalorder %s80, %s82
    %p86 = scmp.eq.s32.totalorder %s20, 0
    %p87 = por %p85, %p86
    %p88 = scmp.ne.s32.totalorder %s80, %s82
    %p89 = scmp.eq.s32.totalorder %s25, 1
    %p90 = por %p88, %p89
    %p91 = scmp.ne.s32.totalorder %s82, %s83
    %p92 = scmp.eq.s32.totalorder %s25, 0
    %p93 = por %p91, %p92
    %p94 = scmp.ne.s32.totalorder %s82, %s83
    %p95 = scmp.eq.s32.totalorder %s26, 1
    %p96 = por %p94, %p95
    %p98 = scmp.ne.s32.totalorder %s83, %s97
    %p99 = scmp.eq.s32.totalorder %s26, 0
    %p100 = por %p98, %p99
    %s102 = sadd.s32 %s101, 1
    %p105 = scmp.eq.s32.totalorder %s20, 1
    %p106 = scmp.ne.s32.totalorder %s101, %s103
    %p107 = scmp.eq.s32.totalorder %s20, 0
    %p108 = por %p106, %p107
    %p109 = scmp.ne.s32.totalorder %s101, %s103
    %p110 = scmp.eq.s32.totalorder %s25, 1
    %p111 = por %p109, %p110
    %p112 = scmp.ne.s32.totalorder %s103, %s104
    %p113 = scmp.eq.s32.totalorder %s25, 0
    %p114 = por %p112, %p113
    %p115 = scmp.ne.s32.totalorder %s103, %s104
    %p116 = scmp.eq.s32.totalorder %s26, 1
    %p117 = por %p115, %p116
    %p119 = scmp.ne.s32.totalorder %s104, %s118
    %p120 = scmp.eq.s32.totalorder %s26, 0
    %p121 = por %p119, %p120
    %s123 = sadd.s32 %s122, 1
    %p126 = scmp.eq.s32.totalorder %s20, 1
    %p127 = scmp.ne.s32.totalorder %s122, %s124
    %p128 = scmp.eq.s32.totalorder %s20, 0
    %p129 = por %p127, %p128
    %p130 = scmp.ne.s32.totalorder %s122, %s124
    %p131 = scmp.eq.s32.totalorder %s25, 1
    %p132 = por %p130, %p131
    %p133 = scmp.ne.s32.totalorder %s124, %s125
    %p134 = scmp.eq.s32.totalorder %s25, 0
    %p135 = por %p133, %p134
    %p136 = scmp.ne.s32.totalorder %s124, %s125
    %p137 = scmp.eq.s32.totalorder %s26, 1
    %p138 = por %p136, %p137
    %p140 = scmp.ne.s32.totalorder %s125, %s139
    %p141 = scmp.eq.s32.totalorder %s26, 0
    %p142 = por %p140, %p141
    %s144 = sadd.s32 %s143, 1
    %p147 = scmp.eq.s32.totalorder %s20, 1
    %p148 = scmp.ne.s32.totalorder %s143, %s145
    %p149 = scmp.eq.s32.totalorder %s20, 0
    %p150 = por %p148, %p149
    %p151 = scmp.ne.s32.totalorder %s143, %s145
    %p152 = scmp.eq.s32.totalorder %s25, 1
    %p153 = por %p151, %p152
    %p154 = scmp.ne.s32.totalorder %s145, %s146
    %p155 = scmp.eq.s32.totalorder %s25, 0
    %p156 = por %p154, %p155
    %p157 = scmp.ne.s32.totalorder %s145, %s146
    %p158 = scmp.eq.s32.totalorder %s26, 1
    %p159 = por %p157, %p158
    %p161 = scmp.ne.s32.totalorder %s146, %s160
    %p162 = scmp.eq.s32.totalorder %s26, 0
    %p163 = por %p161, %p162
    %s165 = sadd.s32 %s164, 1
    %p168 = scmp.eq.s32.totalorder %s20, 1
    %p169 = scmp.ne.s32.totalorder %s164, %s166
    %p170 = scmp.eq.s32.totalorder %s20, 0
    %p171 = por %p169, %p170
    %p172 = scmp.ne.s32.totalorder %s164, %s166
    %p173 = scmp.eq.s32.totalorder %s25, 1
    %p174 = por %p172, %p173
    %p175 = scmp.ne.s32.totalorder %s166, %s167
    %p176 = scmp.eq.s32.totalorder %s25, 0
    %p177 = por %p175, %p176
    %p178 = scmp.ne.s32.totalorder %s166, %s167
    %p179 = scmp.eq.s32.totalorder %s26, 1
    %p180 = por %p178, %p179
    %p182 = scmp.ne.s32.totalorder %s167, %s181
    %p183 = scmp.eq.s32.totalorder %s26, 0
    %p184 = por %p182, %p183
    %s186 = sadd.s32 %s185, 1
    %p189 = scmp.eq.s32.totalorder %s20, 1
    %p190 = scmp.ne.s32.totalorder %s185, %s187
    %p191 = scmp.eq.s32.totalorder %s20, 0
    %p192 = por %p190, %p191
    %p193 = scmp.ne.s32.totalorder %s185, %s187
    %p194 = scmp.eq.s32.totalorder %s25, 1
    %p195 = por %p193, %p194
    %p196 = scmp.ne.s32.totalorder %s187, %s188
    %p197 = scmp.eq.s32.totalorder %s25, 0
    %p198 = por %p196, %p197
    %p199 = scmp.ne.s32.totalorder %s187, %s188
    %p200 = scmp.eq.s32.totalorder %s26, 1
    %p201 = por %p199, %p200
    %p203 = scmp.ne.s32.totalorder %s188, %s202
    %p204 = scmp.eq.s32.totalorder %s26, 0
    %p205 = por %p203, %p204
    %s207 = sadd.s32 %s206, 1
    %p210 = scmp.eq.s32.totalorder %s20, 1
    %p211 = scmp.ne.s32.totalorder %s206, %s208
    %p212 = scmp.eq.s32.totalorder %s20, 0
    %p213 = por %p211, %p212
    %p214 = scmp.ne.s32.totalorder %s206, %s208
    %p215 = scmp.eq.s32.totalorder %s25, 1
    %p216 = por %p214, %p215
    %p217 = scmp.ne.s32.totalorder %s208, %s209
    %p218 = scmp.eq.s32.totalorder %s25, 0
    %p219 = por %p217, %p218
    %p220 = scmp.ne.s32.totalorder %s208, %s209
    %p221 = scmp.eq.s32.totalorder %s26, 1
    %p222 = por %p220, %p221
    %p224 = scmp.ne.s32.totalorder %s209, %s223
    %p225 = scmp.eq.s32.totalorder %s26, 0
    %p226 = por %p224, %p225
    %s228 = sadd.s32 %s227, 1
    %p231 = scmp.eq.s32.totalorder %s20, 1
    %p232 = scmp.ne.s32.totalorder %s227, %s229
    %p233 = scmp.eq.s32.totalorder %s20, 0
    %p234 = por %p232, %p233
    %p235 = scmp.ne.s32.totalorder %s227, %s229
    %p236 = scmp.eq.s32.totalorder %s25, 1
    %p237 = por %p235, %p236
    %p238 = scmp.ne.s32.totalorder %s229, %s230
    %p239 = scmp.eq.s32.totalorder %s25, 0
    %p240 = por %p238, %p239
    %p241 = scmp.ne.s32.totalorder %s229, %s230
    %p242 = scmp.eq.s32.totalorder %s26, 1
    %p243 = por %p241, %p242
    %p245 = scmp.ne.s32.totalorder %s230, %s244
    %p246 = scmp.eq.s32.totalorder %s26, 0
    %p247 = por %p245, %p246
    %s249 = sadd.s32 %s248, 1
    %p252 = scmp.eq.s32.totalorder %s20, 1
    %p253 = scmp.ne.s32.totalorder %s248, %s250
    %p254 = scmp.eq.s32.totalorder %s20, 0
    %p255 = por %p253, %p254
    %p256 = scmp.ne.s32.totalorder %s248, %s250
    %p257 = scmp.eq.s32.totalorder %s25, 1
    %p258 = por %p256, %p257
    %p259 = scmp.ne.s32.totalorder %s250, %s251
    %p260 = scmp.eq.s32.totalorder %s25, 0
    %p261 = por %p259, %p260
    %p262 = scmp.ne.s32.totalorder %s250, %s251
    %p263 = scmp.eq.s32.totalorder %s26, 1
    %p264 = por %p262, %p263
    %p266 = scmp.ne.s32.totalorder %s251, %s265
    %p267 = scmp.eq.s32.totalorder %s26, 0
    %p268 = por %p266, %p267
    %s270 = sadd.s32 %s269, 1
    %p273 = scmp.eq.s32.totalorder %s20, 1
    %p274 = scmp.ne.s32.totalorder %s269, %s271
    %p275 = scmp.eq.s32.totalorder %s20, 0
    %p276 = por %p274, %p275
    %p277 = scmp.ne.s32.totalorder %s269, %s271
    %p278 = scmp.eq.s32.totalorder %s25, 1
    %p279 = por %p277, %p278
    %p280 = scmp.ne.s32.totalorder %s271, %s272
    %p281 = scmp.eq.s32.totalorder %s25, 0
    %p282 = por %p280, %p281
    %p283 = scmp.ne.s32.totalorder %s271, %s272
    %p284 = scmp.eq.s32.totalorder %s26, 1
    %p285 = por %p283, %p284
    %p287 = scmp.ne.s32.totalorder %s272, %s286
    %p288 = scmp.eq.s32.totalorder %s26, 0
    %p289 = por %p287, %p288
    %s291 = sadd.s32 %s290, 1
    %p294 = scmp.eq.s32.totalorder %s20, 1
    %p295 = scmp.ne.s32.totalorder %s290, %s292
    %p296 = scmp.eq.s32.totalorder %s20, 0
    %p297 = por %p295, %p296
    %p298 = scmp.ne.s32.totalorder %s290, %s292
    %p299 = scmp.eq.s32.totalorder %s25, 1
    %p300 = por %p298, %p299
    %p301 = scmp.ne.s32.totalorder %s292, %s293
    %p302 = scmp.eq.s32.totalorder %s25, 0
    %p303 = por %p301, %p302
    %p304 = scmp.ne.s32.totalorder %s292, %s293
    %p305 = scmp.eq.s32.totalorder %s26, 1
    %p306 = por %p304, %p305
    %p308 = scmp.ne.s32.totalorder %s293, %s307
    %p309 = scmp.eq.s32.totalorder %s26, 0
    %p310 = por %p308, %p309
    %s312 = sadd.s32 %s311, 1
    %p315 = scmp.eq.s32.totalorder %s20, 1
    %p316 = scmp.ne.s32.totalorder %s311, %s313
    %p317 = scmp.eq.s32.totalorder %s20, 0
    %p318 = por %p316, %p317
    %p319 = scmp.ne.s32.totalorder %s311, %s313
    %p320 = scmp.eq.s32.totalorder %s25, 1
    %p321 = por %p319, %p320
    %p322 = scmp.ne.s32.totalorder %s313, %s314
    %p323 = scmp.eq.s32.totalorder %s25, 0
    %p324 = por %p322, %p323
    %p325 = scmp.ne.s32.totalorder %s313, %s314
    %p326 = scmp.eq.s32.totalorder %s26, 1
    %p327 = por %p325, %p326
    %p329 = scmp.ne.s32.totalorder %s314, %s328
    %p330 = scmp.eq.s32.totalorder %s26, 0
    %p331 = por %p329, %p330
    %s332 = ssub.s32 %s20, %s27
    %p333 = scmp.eq.s32.totalorder %s332, 0
    %s335 = sadd.s32 %s334, 1
    %s336 = scalar_select %p333, %s334, %s335
    %p339 = pneg %p333
    %p340 = scmp.eq.s32.totalorder %s20, 1
    %p341 = por %p339, %p340
    %p342 = scmp.ne.s32.totalorder %s334, %s337
    %p343 = scmp.eq.s32.totalorder %s20, 0
    %p344 = por %p342, %p343
    %p345 = scmp.ne.s32.totalorder %s334, %s337
    %p346 = scmp.eq.s32.totalorder %s25, 1
    %p347 = por %p345, %p346
    %p348 = scmp.ne.s32.totalorder %s337, %s338
    %p349 = scmp.eq.s32.totalorder %s25, 0
    %p350 = por %p348, %p349
    %p351 = scmp.ne.s32.totalorder %s337, %s338
    %p352 = scmp.eq.s32.totalorder %s26, 1
    %p353 = por %p351, %p352
    %p355 = scmp.ne.s32.totalorder %s338, %s354
    %p356 = scmp.eq.s32.totalorder %s26, 0
    %p357 = por %p355, %p356
    %p358 = scmp.le.s32.totalorder 1, %s20
    %p359 = scmp.lt.s32.totalorder %s20, 3
    %p360 = pnand %p358, %p359
    %p361 = pneg %p360
    // Predicated region
    $region9: #{bert_classifier_forward.5} parent=5 // pred_check
      _
    $region10: #{bert_classifier_forward.5} parent=5 // pred_check_branch
      %363 = sbr.rel (%p360) target = $region12
    $region11: #{bert_classifier_forward.5} parent=5 // pred_region
      %s364 = ssub.s32 %s20, 1
      // Predicated region
      $region13: #{bert_classifier_forward.5} parent=11 // pred_check
        %p365 = pneg %p93
      $region14: #{bert_classifier_forward.5} parent=11 // pred_check_branch
        %367 = sbr.rel (%p365) target = $region16
      $region15: #{bert_classifier_forward.5} parent=11 // pred_region
        _
      $region16: #{bert_classifier_forward.5} parent=11 // pred_fallthru
        _
      // Predicated region
      $region17: #{bert_classifier_forward.5} parent=11 // pred_check
        %p368 = pneg %p114
      $region18: #{bert_classifier_forward.5} parent=11 // pred_check_branch
        %370 = sbr.rel (%p368) target = $region20
      $region19: #{bert_classifier_forward.5} parent=11 // pred_region
        _
      $region20: #{bert_classifier_forward.5} parent=11 // pred_fallthru
        _
      // Predicated region
      $region21: #{bert_classifier_forward.5} parent=11 // pred_check
        %p371 = pneg %p135
      $region22: #{bert_classifier_forward.5} parent=11 // pred_check_branch
        %373 = sbr.rel (%p371) target = $region24
      $region23: #{bert_classifier_forward.5} parent=11 // pred_region
        _
      $region24: #{bert_classifier_forward.5} parent=11 // pred_fallthru
        _
      // Predicated region
      $region25: #{bert_classifier_forward.5} parent=11 // pred_check
        %p374 = pneg %p156
      $region26: #{bert_classifier_forward.5} parent=11 // pred_check_branch
        %376 = sbr.rel (%p374) target = $region28
      $region27: #{bert_classifier_forward.5} parent=11 // pred_region
        _
      $region28: #{bert_classifier_forward.5} parent=11 // pred_fallthru
        _
      // Predicated region
      $region29: #{bert_classifier_forward.5} parent=11 // pred_check
        %p377 = pneg %p177
      $region30: #{bert_classifier_forward.5} parent=11 // pred_check_branch
        %379 = sbr.rel (%p377) target = $region32
      $region31: #{bert_classifier_forward.5} parent=11 // pred_region
        _
      $region32: #{bert_classifier_forward.5} parent=11 // pred_fallthru
        _
      // Predicated region
      $region33: #{bert_classifier_forward.5} parent=11 // pred_check
        %p380 = pneg %p198
      $region34: #{bert_classifier_forward.5} parent=11 // pred_check_branch
        %382 = sbr.rel (%p380) target = $region36
      $region35: #{bert_classifier_forward.5} parent=11 // pred_region
        _
      $region36: #{bert_classifier_forward.5} parent=11 // pred_fallthru
        _
      // Predicated region
      $region37: #{bert_classifier_forward.5} parent=11 // pred_check
        %p383 = pneg %p219
      $region38: #{bert_classifier_forward.5} parent=11 // pred_check_branch
        %385 = sbr.rel (%p383) target = $region40
      $region39: #{bert_classifier_forward.5} parent=11 // pred_region
        _
      $region40: #{bert_classifier_forward.5} parent=11 // pred_fallthru
        _
      // Predicated region
      $region41: #{bert_classifier_forward.5} parent=11 // pred_check
        %p386 = pneg %p240
      $region42: #{bert_classifier_forward.5} parent=11 // pred_check_branch
        %388 = sbr.rel (%p386) target = $region44
      $region43: #{bert_classifier_forward.5} parent=11 // pred_region
        _
      $region44: #{bert_classifier_forward.5} parent=11 // pred_fallthru
        _
      // Predicated region
      $region45: #{bert_classifier_forward.5} parent=11 // pred_check
        %p389 = pneg %p261
      $region46: #{bert_classifier_forward.5} parent=11 // pred_check_branch
        %391 = sbr.rel (%p389) target = $region48
      $region47: #{bert_classifier_forward.5} parent=11 // pred_region
        _
      $region48: #{bert_classifier_forward.5} parent=11 // pred_fallthru
        _
      // Predicated region
      $region49: #{bert_classifier_forward.5} parent=11 // pred_check
        %p392 = pneg %p282
      $region50: #{bert_classifier_forward.5} parent=11 // pred_check_branch
        %394 = sbr.rel (%p392) target = $region52
      $region51: #{bert_classifier_forward.5} parent=11 // pred_region
        _
      $region52: #{bert_classifier_forward.5} parent=11 // pred_fallthru
        _
      // Predicated region
      $region53: #{bert_classifier_forward.5} parent=11 // pred_check
        %p395 = pneg %p303
      $region54: #{bert_classifier_forward.5} parent=11 // pred_check_branch
        %397 = sbr.rel (%p395) target = $region56
      $region55: #{bert_classifier_forward.5} parent=11 // pred_region
        _
      $region56: #{bert_classifier_forward.5} parent=11 // pred_fallthru
        _
      // Predicated region
      $region57: #{bert_classifier_forward.5} parent=11 // pred_check
        %p398 = pneg %p324
      $region58: #{bert_classifier_forward.5} parent=11 // pred_check_branch
        %400 = sbr.rel (%p398) target = $region60
      $region59: #{bert_classifier_forward.5} parent=11 // pred_region
        _
      $region60: #{bert_classifier_forward.5} parent=11 // pred_fallthru
        _
    $region12: #{bert_classifier_forward.5} parent=5 // pred_fallthru
      _
    %p401 = scmp.lt.s32.totalorder %s20, 2
    // Predicated region
    $region61: #{bert_classifier_forward.5} parent=5 // pred_check
      %p402 = pneg %p401
    $region62: #{bert_classifier_forward.5} parent=5 // pred_check_branch
      %404 = sbr.rel (%p402) target = $region64
    $region63: #{bert_classifier_forward.5} parent=5 // pred_region
      // Predicated region
      $region65: #{bert_classifier_forward.5} parent=63 // pred_check
        %p405 = pneg %p40
      $region66: #{bert_classifier_forward.5} parent=63 // pred_check_branch
        %407 = sbr.rel (%p405) target = $region68
      $region67: #{bert_classifier_forward.5} parent=63 // pred_region
        %p408 = scmp.lt.s32.totalorder %s20, 1
        %s409 = scalar_select %p408, %s20, 1
        %s410 = smul.addr %s409, 4
        %s411 = scalar_lea.vmem %s0, %s410
      $region68: #{bert_classifier_forward.5} parent=63 // pred_fallthru
        _
      // Predicated region
      $region69: #{bert_classifier_forward.5} parent=63 // pred_check
        %p412 = pneg %p66
      $region70: #{bert_classifier_forward.5} parent=63 // pred_check_branch
        %414 = sbr.rel (%p412) target = $region72
      $region71: #{bert_classifier_forward.5} parent=63 // pred_region
        %p415 = scmp.lt.s32.totalorder %s20, 1
        %s416 = scalar_select %p415, %s20, 1
        %s417 = scalar_lea.vmem %s1, %s416
      $region72: #{bert_classifier_forward.5} parent=63 // pred_fallthru
        _
    $region64: #{bert_classifier_forward.5} parent=5 // pred_fallthru
      _
    %p418 = scmp.le.s32.totalorder 1, %s20
    %p419 = scmp.lt.s32.totalorder %s20, 3
    %p420 = pnand %p418, %p419
    %p421 = pneg %p420
    // Predicated region
    $region73: #{bert_classifier_forward.5} parent=5 // pred_check
      _
    $region74: #{bert_classifier_forward.5} parent=5 // pred_check_branch
      %423 = sbr.rel (%p420) target = $region76
    $region75: #{bert_classifier_forward.5} parent=5 // pred_region
      %s424 = ssub.s32 %s20, 1
      %p425 = scmp.lt.s32.totalorder %s25, 1
      %s426 = scalar_select %p425, %s25, 1
      %s427 = smul.addr %s426, 4
      %s428 = scalar_lea.vmem %s0, %s427
      %p429 = pneg %p46
      %p430 = pneg %p43
      %p431 = scmp.lt.s32.totalorder %s25, 1
      %s432 = scalar_select %p431, %s25, 1
      %s433 = scalar_lea.vmem %s1, %s432
      %p434 = pneg %p72
      %p435 = pneg %p69
      %p436 = pneg %p93
      %p437 = pneg %p90
      %p438 = pneg %p114
      %p439 = pneg %p111
      %p440 = pneg %p135
      %p441 = pneg %p132
      %p442 = pneg %p156
      %p443 = pneg %p153
      %p444 = pneg %p177
      %p445 = pneg %p174
      %p446 = pneg %p198
      %p447 = pneg %p195
      %p448 = pneg %p219
      %p449 = pneg %p216
      %p450 = pneg %p240
      %p451 = pneg %p237
      %p452 = pneg %p261
      %p453 = pneg %p258
      %p454 = pneg %p282
      %p455 = pneg %p279
      %p456 = pneg %p303
      %p457 = pneg %p300
      %p458 = pneg %p324
      %p459 = pneg %p321
      %p460 = pneg %p350
      %p461 = pneg %p347
      %p462 = scmp.lt.s32.totalorder %s25, 1
      %s463 = scalar_select %p462, %s25, 1
      %s464 = smul.addr %s463, 4
      %s465 = scalar_lea.vmem %s14, %s464
      %p466 = scmp.lt.s32.totalorder %s25, 1
      %s467 = scalar_select %p466, %s25, 1
      %s468 = smul.addr %s467, 4
      %s469 = scalar_lea.vmem %s0, %s468
      %p470 = scmp.lt.s32.totalorder %s25, 1
      %s471 = scalar_select %p470, %s25, 1
      %s472 = scalar_lea.vmem %s1, %s471
      %p473 = scmp.lt.s32.totalorder %s25, 1
      %s474 = scalar_select %p473, %s25, 1
      %s475 = smul.addr %s474, 4
      %s476 = scalar_lea.vmem %s14, %s475
      %v478 = vld [vmem:[%s469] sm:$0xf]
      %v479 = vunpack.c.l.bf16 %v478
      %v480 = vld [vmem:[%s472] sm:$0x1]
      %v481 = vld [vmem:[%s2] sm:$0xf]
      %v482 = vld [vmem:[%s2 + $0x4] sm:$0xf]
      %v483 = vld [vmem:[%s2 + $0x8] sm:$0xf]
      %v484 = vld [vmem:[%s2 + $0xc] sm:$0xf]
      %v485 = vld [vmem:[%s3] sm:$0x1]
      %v487 = vlaneseq
      %v488 = vshrl.u32 %v487, 7
      %v489 = vsub.s32 0, %v488
      %v490 = vrot.slane %v485, %v489
      %v496 = vunpack.c.l.b16 %v481
      %v497 = vunpack.c.l.b16 %v482
      %v498 = vunpack.c.l.b16 %v483
      %v499 = vunpack.c.l.b16 %v484
      %v500 = vpack.c.b16 %v497, %v496
      %v501 = vpack.c.b16 %v499, %v498
      %vm504 = vcmask 261120
      %v506 = vsel %vm504, %v478, 0
      %508 = vmatprep.subr.bf16.mxu0 0
      %509 = vmatpush1.bf16.msra.mxu0 %v500
      %510 = vmatprep.subr.bf16.mxu0 0
      %511 = vmatpush1.bf16.msra.mxu0 %v501
      %512 = vmatprep.subr.bf16.mxu0 0
      %513 = vmatpush1.bf16.msra.mxu0 0
      %514 = vmatprep.subr.bf16.mxu0 0
      %515 = vmatpush1.bf16.msra.mxu0 0
      %516 = vmatprep.subr.bf16.mxu0 0
      %517 = vmatpush1.bf16.msra.mxu0 0
      %518 = vmatprep.subr.bf16.mxu0 0
      %519 = vmatpush1.bf16.msra.mxu0 0
      %520 = vmatprep.subr.bf16.mxu0 0
      %521 = vmatpush1.bf16.msra.mxu0 0
      %522 = vmatprep.subr.bf16.mxu0 0
      %523 = vmatpush1.bf16.msra.mxu0 0
      %524 = vmatprep.subr.bf16.mxu0 0
      %525 = vmatpush1.bf16.msra.mxu0 0
      %526 = vmatprep.subr.bf16.mxu0 0
      %527 = vmatpush1.bf16.msra.mxu0 0
      %528 = vmatprep.subr.bf16.mxu0 0
      %529 = vmatpush1.bf16.msra.mxu0 0
      %530 = vmatprep.subr.bf16.mxu0 0
      %531 = vmatpush1.bf16.msra.mxu0 0
      %532 = vmatprep.subr.bf16.mxu0 0
      %533 = vmatpush1.bf16.msra.mxu0 0
      %534 = vmatprep.subr.bf16.mxu0 0
      %535 = vmatpush1.bf16.msra.mxu0 0
      %536 = vmatprep.subr.bf16.mxu0 0
      %537 = vmatpush1.bf16.msra.mxu0 0
      %538 = vmatprep.subr.bf16.mxu0 0
      %539 = vmatpush1.bf16.msra.mxu0 0
      %540 = vmatprep.mubr.bf16.mxu0 0
      %541 = vmatmul.mubr.bf16.gmra.mrb[0].mxu0 %v506
      %v542 = vpop.f32.mrb[0].mxu0
      %v543 = vadd.f32 %v490, %v542
      %v544 = vpop.f32.mrb[0].mxu0
      %v545 = vpop.f32.mrb[0].mxu0
      %v546 = vpop.f32.mrb[0].mxu0
      %547 = vdwg.mxu0
      %v548 = vpack.c.bf16 %v543, %v543
      %550 = vrot.lane.b32.xlu0 %v548, 96
      %v551 = vpop.permute.xlu0 %550
      %vm552 = vcmask 130048
      %v554 = vsel %vm552, %v548, 0
      %v557 = vsel %vm552, %v551, 0
      %559 = vmatprep.subr.bf16.mxu0 0
      %560 = vmatpush1.bf16.xpose.msra.mxu0 %v557
      %561 = vmatprep.subr.bf16.mxu0 0
      %562 = vmatpush1.bf16.xpose.msra.mxu0 0
      %563 = vmatprep.subr.bf16.mxu0 0
      %564 = vmatpush1.bf16.xpose.msra.mxu0 0
      %565 = vmatprep.subr.bf16.mxu0 0
      %566 = vmatpush1.bf16.xpose.msra.mxu0 0
      %567 = vmatprep.subr.bf16.mxu0 0
      %568 = vmatpush1.bf16.xpose.msra.mxu0 0
      %569 = vmatprep.subr.bf16.mxu0 0
      %570 = vmatpush1.bf16.xpose.msra.mxu0 0
      %571 = vmatprep.subr.bf16.mxu0 0
      %572 = vmatpush1.bf16.xpose.msra.mxu0 0
      %573 = vmatprep.subr.bf16.mxu0 0
      %574 = vmatpush1.bf16.xpose.msra.mxu0 0
      %575 = vmatprep.subr.bf16.mxu0 0
      %576 = vmatpush1.bf16.xpose.msra.mxu0 0
      %577 = vmatprep.subr.bf16.mxu0 0
      %578 = vmatpush1.bf16.xpose.msra.mxu0 0
      %579 = vmatprep.subr.bf16.mxu0 0
      %580 = vmatpush1.bf16.xpose.msra.mxu0 0
      %581 = vmatprep.subr.bf16.mxu0 0
      %582 = vmatpush1.bf16.xpose.msra.mxu0 0
      %583 = vmatprep.subr.bf16.mxu0 0
      %584 = vmatpush1.bf16.xpose.msra.mxu0 0
      %585 = vmatprep.subr.bf16.mxu0 0
      %586 = vmatpush1.bf16.xpose.msra.mxu0 0
      %587 = vmatprep.subr.bf16.mxu0 0
      %588 = vmatpush1.bf16.xpose.msra.mxu0 0
      %589 = vmatprep.subr.bf16.mxu0 0
      %590 = vmatpush1.bf16.xpose.msra.mxu0 0
      %591 = vmatprep.mubr.bf16.mxu0 0
      %592 = vmatmul.mubr.bf16.gmra.mrb[0].mxu0 %v554
      %v593 = vpop.f32.mrb[0].mxu0
      %v594 = vadd.f32 0.0, %v593
      %v595 = vpop.f32.mrb[0].mxu0
      %v596 = vpop.f32.mrb[0].mxu0
      %v597 = vpop.f32.mrb[0].mxu0
      %598 = vdwg.mxu0
      %v599 = vmul.f32 %v594, 0.25
      %v601 = vlaneseq
      %v602 = vshrl.u32 %v601, 7
      %v603 = vsub.s32 0, %v602
      %v604 = vrot.slane %v480, %v603
      %v606 = vadd.f32 %v599, %v604
      %vm607 = vcmask 64512
      %v608 = vsel %vm607, %v606, -inf
      %609 = vmax.xlane.f32.xlu0 %v608
      %v610 = vpop.xlane.xlu0 %609
      %v611 = vsub.f32 %v606, %v610
      %v612 = vmul.f32 %v611, 1.442695
      %v613 = vpow.pop %v612
      %v614 = vsel %vm607, %v613, 0.0
      %615 = vadd.xlane.f32.xlu0 %v614
      %v616 = vpop.xlane.xlu0 %615
      %v617 = vrcp.pop %v616
      %v618 = vmul.f32 %v613, %v617
      %v619 = vpack.c.bf16 %v618, %v618
      %620 = vrot.lane.b32.xlu0 %v548, 64
      %v621 = vpop.permute.xlu0 %620
      %v623 = vsel %vm607, %v619, 0
      %vm625 = vcmask 1043456
      %v627 = vsel %vm625, %v621, 0
      %629 = vmatprep.subr.bf16.mxu0 0
      %630 = vmatpush1.bf16.msra.mxu0 %v627
      %631 = vmatprep.subr.bf16.mxu0 0
      %632 = vmatpush1.bf16.msra.mxu0 0
      %633 = vmatprep.subr.bf16.mxu0 0
      %634 = vmatpush1.bf16.msra.mxu0 0
      %635 = vmatprep.subr.bf16.mxu0 0
      %636 = vmatpush1.bf16.msra.mxu0 0
      %637 = vmatprep.subr.bf16.mxu0 0
      %638 = vmatpush1.bf16.msra.mxu0 0
      %639 = vmatprep.subr.bf16.mxu0 0
      %640 = vmatpush1.bf16.msra.mxu0 0
      %641 = vmatprep.subr.bf16.mxu0 0
      %642 = vmatpush1.bf16.msra.mxu0 0
      %643 = vmatprep.subr.bf16.mxu0 0
      %644 = vmatpush1.bf16.msra.mxu0 0
      %645 = vmatprep.subr.bf16.mxu0 0
      %646 = vmatpush1.bf16.msra.mxu0 0
      %647 = vmatprep.subr.bf16.mxu0 0
      %648 = vmatpush1.bf16.msra.mxu0 0
      %649 = vmatprep.subr.bf16.mxu0 0
      %650 = vmatpush1.bf16.msra.mxu0 0
      %651 = vmatprep.subr.bf16.mxu0 0
      %652 = vmatpush1.bf16.msra.mxu0 0
      %653 = vmatprep.subr.bf16.mxu0 0
      %654 = vmatpush1.bf16.msra.mxu0 0
      %655 = vmatprep.subr.bf16.mxu0 0
      %656 = vmatpush1.bf16.msra.mxu0 0
      %657 = vmatprep.subr.bf16.mxu0 0
      %658 = vmatpush1.bf16.msra.mxu0 0
      %659 = vmatprep.subr.bf16.mxu0 0
      %660 = vmatpush1.bf16.msra.mxu0 0
      %661 = vmatprep.mubr.bf16.mxu0 0
      %662 = vmatmul.mubr.bf16.gmra.mrb[0].mxu0 %v623
      %v663 = vpop.f32.mrb[0].mxu0
      %v664 = vadd.f32 0.0, %v663
      %v665 = vpop.f32.mrb[0].mxu0
      %v666 = vpop.f32.mrb[0].mxu0
      %v667 = vpop.f32.mrb[0].mxu0
      %668 = vdwg.mxu0
      %v669 = vpack.c.bf16 %v664, %v664
      %vm670 = vcmask 125952
      %671 = vst.msk [vmem:[#allocation2] sm:$0xf] %vm670, %v669
      %672 = vrot.lane.b32.xlu0 %v548, 112
      %v673 = vpop.permute.xlu0 %672
      %674 = vrot.lane.b32.xlu0 %v548, 80
      %v675 = vpop.permute.xlu0 %674
      %v677 = vsel %vm552, %v673, 0
      %v680 = vsel %vm552, %v675, 0
      %682 = vmatprep.subr.bf16.mxu0 0
      %683 = vmatpush1.bf16.xpose.msra.mxu0 %v680
      %684 = vmatprep.subr.bf16.mxu0 0
      %685 = vmatpush1.bf16.xpose.msra.mxu0 0
      %686 = vmatprep.subr.bf16.mxu0 0
      %687 = vmatpush1.bf16.xpose.msra.mxu0 0
      %688 = vmatprep.subr.bf16.mxu0 0
      %689 = vmatpush1.bf16.xpose.msra.mxu0 0
      %690 = vmatprep.subr.bf16.mxu0 0
      %691 = vmatpush1.bf16.xpose.msra.mxu0 0
      %692 = vmatprep.subr.bf16.mxu0 0
      %693 = vmatpush1.bf16.xpose.msra.mxu0 0
      %694 = vmatprep.subr.bf16.mxu0 0
      %695 = vmatpush1.bf16.xpose.msra.mxu0 0
      %696 = vmatprep.subr.bf16.mxu0 0
      %697 = vmatpush1.bf16.xpose.msra.mxu0 0
      %698 = vmatprep.subr.bf16.mxu0 0
      %699 = vmatpush1.bf16.xpose.msra.mxu0 0
      %700 = vmatprep.subr.bf16.mxu0 0
      %701 = vmatpush1.bf16.xpose.msra.mxu0 0
      %702 = vmatprep.subr.bf16.mxu0 0
      %703 = vmatpush1.bf16.xpose.msra.mxu0 0
      %704 = vmatprep.subr.bf16.mxu0 0
      %705 = vmatpush1.bf16.xpose.msra.mxu0 0
      %706 = vmatprep.subr.bf16.mxu0 0
      %707 = vmatpush1.bf16.xpose.msra.mxu0 0
      %708 = vmatprep.subr.bf16.mxu0 0
      %709 = vmatpush1.bf16.xpose.msra.mxu0 0
      %710 = vmatprep.subr.bf16.mxu0 0
      %711 = vmatpush1.bf16.xpose.msra.mxu0 0
      %712 = vmatprep.subr.bf16.mxu0 0
      %713 = vmatpush1.bf16.xpose.msra.mxu0 0
      %714 = vmatprep.mubr.bf16.mxu0 0
      %715 = vmatmul.mubr.bf16.gmra.mrb[0].mxu0 %v677
      %v716 = vpop.f32.mrb[0].mxu0
      %v717 = vadd.f32 0.0, %v716
      %v718 = vpop.f32.mrb[0].mxu0
      %v719 = vpop.f32.mrb[0].mxu0
      %v720 = vpop.f32.mrb[0].mxu0
      %721 = vdwg.mxu0
      %v722 = vmul.f32 %v717, 0.25
      %v723 = vadd.f32 %v722, %v604
      %v724 = vsel %vm607, %v723, -inf
      %725 = vmax.xlane.f32.xlu0 %v724
      %v726 = vpop.xlane.xlu0 %725
      %v727 = vsub.f32 %v723, %v726
      %v728 = vmul.f32 %v727, 1.442695
      %v729 = vpow.pop %v728
      %v730 = vsel %vm607, %v729, 0.0
      %731 = vadd.xlane.f32.xlu0 %v730
      %v732 = vpop.xlane.xlu0 %731
      %v733 = vrcp.pop %v732
      %v734 = vmul.f32 %v729, %v733
      %v735 = vpack.c.bf16 %v734, %v734
      %736 = vrot.lane.b32.xlu0 %v548, 48
      %v737 = vpop.permute.xlu0 %736
      %v739 = vsel %vm607, %v735, 0
      %v742 = vsel %vm625, %v737, 0
      %744 = vmatprep.subr.bf16.mxu0 0
      %745 = vmatpush1.bf16.msra.mxu0 %v742
      %746 = vmatprep.subr.bf16.mxu0 0
      %747 = vmatpush1.bf16.msra.mxu0 0
      %748 = vmatprep.subr.bf16.mxu0 0
      %749 = vmatpush1.bf16.msra.mxu0 0
      %750 = vmatprep.subr.bf16.mxu0 0
      %751 = vmatpush1.bf16.msra.mxu0 0
      %752 = vmatprep.subr.bf16.mxu0 0
      %753 = vmatpush1.bf16.msra.mxu0 0
      %754 = vmatprep.subr.bf16.mxu0 0
      %755 = vmatpush1.bf16.msra.mxu0 0
      %756 = vmatprep.subr.bf16.mxu0 0
      %757 = vmatpush1.bf16.msra.mxu0 0
      %758 = vmatprep.subr.bf16.mxu0 0
      %759 = vmatpush1.bf16.msra.mxu0 0
      %760 = vmatprep.subr.bf16.mxu0 0
      %761 = vmatpush1.bf16.msra.mxu0 0
      %762 = vmatprep.subr.bf16.mxu0 0
      %763 = vmatpush1.bf16.msra.mxu0 0
      %764 = vmatprep.subr.bf16.mxu0 0
      %765 = vmatpush1.bf16.msra.mxu0 0
      %766 = vmatprep.subr.bf16.mxu0 0
      %767 = vmatpush1.bf16.msra.mxu0 0
      %768 = vmatprep.subr.bf16.mxu0 0
      %769 = vmatpush1.bf16.msra.mxu0 0
      %770 = vmatprep.subr.bf16.mxu0 0
      %771 = vmatpush1.bf16.msra.mxu0 0
      %772 = vmatprep.subr.bf16.mxu0 0
      %773 = vmatpush1.bf16.msra.mxu0 0
      %774 = vmatprep.subr.bf16.mxu0 0
      %775 = vmatpush1.bf16.msra.mxu0 0
      %776 = vmatprep.mubr.bf16.mxu0 0
      %777 = vmatmul.mubr.bf16.gmra.mrb[0].mxu0 %v739
      %v778 = vpop.f32.mrb[0].mxu0
      %v779 = vadd.f32 0.0, %v778
      %v780 = vpop.f32.mrb[0].mxu0
      %v781 = vpop.f32.mrb[0].mxu0
      %v782 = vpop.f32.mrb[0].mxu0
      %783 = vdwg.mxu0
      %v784 = vpack.c.bf16 %v779, %v779
      %v786 = vunpack.c.l.b16 %v784
      %v787 = vpack.c.b16 %v786, %v786
      %788 = vrot.lane.b32.xlu0 %v787, 16
      %v789 = vpop.permute.xlu0 %788
      %vm791 = vcmask 257152
      %792 = vst.msk [vmem:[#allocation2] sm:$0xf] %vm791, %v789
      %v793 = vld [vmem:[#allocation2] sm:$0xf]
      %v794 = vld [vmem:[%s4] sm:$0xf]
      %v795 = vld [vmem:[%s4 + $0x4] sm:$0xf]
      %v796 = vld [vmem:[%s4 + $0x8] sm:$0xf]
      %v797 = vld [vmem:[%s4 + $0xc] sm:$0xf]
      %v798 = vld [vmem:[%s5] sm:$0x1]
      %v800 = vlaneseq
      %v801 = vshrl.u32 %v800, 7
      %v802 = vsub.s32 0, %v801
      %v803 = vrot.slane %v798, %v802
      %v809 = vunpack.c.l.b16 %v794
      %v810 = vunpack.c.l.b16 %v795
      %v811 = vunpack.c.l.b16 %v796
      %v812 = vunpack.c.l.b16 %v797
      %v813 = vpack.c.b16 %v810, %v809
      %v814 = vpack.c.b16 %v812, %v811
      %v818 = vsel %vm504, %v793, 0
      %820 = vmatprep.subr.bf16.mxu0 0
      %821 = vmatpush1.bf16.msra.mxu0 %v813
      %822 = vmatprep.subr.bf16.mxu0 0
      %823 = vmatpush1.bf16.msra.mxu0 %v814
      %824 = vmatprep.subr.bf16.mxu0 0
      %825 = vmatpush1.bf16.msra.mxu0 0
      %826 = vmatprep.subr.bf16.mxu0 0
      %827 = vmatpush1.bf16.msra.mxu0 0
      %828 = vmatprep.subr.bf16.mxu0 0
      %829 = vmatpush1.bf16.msra.mxu0 0
      %830 = vmatprep.subr.bf16.mxu0 0
      %831 = vmatpush1.bf16.msra.mxu0 0
      %832 = vmatprep.subr.bf16.mxu0 0
      %833 = vmatpush1.bf16.msra.mxu0 0
      %834 = vmatprep.subr.bf16.mxu0 0
      %835 = vmatpush1.bf16.msra.mxu0 0
      %836 = vmatprep.subr.bf16.mxu0 0
      %837 = vmatpush1.bf16.msra.mxu0 0
      %838 = vmatprep.subr.bf16.mxu0 0
      %839 = vmatpush1.bf16.msra.mxu0 0
      %840 = vmatprep.subr.bf16.mxu0 0
      %841 = vmatpush1.bf16.msra.mxu0 0
      %842 = vmatprep.subr.bf16.mxu0 0
      %843 = vmatpush1.bf16.msra.mxu0 0
      %844 = vmatprep.subr.bf16.mxu0 0
      %845 = vmatpush1.bf16.msra.mxu0 0
      %846 = vmatprep.subr.bf16.mxu0 0
      %847 = vmatpush1.bf16.msra.mxu0 0
      %848 = vmatprep.subr.bf16.mxu0 0
      %849 = vmatpush1.bf16.msra.mxu0 0
      %850 = vmatprep.subr.bf16.mxu0 0
      %851 = vmatpush1.bf16.msra.mxu0 0
      %852 = vmatprep.mubr.bf16.mxu0 0
      %853 = vmatmul.mubr.bf16.gmra.mrb[0].mxu0 %v818
      %v854 = vpop.f32.mrb[0].mxu0
      %v855 = vadd.f32 %v803, %v854
      %v856 = vpop.f32.mrb[0].mxu0
      %v857 = vpop.f32.mrb[0].mxu0
      %v858 = vpop.f32.mrb[0].mxu0
      %859 = vdwg.mxu0
      %v860 = vadd.f32 %v855, %v479
      %v861 = vld [vmem:[%s6] sm:$0x1]
      %v862 = vld [vmem:[%s7] sm:$0x1]
      %v863 = vsel %vm504, %v860, 0.0
      %864 = vadd.xlane.f32.xlu0 %v863
      %v865 = vpop.xlane.xlu0 %864
      %v866 = vrcp.pop 32.0
      %v867 = vmul.f32 %v865, %v866
      %v868 = vsub.f32 %v860, %v867
      %v869 = vmul.f32 %v868, %v868
      %v870 = vsel %vm504, %v869, 0.0
      %871 = vadd.xlane.f32.xlu0 %v870
      %v872 = vpop.xlane.xlu0 %871
      %v873 = vmul.f32 %v872, %v866
      %v874 = vadd.f32 %v873, 1e-12
      %v875 = vrsqrt.pop %v874
      %v876 = vmul.f32 %v868, %v875
      %v878 = vlaneseq
      %v879 = vshrl.u32 %v878, 7
      %v880 = vsub.s32 0, %v879
      %v881 = vrot.slane %v861, %v880
      %v883 = vmul.f32 %v876, %v881
      %v885 = vlaneseq
      %v886 = vshrl.u32 %v885, 7
      %v887 = vsub.s32 0, %v886
      %v888 = vrot.slane %v862, %v887
      %v890 = vadd.f32 %v883, %v888
      %v891 = vpack.c.bf16 %v890, %v890
      %v892 = vld [vmem:[%s8] sm:$0xf]
      %v893 = vld [vmem:[%s8 + $0x4] sm:$0xf]
      %v894 = vld [vmem:[%s8 + $0x8] sm:$0xf]
      %v895 = vld [vmem:[%s8 + $0xc] sm:$0xf]
      %v896 = vld [vmem:[%s9] sm:$0x1]
      %v898 = vlaneseq
      %v899 = vshrl.u32 %v898, 7
      %v900 = vsub.s32 0, %v899
      %v901 = vrot.slane %v896, %v900
      %v907 = vunpack.c.l.b16 %v892
      %v908 = vunpack.c.l.b16 %v893
      %v909 = vunpack.c.l.b16 %v894
      %v910 = vunpack.c.l.b16 %v895
      %v911 = vpack.c.b16 %v908, %v907
      %v912 = vpack.c.b16 %v910, %v909
      %v916 = vsel %vm504, %v891, 0
      %918 = vmatprep.subr.bf16.mxu0 0
      %919 = vmatpush1.bf16.msra.mxu0 %v911
      %920 = vmatprep.subr.bf16.mxu0 0
      %921 = vmatpush1.bf16.msra.mxu0 %v912
      %922 = vmatprep.subr.bf16.mxu0 0
      %923 = vmatpush1.bf16.msra.mxu0 0
      %924 = vmatprep.subr.bf16.mxu0 0
      %925 = vmatpush1.bf16.msra.mxu0 0
      %926 = vmatprep.subr.bf16.mxu0 0
      %927 = vmatpush1.bf16.msra.mxu0 0
      %928 = vmatprep.subr.bf16.mxu0 0
      %929 = vmatpush1.bf16.msra.mxu0 0
      %930 = vmatprep.subr.bf16.mxu0 0
      %931 = vmatpush1.bf16.msra.mxu0 0
      %932 = vmatprep.subr.bf16.mxu0 0
      %933 = vmatpush1.bf16.msra.mxu0 0
      %934 = vmatprep.subr.bf16.mxu0 0
      %935 = vmatpush1.bf16.msra.mxu0 0
      %936 = vmatprep.subr.bf16.mxu0 0
      %937 = vmatpush1.bf16.msra.mxu0 0
      %938 = vmatprep.subr.bf16.mxu0 0
      %939 = vmatpush1.bf16.msra.mxu0 0
      %940 = vmatprep.subr.bf16.mxu0 0
      %941 = vmatpush1.bf16.msra.mxu0 0
      %942 = vmatprep.subr.bf16.mxu0 0
      %943 = vmatpush1.bf16.msra.mxu0 0
      %944 = vmatprep.subr.bf16.mxu0 0
      %945 = vmatpush1.bf16.msra.mxu0 0
      %946 = vmatprep.subr.bf16.mxu0 0
      %947 = vmatpush1.bf16.msra.mxu0 0
      %948 = vmatprep.subr.bf16.mxu0 0
      %949 = vmatpush1.bf16.msra.mxu0 0
      %950 = vmatprep.mubr.bf16.mxu0 0
      %951 = vmatmul.mubr.bf16.gmra.mrb[0].mxu0 %v916
      %v952 = vpop.f32.mrb[0].mxu0
      %v953 = vadd.f32 %v901, %v952
      %v954 = vpop.f32.mrb[0].mxu0
      %v955 = vpop.f32.mrb[0].mxu0
      %v956 = vpop.f32.mrb[0].mxu0
      %957 = vdwg.mxu0
      %v958 = vmul.f32 %v953, 0.5
      %v959 = vmul.f32 %v953, 0.044715
      %v960 = vmul.f32 %v959, %v953
      %v961 = vmul.f32 %v960, %v953
      %v962 = vadd.f32 %v953, %v961
      %v963 = vmul.f32 %v962, 0.7978846
      %v964 = vtanh.pop %v963
      %v965 = vadd.f32 %v964, 1.0
      %v966 = vmul.f32 %v958, %v965
      %v967 = vpack.c.bf16 %v966, %v966
      %v968 = vld [vmem:[%s10] sm:$0xf]
      %v969 = vld [vmem:[%s10 + $0x4] sm:$0xf]
      %v970 = vld [vmem:[%s10 + $0x8] sm:$0xf]
      %v971 = vld [vmem:[%s10 + $0xc] sm:$0xf]
      %v972 = vld [vmem:[%s10 + $0x10] sm:$0xf]
      %v973 = vld [vmem:[%s10 + $0x14] sm:$0xf]
      %v974 = vld [vmem:[%s10 + $0x18] sm:$0xf]
      %v975 = vld [vmem:[%s10 + $0x1c] sm:$0xf]
      %v976 = vld [vmem:[%s10 + $0x20] sm:$0xf]
      %v977 = vld [vmem:[%s10 + $0x24] sm:$0xf]
      %v978 = vld [vmem:[%s10 + $0x28] sm:$0xf]
      %v979 = vld [vmem:[%s10 + $0x2c] sm:$0xf]
      %v980 = vld [vmem:[%s10 + $0x30] sm:$0xf]
      %v981 = vld [vmem:[%s10 + $0x34] sm:$0xf]
      %v982 = vld [vmem:[%s10 + $0x38] sm:$0xf]
      %v983 = vld [vmem:[%s10 + $0x3c] sm:$0xf]
      %v984 = vld [vmem:[%s11] sm:$0x1]
      %v986 = vlaneseq
      %v987 = vshrl.u32 %v986, 7
      %v988 = vsub.s32 0, %v987
      %v989 = vrot.slane %v984, %v988
      %v1007 = vunpack.c.l.b16 %v968
      %v1008 = vunpack.c.l.b16 %v969
      %v1009 = vunpack.c.l.b16 %v970
      %v1010 = vunpack.c.l.b16 %v971
      %v1011 = vunpack.c.l.b16 %v972
      %v1012 = vunpack.c.l.b16 %v973
      %v1013 = vunpack.c.l.b16 %v974
      %v1014 = vunpack.c.l.b16 %v975
      %v1015 = vunpack.c.l.b16 %v976
      %v1016 = vunpack.c.l.b16 %v977
      %v1017 = vunpack.c.l.b16 %v978
      %v1018 = vunpack.c.l.b16 %v979
      %v1019 = vunpack.c.l.b16 %v980
      %v1020 = vunpack.c.l.b16 %v981
      %v1021 = vunpack.c.l.b16 %v982
      %v1022 = vunpack.c.l.b16 %v983
      %v1023 = vpack.c.b16 %v1008, %v1007
      %v1024 = vpack.c.b16 %v1010, %v1009
      %v1025 = vpack.c.b16 %v1012, %v1011
      %v1026 = vpack.c.b16 %v1014, %v1013
      %v1027 = vpack.c.b16 %v1016, %v1015
      %v1028 = vpack.c.b16 %v1018, %v1017
      %v1029 = vpack.c.b16 %v1020, %v1019
      %v1030 = vpack.c.b16 %v1022, %v1021
      %1039 = vmatprep.subr.bf16.mxu0 0
      %1040 = vmatpush1.bf16.msra.mxu0 %v1023
      %1041 = vmatprep.subr.bf16.mxu0 0
      %1042 = vmatpush1.bf16.msra.mxu0 %v1024
      %1043 = vmatprep.subr.bf16.mxu0 0
      %1044 = vmatpush1.bf16.msra.mxu0 %v1025
      %1045 = vmatprep.subr.bf16.mxu0 0
      %1046 = vmatpush1.bf16.msra.mxu0 %v1026
      %1047 = vmatprep.subr.bf16.mxu0 0
      %1048 = vmatpush1.bf16.msra.mxu0 %v1027
      %1049 = vmatprep.subr.bf16.mxu0 0
      %1050 = vmatpush1.bf16.msra.mxu0 %v1028
      %1051 = vmatprep.subr.bf16.mxu0 0
      %1052 = vmatpush1.bf16.msra.mxu0 %v1029
      %1053 = vmatprep.subr.bf16.mxu0 0
      %1054 = vmatpush1.bf16.msra.mxu0 %v1030
      %1055 = vmatprep.subr.bf16.mxu0 0
      %1056 = vmatpush1.bf16.msra.mxu0 0
      %1057 = vmatprep.subr.bf16.mxu0 0
      %1058 = vmatpush1.bf16.msra.mxu0 0
      %1059 = vmatprep.subr.bf16.mxu0 0
      %1060 = vmatpush1.bf16.msra.mxu0 0
      %1061 = vmatprep.subr.bf16.mxu0 0
      %1062 = vmatpush1.bf16.msra.mxu0 0
      %1063 = vmatprep.subr.bf16.mxu0 0
      %1064 = vmatpush1.bf16.msra.mxu0 0
      %1065 = vmatprep.subr.bf16.mxu0 0
      %1066 = vmatpush1.bf16.msra.mxu0 0
      %1067 = vmatprep.subr.bf16.mxu0 0
      %1068 = vmatpush1.bf16.msra.mxu0 0
      %1069 = vmatprep.subr.bf16.mxu0 0
      %1070 = vmatpush1.bf16.msra.mxu0 0
      %1071 = vmatprep.mubr.bf16.mxu0 0
      %1072 = vmatmul.mubr.bf16.gmra.mrb[0].mxu0 %v967
      %v1073 = vpop.f32.mrb[0].mxu0
      %v1074 = vadd.f32 %v989, %v1073
      %v1075 = vpop.f32.mrb[0].mxu0
      %v1076 = vpop.f32.mrb[0].mxu0
      %v1077 = vpop.f32.mrb[0].mxu0
      %1078 = vdwg.mxu0
      %v1079 = vadd.f32 %v1074, %v890
      %v1080 = vld [vmem:[%s12] sm:$0x1]
      %v1081 = vld [vmem:[%s13] sm:$0x1]
      %v1082 = vsel %vm504, %v1079, 0.0
      %1083 = vadd.xlane.f32.xlu0 %v1082
      %v1084 = vpop.xlane.xlu0 %1083
      %v1085 = vmul.f32 %v1084, %v866
      %v1086 = vsub.f32 %v1079, %v1085
      %v1087 = vmul.f32 %v1086, %v1086
      %v1088 = vsel %vm504, %v1087, 0.0
      %1089 = vadd.xlane.f32.xlu0 %v1088
      %v1090 = vpop.xlane.xlu0 %1089
      %v1091 = vmul.f32 %v1090, %v866
      %v1092 = vadd.f32 %v1091, 1e-12
      %v1093 = vrsqrt.pop %v1092
      %v1094 = vmul.f32 %v1086, %v1093
      %v1096 = vlaneseq
      %v1097 = vshrl.u32 %v1096, 7
      %v1098 = vsub.s32 0, %v1097
      %v1099 = vrot.slane %v1080, %v1098
      %v1101 = vmul.f32 %v1094, %v1099
      %v1103 = vlaneseq
      %v1104 = vshrl.u32 %v1103, 7
      %v1105 = vsub.s32 0, %v1104
      %v1106 = vrot.slane %v1081, %v1105
      %v1108 = vadd.f32 %v1101, %v1106
      %v1109 = vpack.c.bf16 %v1108, %v1108
      %vm1110 = vcmask 257024
      %1111 = vst.msk [vmem:[%s476] sm:$0xf] %vm1110, %v1109
      %p1112 = scmp.lt.s32.totalorder %s25, 1
      %s1113 = scalar_select %p1112, %s25, 1
      %s1114 = smul.addr %s1113, 4
      %s1115 = scalar_lea.vmem %s14, %s1114
      // Predicated region
      $region77: #{bert_classifier_forward.5} parent=75 // pred_check
        %p1116 = pneg %p347
      $region78: #{bert_classifier_forward.5} parent=75 // pred_check_branch
        %1118 = sbr.rel (%p1116) target = $region80
      $region79: #{bert_classifier_forward.5} parent=75 // pred_region
        _
      $region80: #{bert_classifier_forward.5} parent=75 // pred_fallthru
        _
    $region76: #{bert_classifier_forward.5} parent=5 // pred_fallthru
      _
    %p1119 = scmp.le.s32.totalorder 2, %s20
    // Predicated region
    $region81: #{bert_classifier_forward.5} parent=5 // pred_check
      %p1120 = pneg %p1119
    $region82: #{bert_classifier_forward.5} parent=5 // pred_check_branch
      %1122 = sbr.rel (%p1120) target = $region84
    $region83: #{bert_classifier_forward.5} parent=5 // pred_region
      %s1123 = ssub.s32 %s20, 2
      // Predicated region
      $region85: #{bert_classifier_forward.5} parent=83 // pred_check
        %p1124 = pneg %p353
      $region86: #{bert_classifier_forward.5} parent=83 // pred_check_branch
        %1126 = sbr.rel (%p1124) target = $region88
      $region87: #{bert_classifier_forward.5} parent=83 // pred_region
        %p1127 = scmp.lt.s32.totalorder %s26, 1
        %s1128 = scalar_select %p1127, %s26, 1
        %s1129 = smul.addr %s1128, 4
        %s1130 = scalar_lea.vmem %s14, %s1129
      $region88: #{bert_classifier_forward.5} parent=83 // pred_fallthru
        _
    $region84: #{bert_classifier_forward.5} parent=5 // pred_fallthru
      _
  $region6: #{bert_classifier_forward.5} parent=0 // loop_footer
    %s24 = sadd.s32 1, %s20
  $region7: #{bert_classifier_forward.5} parent=0 // loop_footer_branch
    %19 = sbr.rel target = $region3
  $region8: #{bert_classifier_forward.5} parent=0 // loop_exit
    _

// kernel: bert_classifier_forward.6
$region0: #{bert_classifier_forward.6}
  #allocation0 [shape = 'u32[]', space=smem, size = 0x4, offset = 0x4, fixed_abs, tag = 'smem constant byte address 0x4 - core index']
  #allocation1 [shape = 'u32[144,128]{1,0:T(1,128)}', space=vmem, size = 0x12000, scoped, tag = 'internal scratch']
  #allocation2 [shape = 'bf16[8,32]{1,0:T(8,128)(2,1)}', space=vmem, size = 0x800, scoped, tag = 'scratch operand']
  %s0 = inlined_call_operand.vmem [shape: bf16[2,8,32], index: 0, kind: input, shape index: {}]
  %s1 = inlined_call_operand.vmem [shape: f32[2,1,8], index: 1, kind: input, shape index: {}]
  %s2 = inlined_call_operand.hbm [shape: bf16[32,96], index: 2, kind: input, shape index: {}]
  %s3 = inlined_call_operand.vmem [shape: f32[1,96], index: 3, kind: input, shape index: {}]
  %s4 = inlined_call_operand.hbm [shape: bf16[32,32], index: 4, kind: input, shape index: {}]
  %s5 = inlined_call_operand.vmem [shape: f32[1,32], index: 5, kind: input, shape index: {}]
  %s6 = inlined_call_operand.vmem [shape: f32[1,32], index: 6, kind: input, shape index: {}]
  %s7 = inlined_call_operand.hbm [shape: f32[1,32], index: 7, kind: input, shape index: {}]
  %s8 = inlined_call_operand.vmem [shape: bf16[32,128], index: 8, kind: input, shape index: {}]
  %s9 = inlined_call_operand.hbm [shape: f32[1,128], index: 9, kind: input, shape index: {}]
  %s10 = inlined_call_operand.vmem [shape: bf16[128,32], index: 10, kind: input, shape index: {}]
  %s11 = inlined_call_operand.hbm [shape: f32[1,32], index: 11, kind: input, shape index: {}]
  %s12 = inlined_call_operand.hbm [shape: f32[1,32], index: 12, kind: input, shape index: {}]
  %s13 = inlined_call_operand.hbm [shape: f32[1,32], index: 13, kind: input, shape index: {}]
  %s14 = inlined_call_operand.vmem [shape: bf16[2,8,32], index: 14, kind: output, shape index: {}]
  %s15 = sld [smem:[#allocation0]]
  $region117: #{bert_classifier_forward.6} parent=0
    _
  %s17 = ssub.s32 1, %s15
  %s18 = scalar_select 0, %s17, %s15
  $region1: #{bert_classifier_forward.6} parent=0
    #allocation3 [shape = 'u8[8192]{0}', space=vmem, size = 0x2000, scoped, tag = 'input window, operand 2, single buffered']
    #allocation4 [shape = 's32[2]{0}', space=sflag, size = 0x8, scoped, tag = 'scoped memory for bert_classifier_forward.6']
    #allocation5 [shape = 'u8[8192]{0}', space=vmem, size = 0x2000, scoped, tag = 'input window, operand 4, single buffered']
    #allocation6 [shape = 's32[1]{0}', space=sflag, size = 0x4, scoped, tag = 'scoped memory for bert_classifier_forward.6']
    #allocation7 [shape = 'u8[512]{0}', space=vmem, size = 0x400, scoped, tag = 'input window, operand 7, single buffered']
    #allocation8 [shape = 'u8[512]{0}', space=vmem, size = 0x400, scoped, tag = 'input window, operand 9, single buffered']
    #allocation9 [shape = 's32[1]{0}', space=sflag, size = 0x4, scoped, tag = 'scoped memory for bert_classifier_forward.6']
    #allocation10 [shape = 'u8[512]{0}', space=vmem, size = 0x400, scoped, tag = 'input window, operand 11, single buffered']
    #allocation11 [shape = 'u8[512]{0}', space=vmem, size = 0x400, scoped, tag = 'input window, operand 12, single buffered']
    #allocation12 [shape = 's32[1]{0}', space=sflag, size = 0x4, scoped, tag = 'scoped memory for bert_classifier_forward.6']
    #allocation13 [shape = 'u8[512]{0}', space=vmem, size = 0x400, scoped, tag = 'input window, operand 13, single buffered']
    %19 = vsyncpa [#allocation4], 0
    %20 = vsyncpa [#allocation6], 0
    %21 = vsyncpa [#allocation9], 0
    %22 = vsyncpa [#allocation12], 0
    loop: start=0, step=1, limit=4
    $region2: #{bert_classifier_forward.6} parent=1 // loop_pre_header
      _
    $region3: #{bert_classifier_forward.6} parent=1 // loop_header
      %s24 = sphi 0, %s28
      %p25 = scmp.ge.s32.totalorder %s24, 4
      %s34 = sphi 0, %s36
      %s37 = sphi 0, %s34
      %s38 = sphi 0, %s37
      %s54 = sphi 0, %s38
      %s60 = sphi 0, %s62
      %s63 = sphi 0, %s60
      %s64 = sphi 0, %s63
      %s80 = sphi 0, %s64
      %s84 = sphi 0, %s84
      %s86 = sphi 0, %s84
      %s87 = sphi 0, %s86
      %s101 = sphi 0, %s87
      %s105 = sphi 0, %s105
      %s107 = sphi 0, %s105
      %s108 = sphi 0, %s107
      %s122 = sphi 0, %s108
      %s126 = sphi 0, %s126
      %s128 = sphi 0, %s126
      %s129 = sphi 0, %s128
      %s143 = sphi 0, %s129
      %s147 = sphi 0, %s147
      %s149 = sphi 0, %s147
      %s150 = sphi 0, %s149
      %s164 = sphi 0, %s150
      %s168 = sphi 0, %s168
      %s170 = sphi 0, %s168
      %s171 = sphi 0, %s170
      %s185 = sphi 0, %s171
      %s189 = sphi 0, %s189
      %s191 = sphi 0, %s189
      %s192 = sphi 0, %s191
      %s206 = sphi 0, %s192
      %s210 = sphi 0, %s210
      %s212 = sphi 0, %s210
      %s213 = sphi 0, %s212
      %s227 = sphi 0, %s213
      %s231 = sphi 0, %s231
      %s233 = sphi 0, %s231
      %s234 = sphi 0, %s233
      %s248 = sphi 0, %s234
      %s252 = sphi 0, %s252
      %s254 = sphi 0, %s252
      %s255 = sphi 0, %s254
      %s269 = sphi 0, %s255
      %s273 = sphi 0, %s273
      %s275 = sphi 0, %s273
      %s276 = sphi 0, %s275
      %s290 = sphi 0, %s276
      %s294 = sphi 0, %s294
      %s296 = sphi 0, %s294
      %s297 = sphi 0, %s296
      %s311 = sphi 0, %s297
      %s315 = sphi 0, %s315
      %s317 = sphi 0, %s315
      %s318 = sphi 0, %s317
      %s332 = sphi 0, %s318
      %s338 = sphi 0, %s340
      %s341 = sphi 0, %s338
      %s342 = sphi 0, %s341
      %s358 = sphi 0, %s342
    $region4: #{bert_classifier_forward.6} parent=1 // loop_header_branch
      %27 = sbr.rel (%p25) target = $region8
    $region5: #{bert_classifier_forward.6} parent=1 // loop_body
      %s29 = ssub.s32 %s24, 1
      %s30 = ssub.s32 %s24, 2
      %s31 = sadd.s32 %s24, 1
      %s32 = ssub.s32 %s24, %s31
      %p33 = scmp.eq.s32.totalorder %s32, 0
      %s35 = sadd.s32 %s34, 1
      %s36 = scalar_select %p33, %s34, %s35
      %p39 = pneg %p33
      %p40 = scmp.eq.s32.totalorder %s24, 1
      %p41 = por %p39, %p40
      %p42 = scmp.ne.s32.totalorder %s34, %s37
      %p43 = scmp.eq.s32.totalorder %s24, 0
      %p44 = por %p42, %p43
      %p45 = scmp.ne.s32.totalorder %s34, %s37
      %p46 = scmp.eq.s32.totalorder %s29, 1
      %p47 = por %p45, %p46
      %p48 = scmp.ne.s32.totalorder %s37, %s38
      %p49 = scmp.eq.s32.totalorder %s29, 0
      %p50 = por %p48, %p49
      %p51 = scmp.ne.s32.totalorder %s37, %s38
      %p52 = scmp.eq.s32.totalorder %s30, 1
      %p53 = por %p51, %p52
      %p55 = scmp.ne.s32.totalorder %s38, %s54
      %p56 = scmp.eq.s32.totalorder %s30, 0
      %p57 = por %p55, %p56
      %s58 = ssub.s32 %s24, %s31
      %p59 = scmp.eq.s32.totalorder %s58, 0
      %s61 = sadd.s32 %s60, 1
      %s62 = scalar_select %p59, %s60, %s61
      %p65 = pneg %p59
      %p66 = scmp.eq.s32.totalorder %s24, 1
      %p67 = por %p65, %p66
      %p68 = scmp.ne.s32.totalorder %s60, %s63
      %p69 = scmp.eq.s32.totalorder %s24, 0
      %p70 = por %p68, %p69
      %p71 = scmp.ne.s32.totalorder %s60, %s63
      %p72 = scmp.eq.s32.totalorder %s29, 1
      %p73 = por %p71, %p72
      %p74 = scmp.ne.s32.totalorder %s63, %s64
      %p75 = scmp.eq.s32.totalorder %s29, 0
      %p76 = por %p74, %p75
      %p77 = scmp.ne.s32.totalorder %s63, %s64
      %p78 = scmp.eq.s32.totalorder %s30, 1
      %p79 = por %p77, %p78
      %p81 = scmp.ne.s32.totalorder %s64, %s80
      %p82 = scmp.eq.s32.totalorder %s30, 0
      %p83 = por %p81, %p82
      %s85 = sadd.s32 %s84, 1
      %p88 = scmp.eq.s32.totalorder %s24, 1
      %p89 = scmp.ne.s32.totalorder %s84, %s86
      %p90 = scmp.eq.s32.totalorder %s24, 0
      %p91 = por %p89, %p90
      %p92 = scmp.ne.s32.totalorder %s84, %s86
      %p93 = scmp.eq.s32.totalorder %s29, 1
      %p94 = por %p92, %p93
      %p95 = scmp.ne.s32.totalorder %s86, %s87
      %p96 = scmp.eq.s32.totalorder %s29, 0
      %p97 = por %p95, %p96
      %p98 = scmp.ne.s32.totalorder %s86, %s87
      %p99 = scmp.eq.s32.totalorder %s30, 1
      %p100 = por %p98, %p99
      %p102 = scmp.ne.s32.totalorder %s87, %s101
      %p103 = scmp.eq.s32.totalorder %s30, 0
      %p104 = por %p102, %p103
      %s106 = sadd.s32 %s105, 1
      %p109 = scmp.eq.s32.totalorder %s24, 1
      %p110 = scmp.ne.s32.totalorder %s105, %s107
      %p111 = scmp.eq.s32.totalorder %s24, 0
      %p112 = por %p110, %p111
      %p113 = scmp.ne.s32.totalorder %s105, %s107
      %p114 = scmp.eq.s32.totalorder %s29, 1
      %p115 = por %p113, %p114
      %p116 = scmp.ne.s32.totalorder %s107, %s108
      %p117 = scmp.eq.s32.totalorder %s29, 0
      %p118 = por %p116, %p117
      %p119 = scmp.ne.s32.totalorder %s107, %s108
      %p120 = scmp.eq.s32.totalorder %s30, 1
      %p121 = por %p119, %p120
      %p123 = scmp.ne.s32.totalorder %s108, %s122
      %p124 = scmp.eq.s32.totalorder %s30, 0
      %p125 = por %p123, %p124
      %s127 = sadd.s32 %s126, 1
      %p130 = scmp.eq.s32.totalorder %s24, 1
      %p131 = scmp.ne.s32.totalorder %s126, %s128
      %p132 = scmp.eq.s32.totalorder %s24, 0
      %p133 = por %p131, %p132
      %p134 = scmp.ne.s32.totalorder %s126, %s128
      %p135 = scmp.eq.s32.totalorder %s29, 1
      %p136 = por %p134, %p135
      %p137 = scmp.ne.s32.totalorder %s128, %s129
      %p138 = scmp.eq.s32.totalorder %s29, 0
      %p139 = por %p137, %p138
      %p140 = scmp.ne.s32.totalorder %s128, %s129
      %p141 = scmp.eq.s32.totalorder %s30, 1
      %p142 = por %p140, %p141
      %p144 = scmp.ne.s32.totalorder %s129, %s143
      %p145 = scmp.eq.s32.totalorder %s30, 0
      %p146 = por %p144, %p145
      %s148 = sadd.s32 %s147, 1
      %p151 = scmp.eq.s32.totalorder %s24, 1
      %p152 = scmp.ne.s32.totalorder %s147, %s149
      %p153 = scmp.eq.s32.totalorder %s24, 0
      %p154 = por %p152, %p153
      %p155 = scmp.ne.s32.totalorder %s147, %s149
      %p156 = scmp.eq.s32.totalorder %s29, 1
      %p157 = por %p155, %p156
      %p158 = scmp.ne.s32.totalorder %s149, %s150
      %p159 = scmp.eq.s32.totalorder %s29, 0
      %p160 = por %p158, %p159
      %p161 = scmp.ne.s32.totalorder %s149, %s150
      %p162 = scmp.eq.s32.totalorder %s30, 1
      %p163 = por %p161, %p162
      %p165 = scmp.ne.s32.totalorder %s150, %s164
      %p166 = scmp.eq.s32.totalorder %s30, 0
      %p167 = por %p165, %p166
      %s169 = sadd.s32 %s168, 1
      %p172 = scmp.eq.s32.totalorder %s24, 1
      %p173 = scmp.ne.s32.totalorder %s168, %s170
      %p174 = scmp.eq.s32.totalorder %s24, 0
      %p175 = por %p173, %p174
      %p176 = scmp.ne.s32.totalorder %s168, %s170
      %p177 = scmp.eq.s32.totalorder %s29, 1
      %p178 = por %p176, %p177
      %p179 = scmp.ne.s32.totalorder %s170, %s171
      %p180 = scmp.eq.s32.totalorder %s29, 0
      %p181 = por %p179, %p180
      %p182 = scmp.ne.s32.totalorder %s170, %s171
      %p183 = scmp.eq.s32.totalorder %s30, 1
      %p184 = por %p182, %p183
      %p186 = scmp.ne.s32.totalorder %s171, %s185
      %p187 = scmp.eq.s32.totalorder %s30, 0
      %p188 = por %p186, %p187
      %s190 = sadd.s32 %s189, 1
      %p193 = scmp.eq.s32.totalorder %s24, 1
      %p194 = scmp.ne.s32.totalorder %s189, %s191
      %p195 = scmp.eq.s32.totalorder %s24, 0
      %p196 = por %p194, %p195
      %p197 = scmp.ne.s32.totalorder %s189, %s191
      %p198 = scmp.eq.s32.totalorder %s29, 1
      %p199 = por %p197, %p198
      %p200 = scmp.ne.s32.totalorder %s191, %s192
      %p201 = scmp.eq.s32.totalorder %s29, 0
      %p202 = por %p200, %p201
      %p203 = scmp.ne.s32.totalorder %s191, %s192
      %p204 = scmp.eq.s32.totalorder %s30, 1
      %p205 = por %p203, %p204
      %p207 = scmp.ne.s32.totalorder %s192, %s206
      %p208 = scmp.eq.s32.totalorder %s30, 0
      %p209 = por %p207, %p208
      %s211 = sadd.s32 %s210, 1
      %p214 = scmp.eq.s32.totalorder %s24, 1
      %p215 = scmp.ne.s32.totalorder %s210, %s212
      %p216 = scmp.eq.s32.totalorder %s24, 0
      %p217 = por %p215, %p216
      %p218 = scmp.ne.s32.totalorder %s210, %s212
      %p219 = scmp.eq.s32.totalorder %s29, 1
      %p220 = por %p218, %p219
      %p221 = scmp.ne.s32.totalorder %s212, %s213
      %p222 = scmp.eq.s32.totalorder %s29, 0
      %p223 = por %p221, %p222
      %p224 = scmp.ne.s32.totalorder %s212, %s213
      %p225 = scmp.eq.s32.totalorder %s30, 1
      %p226 = por %p224, %p225
      %p228 = scmp.ne.s32.totalorder %s213, %s227
      %p229 = scmp.eq.s32.totalorder %s30, 0
      %p230 = por %p228, %p229
      %s232 = sadd.s32 %s231, 1
      %p235 = scmp.eq.s32.totalorder %s24, 1
      %p236 = scmp.ne.s32.totalorder %s231, %s233
      %p237 = scmp.eq.s32.totalorder %s24, 0
      %p238 = por %p236, %p237
      %p239 = scmp.ne.s32.totalorder %s231, %s233
      %p240 = scmp.eq.s32.totalorder %s29, 1
      %p241 = por %p239, %p240
      %p242 = scmp.ne.s32.totalorder %s233, %s234
      %p243 = scmp.eq.s32.totalorder %s29, 0
      %p244 = por %p242, %p243
      %p245 = scmp.ne.s32.totalorder %s233, %s234
      %p246 = scmp.eq.s32.totalorder %s30, 1
      %p247 = por %p245, %p246
      %p249 = scmp.ne.s32.totalorder %s234, %s248
      %p250 = scmp.eq.s32.totalorder %s30, 0
      %p251 = por %p249, %p250
      %s253 = sadd.s32 %s252, 1
      %p256 = scmp.eq.s32.totalorder %s24, 1
      %p257 = scmp.ne.s32.totalorder %s252, %s254
      %p258 = scmp.eq.s32.totalorder %s24, 0
      %p259 = por %p257, %p258
      %p260 = scmp.ne.s32.totalorder %s252, %s254
      %p261 = scmp.eq.s32.totalorder %s29, 1
      %p262 = por %p260, %p261
      %p263 = scmp.ne.s32.totalorder %s254, %s255
      %p264 = scmp.eq.s32.totalorder %s29, 0
      %p265 = por %p263, %p264
      %p266 = scmp.ne.s32.totalorder %s254, %s255
      %p267 = scmp.eq.s32.totalorder %s30, 1
      %p268 = por %p266, %p267
      %p270 = scmp.ne.s32.totalorder %s255, %s269
      %p271 = scmp.eq.s32.totalorder %s30, 0
      %p272 = por %p270, %p271
      %s274 = sadd.s32 %s273, 1
      %p277 = scmp.eq.s32.totalorder %s24, 1
      %p278 = scmp.ne.s32.totalorder %s273, %s275
      %p279 = scmp.eq.s32.totalorder %s24, 0
      %p280 = por %p278, %p279
      %p281 = scmp.ne.s32.totalorder %s273, %s275
      %p282 = scmp.eq.s32.totalorder %s29, 1
      %p283 = por %p281, %p282
      %p284 = scmp.ne.s32.totalorder %s275, %s276
      %p285 = scmp.eq.s32.totalorder %s29, 0
      %p286 = por %p284, %p285
      %p287 = scmp.ne.s32.totalorder %s275, %s276
      %p288 = scmp.eq.s32.totalorder %s30, 1
      %p289 = por %p287, %p288
      %p291 = scmp.ne.s32.totalorder %s276, %s290
      %p292 = scmp.eq.s32.totalorder %s30, 0
      %p293 = por %p291, %p292
      %s295 = sadd.s32 %s294, 1
      %p298 = scmp.eq.s32.totalorder %s24, 1
      %p299 = scmp.ne.s32.totalorder %s294, %s296
      %p300 = scmp.eq.s32.totalorder %s24, 0
      %p301 = por %p299, %p300
      %p302 = scmp.ne.s32.totalorder %s294, %s296
      %p303 = scmp.eq.s32.totalorder %s29, 1
      %p304 = por %p302, %p303
      %p305 = scmp.ne.s32.totalorder %s296, %s297
      %p306 = scmp.eq.s32.totalorder %s29, 0
      %p307 = por %p305, %p306
      %p308 = scmp.ne.s32.totalorder %s296, %s297
      %p309 = scmp.eq.s32.totalorder %s30, 1
      %p310 = por %p308, %p309
      %p312 = scmp.ne.s32.totalorder %s297, %s311
      %p313 = scmp.eq.s32.totalorder %s30, 0
      %p314 = por %p312, %p313
      %s316 = sadd.s32 %s315, 1
      %p319 = scmp.eq.s32.totalorder %s24, 1
      %p320 = scmp.ne.s32.totalorder %s315, %s317
      %p321 = scmp.eq.s32.totalorder %s24, 0
      %p322 = por %p320, %p321
      %p323 = scmp.ne.s32.totalorder %s315, %s317
      %p324 = scmp.eq.s32.totalorder %s29, 1
      %p325 = por %p323, %p324
      %p326 = scmp.ne.s32.totalorder %s317, %s318
      %p327 = scmp.eq.s32.totalorder %s29, 0
      %p328 = por %p326, %p327
      %p329 = scmp.ne.s32.totalorder %s317, %s318
      %p330 = scmp.eq.s32.totalorder %s30, 1
      %p331 = por %p329, %p330
      %p333 = scmp.ne.s32.totalorder %s318, %s332
      %p334 = scmp.eq.s32.totalorder %s30, 0
      %p335 = por %p333, %p334
      %s336 = ssub.s32 %s24, %s31
      %p337 = scmp.eq.s32.totalorder %s336, 0
      %s339 = sadd.s32 %s338, 1
      %s340 = scalar_select %p337, %s338, %s339
      %p343 = pneg %p337
      %p344 = scmp.eq.s32.totalorder %s24, 1
      %p345 = por %p343, %p344
      %p346 = scmp.ne.s32.totalorder %s338, %s341
      %p347 = scmp.eq.s32.totalorder %s24, 0
      %p348 = por %p346, %p347
      %p349 = scmp.ne.s32.totalorder %s338, %s341
      %p350 = scmp.eq.s32.totalorder %s29, 1
      %p351 = por %p349, %p350
      %p352 = scmp.ne.s32.totalorder %s341, %s342
      %p353 = scmp.eq.s32.totalorder %s29, 0
      %p354 = por %p352, %p353
      %p355 = scmp.ne.s32.totalorder %s341, %s342
      %p356 = scmp.eq.s32.totalorder %s30, 1
      %p357 = por %p355, %p356
      %p359 = scmp.ne.s32.totalorder %s342, %s358
      %p360 = scmp.eq.s32.totalorder %s30, 0
      %p361 = por %p359, %p360
      %p362 = scmp.le.s32.totalorder 1, %s24
      %p363 = scmp.lt.s32.totalorder %s24, 3
      %p364 = pnand %p362, %p363
      %p365 = pneg %p364
      // Predicated region
      $region9: #{bert_classifier_forward.6} parent=5 // pred_check
        _
      $region10: #{bert_classifier_forward.6} parent=5 // pred_check_branch
        %367 = sbr.rel (%p364) target = $region12
      $region11: #{bert_classifier_forward.6} parent=5 // pred_region
        %s368 = ssub.s32 %s24, 1
        // Predicated region
        $region13: #{bert_classifier_forward.6} parent=11 // pred_check
          %p369 = pneg %p97
        $region14: #{bert_classifier_forward.6} parent=11 // pred_check_branch
          %371 = sbr.rel (%p369) target = $region16
        $region15: #{bert_classifier_forward.6} parent=11 // pred_region
          %s373 = ssub.s32 256, 256
          %374 = vsyncadd [#allocation4], %s373
          %s375 = sshll.u32 [#allocation3], 4
          %s376 = int_to_ptr.vmem [resolvable:$true] %s375
          %381 = dma.hbm_to_vmem [thread:$0]  %s2, 256, %s376, [#allocation4], 64, 64, 4
        $region16: #{bert_classifier_forward.6} parent=11 // pred_fallthru
          _
        // Predicated region
        $region17: #{bert_classifier_forward.6} parent=11 // pred_check
          %p382 = pneg %p118
        $region18: #{bert_classifier_forward.6} parent=11 // pred_check_branch
          %384 = sbr.rel (%p382) target = $region20
        $region19: #{bert_classifier_forward.6} parent=11 // pred_region
          _
        $region20: #{bert_classifier_forward.6} parent=11 // pred_fallthru
          _
        // Predicated region
        $region21: #{bert_classifier_forward.6} parent=11 // pred_check
          %p385 = pneg %p139
        $region22: #{bert_classifier_forward.6} parent=11 // pred_check_branch
          %387 = sbr.rel (%p385) target = $region24
        $region23: #{bert_classifier_forward.6} parent=11 // pred_region
          %s389 = ssub.s32 256, 256
          %390 = vsyncadd [#allocation6], %s389
          %s391 = sshll.u32 [#allocation5], 4
          %s392 = int_to_ptr.vmem [resolvable:$true] %s391
          %397 = dma.hbm_to_vmem [thread:$0]  %s4, 256, %s392, [#allocation6], 64, 64, 4
        $region24: #{bert_classifier_forward.6} parent=11 // pred_fallthru
          _
        // Predicated region
        $region25: #{bert_classifier_forward.6} parent=11 // pred_check
          %p398 = pneg %p160
        $region26: #{bert_classifier_forward.6} parent=11 // pred_check_branch
          %400 = sbr.rel (%p398) target = $region28
        $region27: #{bert_classifier_forward.6} parent=11 // pred_region
          _
        $region28: #{bert_classifier_forward.6} parent=11 // pred_fallthru
          _
        // Predicated region
        $region29: #{bert_classifier_forward.6} parent=11 // pred_check
          %p401 = pneg %p181
        $region30: #{bert_classifier_forward.6} parent=11 // pred_check_branch
          %403 = sbr.rel (%p401) target = $region32
        $region31: #{bert_classifier_forward.6} parent=11 // pred_region
          _
        $region32: #{bert_classifier_forward.6} parent=11 // pred_fallthru
          _
        // Predicated region
        $region33: #{bert_classifier_forward.6} parent=11 // pred_check
          %p404 = pneg %p202
        $region34: #{bert_classifier_forward.6} parent=11 // pred_check_branch
          %406 = sbr.rel (%p404) target = $region36
        $region35: #{bert_classifier_forward.6} parent=11 // pred_region
          %s408 = ssub.s32 16, 16
          %409 = vsyncadd [#allocation6], %s408
          %s411 = sshll.u32 [#allocation7], 4
          %s412 = int_to_ptr.vmem [resolvable:$true] %s411
          %414 = dma.hbm_to_vmem [thread:$0]  %s7, 16, %s412, [#allocation6]
        $region36: #{bert_classifier_forward.6} parent=11 // pred_fallthru
          _
        // Predicated region
        $region37: #{bert_classifier_forward.6} parent=11 // pred_check
          %p415 = pneg %p223
        $region38: #{bert_classifier_forward.6} parent=11 // pred_check_branch
          %417 = sbr.rel (%p415) target = $region40
        $region39: #{bert_classifier_forward.6} parent=11 // pred_region
          _
        $region40: #{bert_classifier_forward.6} parent=11 // pred_fallthru
          _
        // Predicated region
        $region41: #{bert_classifier_forward.6} parent=11 // pred_check
          %p418 = pneg %p244
        $region42: #{bert_classifier_forward.6} parent=11 // pred_check_branch
          %420 = sbr.rel (%p418) target = $region44
        $region43: #{bert_classifier_forward.6} parent=11 // pred_region
          %s422 = ssub.s32 16, 16
          %423 = vsyncadd [#allocation9], %s422
          %s425 = sshll.u32 [#allocation8], 4
          %s426 = int_to_ptr.vmem [resolvable:$true] %s425
          %428 = dma.hbm_to_vmem [thread:$0]  %s9, 16, %s426, [#allocation9]
        $region44: #{bert_classifier_forward.6} parent=11 // pred_fallthru
          _
        // Predicated region
        $region45: #{bert_classifier_forward.6} parent=11 // pred_check
          %p429 = pneg %p265
        $region46: #{bert_classifier_forward.6} parent=11 // pred_check_branch
          %431 = sbr.rel (%p429) target = $region48
        $region47: #{bert_classifier_forward.6} parent=11 // pred_region
          _
        $region48: #{bert_classifier_forward.6} parent=11 // pred_fallthru
          _
        // Predicated region
        $region49: #{bert_classifier_forward.6} parent=11 // pred_check
          %p432 = pneg %p286
        $region50: #{bert_classifier_forward.6} parent=11 // pred_check_branch
          %434 = sbr.rel (%p432) target = $region52
        $region51: #{bert_classifier_forward.6} parent=11 // pred_region
          %s436 = ssub.s32 16, 16
          %437 = vsyncadd [#allocation9], %s436
          %s439 = sshll.u32 [#allocation10], 4
          %s440 = int_to_ptr.vmem [resolvable:$true] %s439
          %442 = dma.hbm_to_vmem [thread:$0]  %s11, 16, %s440, [#allocation9]
        $region52: #{bert_classifier_forward.6} parent=11 // pred_fallthru
          _
        // Predicated region
        $region53: #{bert_classifier_forward.6} parent=11 // pred_check
          %p443 = pneg %p307
        $region54: #{bert_classifier_forward.6} parent=11 // pred_check_branch
          %445 = sbr.rel (%p443) target = $region56
        $region55: #{bert_classifier_forward.6} parent=11 // pred_region
          %s447 = ssub.s32 16, 16
          %448 = vsyncadd [#allocation12], %s447
          %s450 = sshll.u32 [#allocation11], 4
          %s451 = int_to_ptr.vmem [resolvable:$true] %s450
          %453 = dma.hbm_to_vmem [thread:$0]  %s12, 16, %s451, [#allocation12]
        $region56: #{bert_classifier_forward.6} parent=11 // pred_fallthru
          _
        // Predicated region
        $region57: #{bert_classifier_forward.6} parent=11 // pred_check
          %p454 = pneg %p328
        $region58: #{bert_classifier_forward.6} parent=11 // pred_check_branch
          %456 = sbr.rel (%p454) target = $region60
        $region59: #{bert_classifier_forward.6} parent=11 // pred_region
          %s458 = ssub.s32 16, 16
          %459 = vsyncadd [#allocation12], %s458
          %s461 = sshll.u32 [#allocation13], 4
          %s462 = int_to_ptr.vmem [resolvable:$true] %s461
          %464 = dma.hbm_to_vmem [thread:$0]  %s13, 16, %s462, [#allocation12]
        $region60: #{bert_classifier_forward.6} parent=11 // pred_fallthru
          _
      $region12: #{bert_classifier_forward.6} parent=5 // pred_fallthru
        _
      %p465 = scmp.lt.s32.totalorder %s24, 2
      // Predicated region
      $region61: #{bert_classifier_forward.6} parent=5 // pred_check
        %p466 = pneg %p465
      $region62: #{bert_classifier_forward.6} parent=5 // pred_check_branch
        %468 = sbr.rel (%p466) target = $region64
      $region63: #{bert_classifier_forward.6} parent=5 // pred_region
        // Predicated region
        $region65: #{bert_classifier_forward.6} parent=63 // pred_check
          %p469 = pneg %p44
        $region66: #{bert_classifier_forward.6} parent=63 // pred_check_branch
          %471 = sbr.rel (%p469) target = $region68
        $region67: #{bert_classifier_forward.6} parent=63 // pred_region
          %p472 = scmp.lt.s32.totalorder %s24, 1
          %s473 = scalar_select %p472, %s24, 1
          %s474 = smul.addr %s473, 4
          %s475 = scalar_lea.vmem %s0, %s474
        $region68: #{bert_classifier_forward.6} parent=63 // pred_fallthru
          _
        // Predicated region
        $region69: #{bert_classifier_forward.6} parent=63 // pred_check
          %p476 = pneg %p70
        $region70: #{bert_classifier_forward.6} parent=63 // pred_check_branch
          %478 = sbr.rel (%p476) target = $region72
        $region71: #{bert_classifier_forward.6} parent=63 // pred_region
          %p479 = scmp.lt.s32.totalorder %s24, 1
          %s480 = scalar_select %p479, %s24, 1
          %s481 = scalar_lea.vmem %s1, %s480
        $region72: #{bert_classifier_forward.6} parent=63 // pred_fallthru
          _
      $region64: #{bert_classifier_forward.6} parent=5 // pred_fallthru
        _
      %p482 = scmp.le.s32.totalorder 1, %s24
      %p483 = scmp.lt.s32.totalorder %s24, 3
      %p484 = pnand %p482, %p483
      %p485 = pneg %p484
      // Predicated region
      $region73: #{bert_classifier_forward.6} parent=5 // pred_check
        _
      $region74: #{bert_classifier_forward.6} parent=5 // pred_check_branch
        %487 = sbr.rel (%p484) target = $region76
      $region75: #{bert_classifier_forward.6} parent=5 // pred_region
        %s488 = ssub.s32 %s24, 1
        // Predicated region
        $region77: #{bert_classifier_forward.6} parent=75 // pred_check
          %p489 = pneg %p97
        $region78: #{bert_classifier_forward.6} parent=75 // pred_check_branch
          %491 = sbr.rel (%p489) target = $region80
        $region79: #{bert_classifier_forward.6} parent=75 // pred_region
          %492 = dma.done [#allocation4], 256
        $region80: #{bert_classifier_forward.6} parent=75 // pred_fallthru
          _
        // Predicated region
        $region81: #{bert_classifier_forward.6} parent=75 // pred_check
          %p493 = pneg %p139
        $region82: #{bert_classifier_forward.6} parent=75 // pred_check_branch
          %495 = sbr.rel (%p493) target = $region84
        $region83: #{bert_classifier_forward.6} parent=75 // pred_region
          %496 = dma.done [#allocation6], 256
        $region84: #{bert_classifier_forward.6} parent=75 // pred_fallthru
          _
        // Predicated region
        $region85: #{bert_classifier_forward.6} parent=75 // pred_check
          %p497 = pneg %p202
        $region86: #{bert_classifier_forward.6} parent=75 // pred_check_branch
          %499 = sbr.rel (%p497) target = $region88
        $region87: #{bert_classifier_forward.6} parent=75 // pred_region
          %500 = dma.done [#allocation6], 16
        $region88: #{bert_classifier_forward.6} parent=75 // pred_fallthru
          _
        // Predicated region
        $region89: #{bert_classifier_forward.6} parent=75 // pred_check
          %p501 = pneg %p244
        $region90: #{bert_classifier_forward.6} parent=75 // pred_check_branch
          %503 = sbr.rel (%p501) target = $region92
        $region91: #{bert_classifier_forward.6} parent=75 // pred_region
          %504 = dma.done [#allocation9], 16
        $region92: #{bert_classifier_forward.6} parent=75 // pred_fallthru
          _
        // Predicated region
        $region93: #{bert_classifier_forward.6} parent=75 // pred_check
          %p505 = pneg %p286
        $region94: #{bert_classifier_forward.6} parent=75 // pred_check_branch
          %507 = sbr.rel (%p505) target = $region96
        $region95: #{bert_classifier_forward.6} parent=75 // pred_region
          %508 = dma.done [#allocation9], 16
        $region96: #{bert_classifier_forward.6} parent=75 // pred_fallthru
          _
        // Predicated region
        $region97: #{bert_classifier_forward.6} parent=75 // pred_check
          %p509 = pneg %p307
        $region98: #{bert_classifier_forward.6} parent=75 // pred_check_branch
          %511 = sbr.rel (%p509) target = $region100
        $region99: #{bert_classifier_forward.6} parent=75 // pred_region
          %512 = dma.done [#allocation12], 16
        $region100: #{bert_classifier_forward.6} parent=75 // pred_fallthru
          _
        // Predicated region
        $region101: #{bert_classifier_forward.6} parent=75 // pred_check
          %p513 = pneg %p328
        $region102: #{bert_classifier_forward.6} parent=75 // pred_check_branch
          %515 = sbr.rel (%p513) target = $region104
        $region103: #{bert_classifier_forward.6} parent=75 // pred_region
          %516 = dma.done [#allocation12], 16
        $region104: #{bert_classifier_forward.6} parent=75 // pred_fallthru
          _
        %p517 = scmp.lt.s32.totalorder %s29, 1
        %s518 = scalar_select %p517, %s29, 1
        %s519 = smul.addr %s518, 4
        %s520 = scalar_lea.vmem %s0, %s519
        %p521 = pneg %p50
        %p522 = pneg %p47
        %p523 = scmp.lt.s32.totalorder %s29, 1
        %s524 = scalar_select %p523, %s29, 1
        %s525 = scalar_lea.vmem %s1, %s524
        %p526 = pneg %p76
        %p527 = pneg %p73
        %p528 = pneg %p97
        %p529 = pneg %p94
        %p530 = pneg %p118
        %p531 = pneg %p115
        %p532 = pneg %p139
        %p533 = pneg %p136
        %p534 = pneg %p160
        %p535 = pneg %p157
        %p536 = pneg %p181
        %p537 = pneg %p178
        %p538 = pneg %p202
        %p539 = pneg %p199
        %p540 = pneg %p223
        %p541 = pneg %p220
        %p542 = pneg %p244
        %p543 = pneg %p241
        %p544 = pneg %p265
        %p545 = pneg %p262
        %p546 = pneg %p286
        %p547 = pneg %p283
        %p548 = pneg %p307
        %p549 = pneg %p304
        %p550 = pneg %p328
        %p551 = pneg %p325
        %p552 = pneg %p354
        %p553 = pneg %p351
        %p554 = scmp.lt.s32.totalorder %s29, 1
        %s555 = scalar_select %p554, %s29, 1
        %s556 = smul.addr %s555, 4
        %s557 = scalar_lea.vmem %s14, %s556
        %p558 = scmp.lt.s32.totalorder %s29, 1
        %s559 = scalar_select %p558, %s29, 1
        %s560 = smul.addr %s559, 4
        %s561 = scalar_lea.vmem %s0, %s560
        %p562 = scmp.lt.s32.totalorder %s29, 1
        %s563 = scalar_select %p562, %s29, 1
        %s564 = scalar_lea.vmem %s1, %s563
        %p565 = scmp.lt.s32.totalorder %s29, 1
        %s566 = scalar_select %p565, %s29, 1
        %s567 = smul.addr %s566, 4
        %s568 = scalar_lea.vmem %s14, %s567
        %v570 = vld [vmem:[%s561] sm:$0xf]
        %v571 = vunpack.c.l.bf16 %v570
        %v572 = vld [vmem:[%s564] sm:$0x1]
        %v573 = vld [vmem:[#allocation3] sm:$0xf]
        %v574 = vld [vmem:[#allocation3 + $0x4] sm:$0xf]
        %v575 = vld [vmem:[#allocation3 + $0x8] sm:$0xf]
        %v576 = vld [vmem:[#allocation3 + $0xc] sm:$0xf]
        %v577 = vld [vmem:[%s3] sm:$0x1]
        %v579 = vlaneseq
        %v580 = vshrl.u32 %v579, 7
        %v581 = vsub.s32 0, %v580
        %v582 = vrot.slane %v577, %v581
        %v588 = vunpack.c.l.b16 %v573
        %v589 = vunpack.c.l.b16 %v574
        %v590 = vunpack.c.l.b16 %v575
        %v591 = vunpack.c.l.b16 %v576
        %v592 = vpack.c.b16 %v589, %v588
        %v593 = vpack.c.b16 %v591, %v590
        %vm596 = vcmask 261120
        %v598 = vsel %vm596, %v570, 0
        %600 = vmatprep.subr.bf16.mxu0 0
        %601 = vmatpush1.bf16.msra.mxu0 %v592
        %602 = vmatprep.subr.bf16.mxu0 0
        %603 = vmatpush1.bf16.msra.mxu0 %v593
        %604 = vmatprep.subr.bf16.mxu0 0
        %605 = vmatpush1.bf16.msra.mxu0 0
        %606 = vmatprep.subr.bf16.mxu0 0
        %607 = vmatpush1.bf16.msra.mxu0 0
        %608 = vmatprep.subr.bf16.mxu0 0
        %609 = vmatpush1.bf16.msra.mxu0 0
        %610 = vmatprep.subr.bf16.mxu0 0
        %611 = vmatpush1.bf16.msra.mxu0 0
        %612 = vmatprep.subr.bf16.mxu0 0
        %613 = vmatpush1.bf16.msra.mxu0 0
        %614 = vmatprep.subr.bf16.mxu0 0
        %615 = vmatpush1.bf16.msra.mxu0 0
        %616 = vmatprep.subr.bf16.mxu0 0
        %617 = vmatpush1.bf16.msra.mxu0 0
        %618 = vmatprep.subr.bf16.mxu0 0
        %619 = vmatpush1.bf16.msra.mxu0 0
        %620 = vmatprep.subr.bf16.mxu0 0
        %621 = vmatpush1.bf16.msra.mxu0 0
        %622 = vmatprep.subr.bf16.mxu0 0
        %623 = vmatpush1.bf16.msra.mxu0 0
        %624 = vmatprep.subr.bf16.mxu0 0
        %625 = vmatpush1.bf16.msra.mxu0 0
        %626 = vmatprep.subr.bf16.mxu0 0
        %627 = vmatpush1.bf16.msra.mxu0 0
        %628 = vmatprep.subr.bf16.mxu0 0
        %629 = vmatpush1.bf16.msra.mxu0 0
        %630 = vmatprep.subr.bf16.mxu0 0
        %631 = vmatpush1.bf16.msra.mxu0 0
        %632 = vmatprep.mubr.bf16.mxu0 0
        %633 = vmatmul.mubr.bf16.gmra.mrb[0].mxu0 %v598
        %v634 = vpop.f32.mrb[0].mxu0
        %v635 = vadd.f32 %v582, %v634
        %v636 = vpop.f32.mrb[0].mxu0
        %v637 = vpop.f32.mrb[0].mxu0
        %v638 = vpop.f32.mrb[0].mxu0
        %639 = vdwg.mxu0
        %v640 = vpack.c.bf16 %v635, %v635
        %642 = vrot.lane.b32.xlu0 %v640, 96
        %v643 = vpop.permute.xlu0 %642
        %vm644 = vcmask 130048
        %v646 = vsel %vm644, %v640, 0
        %v649 = vsel %vm644, %v643, 0
        %651 = vmatprep.subr.bf16.mxu0 0
        %652 = vmatpush1.bf16.xpose.msra.mxu0 %v649
        %653 = vmatprep.subr.bf16.mxu0 0
        %654 = vmatpush1.bf16.xpose.msra.mxu0 0
        %655 = vmatprep.subr.bf16.mxu0 0
        %656 = vmatpush1.bf16.xpose.msra.mxu0 0
        %657 = vmatprep.subr.bf16.mxu0 0
        %658 = vmatpush1.bf16.xpose.msra.mxu0 0
        %659 = vmatprep.subr.bf16.mxu0 0
        %660 = vmatpush1.bf16.xpose.msra.mxu0 0
        %661 = vmatprep.subr.bf16.mxu0 0
        %662 = vmatpush1.bf16.xpose.msra.mxu0 0
        %663 = vmatprep.subr.bf16.mxu0 0
        %664 = vmatpush1.bf16.xpose.msra.mxu0 0
        %665 = vmatprep.subr.bf16.mxu0 0
        %666 = vmatpush1.bf16.xpose.msra.mxu0 0
        %667 = vmatprep.subr.bf16.mxu0 0
        %668 = vmatpush1.bf16.xpose.msra.mxu0 0
        %669 = vmatprep.subr.bf16.mxu0 0
        %670 = vmatpush1.bf16.xpose.msra.mxu0 0
        %671 = vmatprep.subr.bf16.mxu0 0
        %672 = vmatpush1.bf16.xpose.msra.mxu0 0
        %673 = vmatprep.subr.bf16.mxu0 0
        %674 = vmatpush1.bf16.xpose.msra.mxu0 0
        %675 = vmatprep.subr.bf16.mxu0 0
        %676 = vmatpush1.bf16.xpose.msra.mxu0 0
        %677 = vmatprep.subr.bf16.mxu0 0
        %678 = vmatpush1.bf16.xpose.msra.mxu0 0
        %679 = vmatprep.subr.bf16.mxu0 0
        %680 = vmatpush1.bf16.xpose.msra.mxu0 0
        %681 = vmatprep.subr.bf16.mxu0 0
        %682 = vmatpush1.bf16.xpose.msra.mxu0 0
        %683 = vmatprep.mubr.bf16.mxu0 0
        %684 = vmatmul.mubr.bf16.gmra.mrb[0].mxu0 %v646
        %v685 = vpop.f32.mrb[0].mxu0
        %v686 = vadd.f32 0.0, %v685
        %v687 = vpop.f32.mrb[0].mxu0
        %v688 = vpop.f32.mrb[0].mxu0
        %v689 = vpop.f32.mrb[0].mxu0
        %690 = vdwg.mxu0
        %v691 = vmul.f32 %v686, 0.25
        %v693 = vlaneseq
        %v694 = vshrl.u32 %v693, 7
        %v695 = vsub.s32 0, %v694
        %v696 = vrot.slane %v572, %v695
        %v698 = vadd.f32 %v691, %v696
        %vm699 = vcmask 64512
        %v700 = vsel %vm699, %v698, -inf
        %701 = vmax.xlane.f32.xlu0 %v700
        %v702 = vpop.xlane.xlu0 %701
        %v703 = vsub.f32 %v698, %v702
        %v704 = vmul.f32 %v703, 1.442695
        %v705 = vpow.pop %v704
        %v706 = vsel %vm699, %v705, 0.0
        %707 = vadd.xlane.f32.xlu0 %v706
        %v708 = vpop.xlane.xlu0 %707
        %v709 = vrcp.pop %v708
        %v710 = vmul.f32 %v705, %v709
        %v711 = vpack.c.bf16 %v710, %v710
        %712 = vrot.lane.b32.xlu0 %v640, 64
        %v713 = vpop.permute.xlu0 %712
        %v715 = vsel %vm699, %v711, 0
        %vm717 = vcmask 1043456
        %v719 = vsel %vm717, %v713, 0
        %721 = vmatprep.subr.bf16.mxu0 0
        %722 = vmatpush1.bf16.msra.mxu0 %v719
        %723 = vmatprep.subr.bf16.mxu0 0
        %724 = vmatpush1.bf16.msra.mxu0 0
        %725 = vmatprep.subr.bf16.mxu0 0
        %726 = vmatpush1.bf16.msra.mxu0 0
        %727 = vmatprep.subr.bf16.mxu0 0
        %728 = vmatpush1.bf16.msra.mxu0 0
        %729 = vmatprep.subr.bf16.mxu0 0
        %730 = vmatpush1.bf16.msra.mxu0 0
        %731 = vmatprep.subr.bf16.mxu0 0
        %732 = vmatpush1.bf16.msra.mxu0 0
        %733 = vmatprep.subr.bf16.mxu0 0
        %734 = vmatpush1.bf16.msra.mxu0 0
        %735 = vmatprep.subr.bf16.mxu0 0
        %736 = vmatpush1.bf16.msra.mxu0 0
        %737 = vmatprep.subr.bf16.mxu0 0
        %738 = vmatpush1.bf16.msra.mxu0 0
        %739 = vmatprep.subr.bf16.mxu0 0
        %740 = vmatpush1.bf16.msra.mxu0 0
        %741 = vmatprep.subr.bf16.mxu0 0
        %742 = vmatpush1.bf16.msra.mxu0 0
        %743 = vmatprep.subr.bf16.mxu0 0
        %744 = vmatpush1.bf16.msra.mxu0 0
        %745 = vmatprep.subr.bf16.mxu0 0
        %746 = vmatpush1.bf16.msra.mxu0 0
        %747 = vmatprep.subr.bf16.mxu0 0
        %748 = vmatpush1.bf16.msra.mxu0 0
        %749 = vmatprep.subr.bf16.mxu0 0
        %750 = vmatpush1.bf16.msra.mxu0 0
        %751 = vmatprep.subr.bf16.mxu0 0
        %752 = vmatpush1.bf16.msra.mxu0 0
        %753 = vmatprep.mubr.bf16.mxu0 0
        %754 = vmatmul.mubr.bf16.gmra.mrb[0].mxu0 %v715
        %v755 = vpop.f32.mrb[0].mxu0
        %v756 = vadd.f32 0.0, %v755
        %v757 = vpop.f32.mrb[0].mxu0
        %v758 = vpop.f32.mrb[0].mxu0
        %v759 = vpop.f32.mrb[0].mxu0
        %760 = vdwg.mxu0
        %v761 = vpack.c.bf16 %v756, %v756
        %vm762 = vcmask 125952
        %763 = vst.msk [vmem:[#allocation2] sm:$0xf] %vm762, %v761
        %764 = vrot.lane.b32.xlu0 %v640, 112
        %v765 = vpop.permute.xlu0 %764
        %766 = vrot.lane.b32.xlu0 %v640, 80
        %v767 = vpop.permute.xlu0 %766
        %v769 = vsel %vm644, %v765, 0
        %v772 = vsel %vm644, %v767, 0
        %774 = vmatprep.subr.bf16.mxu0 0
        %775 = vmatpush1.bf16.xpose.msra.mxu0 %v772
        %776 = vmatprep.subr.bf16.mxu0 0
        %777 = vmatpush1.bf16.xpose.msra.mxu0 0
        %778 = vmatprep.subr.bf16.mxu0 0
        %779 = vmatpush1.bf16.xpose.msra.mxu0 0
        %780 = vmatprep.subr.bf16.mxu0 0
        %781 = vmatpush1.bf16.xpose.msra.mxu0 0
        %782 = vmatprep.subr.bf16.mxu0 0
        %783 = vmatpush1.bf16.xpose.msra.mxu0 0
        %784 = vmatprep.subr.bf16.mxu0 0
        %785 = vmatpush1.bf16.xpose.msra.mxu0 0
        %786 = vmatprep.subr.bf16.mxu0 0
        %787 = vmatpush1.bf16.xpose.msra.mxu0 0
        %788 = vmatprep.subr.bf16.mxu0 0
        %789 = vmatpush1.bf16.xpose.msra.mxu0 0
        %790 = vmatprep.subr.bf16.mxu0 0
        %791 = vmatpush1.bf16.xpose.msra.mxu0 0
        %792 = vmatprep.subr.bf16.mxu0 0
        %793 = vmatpush1.bf16.xpose.msra.mxu0 0
        %794 = vmatprep.subr.bf16.mxu0 0
        %795 = vmatpush1.bf16.xpose.msra.mxu0 0
        %796 = vmatprep.subr.bf16.mxu0 0
        %797 = vmatpush1.bf16.xpose.msra.mxu0 0
        %798 = vmatprep.subr.bf16.mxu0 0
        %799 = vmatpush1.bf16.xpose.msra.mxu0 0
        %800 = vmatprep.subr.bf16.mxu0 0
        %801 = vmatpush1.bf16.xpose.msra.mxu0 0
        %802 = vmatprep.subr.bf16.mxu0 0
        %803 = vmatpush1.bf16.xpose.msra.mxu0 0
        %804 = vmatprep.subr.bf16.mxu0 0
        %805 = vmatpush1.bf16.xpose.msra.mxu0 0
        %806 = vmatprep.mubr.bf16.mxu0 0
        %807 = vmatmul.mubr.bf16.gmra.mrb[0].mxu0 %v769
        %v808 = vpop.f32.mrb[0].mxu0
        %v809 = vadd.f32 0.0, %v808
        %v810 = vpop.f32.mrb[0].mxu0
        %v811 = vpop.f32.mrb[0].mxu0
        %v812 = vpop.f32.mrb[0].mxu0
        %813 = vdwg.mxu0
        %v814 = vmul.f32 %v809, 0.25
        %v815 = vadd.f32 %v814, %v696
        %v816 = vsel %vm699, %v815, -inf
        %817 = vmax.xlane.f32.xlu0 %v816
        %v818 = vpop.xlane.xlu0 %817
        %v819 = vsub.f32 %v815, %v818
        %v820 = vmul.f32 %v819, 1.442695
        %v821 = vpow.pop %v820
        %v822 = vsel %vm699, %v821, 0.0
        %823 = vadd.xlane.f32.xlu0 %v822
        %v824 = vpop.xlane.xlu0 %823
        %v825 = vrcp.pop %v824
        %v826 = vmul.f32 %v821, %v825
        %v827 = vpack.c.bf16 %v826, %v826
        %828 = vrot.lane.b32.xlu0 %v640, 48
        %v829 = vpop.permute.xlu0 %828
        %v831 = vsel %vm699, %v827, 0
        %v834 = vsel %vm717, %v829, 0
        %836 = vmatprep.subr.bf16.mxu0 0
        %837 = vmatpush1.bf16.msra.mxu0 %v834
        %838 = vmatprep.subr.bf16.mxu0 0
        %839 = vmatpush1.bf16.msra.mxu0 0
        %840 = vmatprep.subr.bf16.mxu0 0
        %841 = vmatpush1.bf16.msra.mxu0 0
        %842 = vmatprep.subr.bf16.mxu0 0
        %843 = vmatpush1.bf16.msra.mxu0 0
        %844 = vmatprep.subr.bf16.mxu0 0
        %845 = vmatpush1.bf16.msra.mxu0 0
        %846 = vmatprep.subr.bf16.mxu0 0
        %847 = vmatpush1.bf16.msra.mxu0 0
        %848 = vmatprep.subr.bf16.mxu0 0
        %849 = vmatpush1.bf16.msra.mxu0 0
        %850 = vmatprep.subr.bf16.mxu0 0
        %851 = vmatpush1.bf16.msra.mxu0 0
        %852 = vmatprep.subr.bf16.mxu0 0
        %853 = vmatpush1.bf16.msra.mxu0 0
        %854 = vmatprep.subr.bf16.mxu0 0
        %855 = vmatpush1.bf16.msra.mxu0 0
        %856 = vmatprep.subr.bf16.mxu0 0
        %857 = vmatpush1.bf16.msra.mxu0 0
        %858 = vmatprep.subr.bf16.mxu0 0
        %859 = vmatpush1.bf16.msra.mxu0 0
        %860 = vmatprep.subr.bf16.mxu0 0
        %861 = vmatpush1.bf16.msra.mxu0 0
        %862 = vmatprep.subr.bf16.mxu0 0
        %863 = vmatpush1.bf16.msra.mxu0 0
        %864 = vmatprep.subr.bf16.mxu0 0
        %865 = vmatpush1.bf16.msra.mxu0 0
        %866 = vmatprep.subr.bf16.mxu0 0
        %867 = vmatpush1.bf16.msra.mxu0 0
        %868 = vmatprep.mubr.bf16.mxu0 0
        %869 = vmatmul.mubr.bf16.gmra.mrb[0].mxu0 %v831
        %v870 = vpop.f32.mrb[0].mxu0
        %v871 = vadd.f32 0.0, %v870
        %v872 = vpop.f32.mrb[0].mxu0
        %v873 = vpop.f32.mrb[0].mxu0
        %v874 = vpop.f32.mrb[0].mxu0
        %875 = vdwg.mxu0
        %v876 = vpack.c.bf16 %v871, %v871
        %v878 = vunpack.c.l.b16 %v876
        %v879 = vpack.c.b16 %v878, %v878
        %880 = vrot.lane.b32.xlu0 %v879, 16
        %v881 = vpop.permute.xlu0 %880
        %vm883 = vcmask 257152
        %884 = vst.msk [vmem:[#allocation2] sm:$0xf] %vm883, %v881
        %v885 = vld [vmem:[#allocation2] sm:$0xf]
        %v886 = vld [vmem:[#allocation5] sm:$0xf]
        %v887 = vld [vmem:[#allocation5 + $0x4] sm:$0xf]
        %v888 = vld [vmem:[#allocation5 + $0x8] sm:$0xf]
        %v889 = vld [vmem:[#allocation5 + $0xc] sm:$0xf]
        %v890 = vld [vmem:[%s5] sm:$0x1]
        %v892 = vlaneseq
        %v893 = vshrl.u32 %v892, 7
        %v894 = vsub.s32 0, %v893
        %v895 = vrot.slane %v890, %v894
        %v901 = vunpack.c.l.b16 %v886
        %v902 = vunpack.c.l.b16 %v887
        %v903 = vunpack.c.l.b16 %v888
        %v904 = vunpack.c.l.b16 %v889
        %v905 = vpack.c.b16 %v902, %v901
        %v906 = vpack.c.b16 %v904, %v903
        %v910 = vsel %vm596, %v885, 0
        %912 = vmatprep.subr.bf16.mxu0 0
        %913 = vmatpush1.bf16.msra.mxu0 %v905
        %914 = vmatprep.subr.bf16.mxu0 0
        %915 = vmatpush1.bf16.msra.mxu0 %v906
        %916 = vmatprep.subr.bf16.mxu0 0
        %917 = vmatpush1.bf16.msra.mxu0 0
        %918 = vmatprep.subr.bf16.mxu0 0
        %919 = vmatpush1.bf16.msra.mxu0 0
        %920 = vmatprep.subr.bf16.mxu0 0
        %921 = vmatpush1.bf16.msra.mxu0 0
        %922 = vmatprep.subr.bf16.mxu0 0
        %923 = vmatpush1.bf16.msra.mxu0 0
        %924 = vmatprep.subr.bf16.mxu0 0
        %925 = vmatpush1.bf16.msra.mxu0 0
        %926 = vmatprep.subr.bf16.mxu0 0
        %927 = vmatpush1.bf16.msra.mxu0 0
        %928 = vmatprep.subr.bf16.mxu0 0
        %929 = vmatpush1.bf16.msra.mxu0 0
        %930 = vmatprep.subr.bf16.mxu0 0
        %931 = vmatpush1.bf16.msra.mxu0 0
        %932 = vmatprep.subr.bf16.mxu0 0
        %933 = vmatpush1.bf16.msra.mxu0 0
        %934 = vmatprep.subr.bf16.mxu0 0
        %935 = vmatpush1.bf16.msra.mxu0 0
        %936 = vmatprep.subr.bf16.mxu0 0
        %937 = vmatpush1.bf16.msra.mxu0 0
        %938 = vmatprep.subr.bf16.mxu0 0
        %939 = vmatpush1.bf16.msra.mxu0 0
        %940 = vmatprep.subr.bf16.mxu0 0
        %941 = vmatpush1.bf16.msra.mxu0 0
        %942 = vmatprep.subr.bf16.mxu0 0
        %943 = vmatpush1.bf16.msra.mxu0 0
        %944 = vmatprep.mubr.bf16.mxu0 0
        %945 = vmatmul.mubr.bf16.gmra.mrb[0].mxu0 %v910
        %v946 = vpop.f32.mrb[0].mxu0
        %v947 = vadd.f32 %v895, %v946
        %v948 = vpop.f32.mrb[0].mxu0
        %v949 = vpop.f32.mrb[0].mxu0
        %v950 = vpop.f32.mrb[0].mxu0
        %951 = vdwg.mxu0
        %v952 = vadd.f32 %v947, %v571
        %v953 = vld [vmem:[%s6] sm:$0x1]
        %v954 = vld [vmem:[#allocation7] sm:$0x1]
        %v955 = vsel %vm596, %v952, 0.0
        %956 = vadd.xlane.f32.xlu0 %v955
        %v957 = vpop.xlane.xlu0 %956
        %v958 = vrcp.pop 32.0
        %v959 = vmul.f32 %v957, %v958
        %v960 = vsub.f32 %v952, %v959
        %v961 = vmul.f32 %v960, %v960
        %v962 = vsel %vm596, %v961, 0.0
        %963 = vadd.xlane.f32.xlu0 %v962
        %v964 = vpop.xlane.xlu0 %963
        %v965 = vmul.f32 %v964, %v958
        %v966 = vadd.f32 %v965, 1e-12
        %v967 = vrsqrt.pop %v966
        %v968 = vmul.f32 %v960, %v967
        %v970 = vlaneseq
        %v971 = vshrl.u32 %v970, 7
        %v972 = vsub.s32 0, %v971
        %v973 = vrot.slane %v953, %v972
        %v975 = vmul.f32 %v968, %v973
        %v977 = vlaneseq
        %v978 = vshrl.u32 %v977, 7
        %v979 = vsub.s32 0, %v978
        %v980 = vrot.slane %v954, %v979
        %v982 = vadd.f32 %v975, %v980
        %v983 = vpack.c.bf16 %v982, %v982
        %v984 = vld [vmem:[%s8] sm:$0xf]
        %v985 = vld [vmem:[%s8 + $0x4] sm:$0xf]
        %v986 = vld [vmem:[%s8 + $0x8] sm:$0xf]
        %v987 = vld [vmem:[%s8 + $0xc] sm:$0xf]
        %v988 = vld [vmem:[#allocation8] sm:$0x1]
        %v990 = vlaneseq
        %v991 = vshrl.u32 %v990, 7
        %v992 = vsub.s32 0, %v991
        %v993 = vrot.slane %v988, %v992
        %v999 = vunpack.c.l.b16 %v984
        %v1000 = vunpack.c.l.b16 %v985
        %v1001 = vunpack.c.l.b16 %v986
        %v1002 = vunpack.c.l.b16 %v987
        %v1003 = vpack.c.b16 %v1000, %v999
        %v1004 = vpack.c.b16 %v1002, %v1001
        %v1008 = vsel %vm596, %v983, 0
        %1010 = vmatprep.subr.bf16.mxu0 0
        %1011 = vmatpush1.bf16.msra.mxu0 %v1003
        %1012 = vmatprep.subr.bf16.mxu0 0
        %1013 = vmatpush1.bf16.msra.mxu0 %v1004
        %1014 = vmatprep.subr.bf16.mxu0 0
        %1015 = vmatpush1.bf16.msra.mxu0 0
        %1016 = vmatprep.subr.bf16.mxu0 0
        %1017 = vmatpush1.bf16.msra.mxu0 0
        %1018 = vmatprep.subr.bf16.mxu0 0
        %1019 = vmatpush1.bf16.msra.mxu0 0
        %1020 = vmatprep.subr.bf16.mxu0 0
        %1021 = vmatpush1.bf16.msra.mxu0 0
        %1022 = vmatprep.subr.bf16.mxu0 0
        %1023 = vmatpush1.bf16.msra.mxu0 0
        %1024 = vmatprep.subr.bf16.mxu0 0
        %1025 = vmatpush1.bf16.msra.mxu0 0
        %1026 = vmatprep.subr.bf16.mxu0 0
        %1027 = vmatpush1.bf16.msra.mxu0 0
        %1028 = vmatprep.subr.bf16.mxu0 0
        %1029 = vmatpush1.bf16.msra.mxu0 0
        %1030 = vmatprep.subr.bf16.mxu0 0
        %1031 = vmatpush1.bf16.msra.mxu0 0
        %1032 = vmatprep.subr.bf16.mxu0 0
        %1033 = vmatpush1.bf16.msra.mxu0 0
        %1034 = vmatprep.subr.bf16.mxu0 0
        %1035 = vmatpush1.bf16.msra.mxu0 0
        %1036 = vmatprep.subr.bf16.mxu0 0
        %1037 = vmatpush1.bf16.msra.mxu0 0
        %1038 = vmatprep.subr.bf16.mxu0 0
        %1039 = vmatpush1.bf16.msra.mxu0 0
        %1040 = vmatprep.subr.bf16.mxu0 0
        %1041 = vmatpush1.bf16.msra.mxu0 0
        %1042 = vmatprep.mubr.bf16.mxu0 0
        %1043 = vmatmul.mubr.bf16.gmra.mrb[0].mxu0 %v1008
        %v1044 = vpop.f32.mrb[0].mxu0
        %v1045 = vadd.f32 %v993, %v1044
        %v1046 = vpop.f32.mrb[0].mxu0
        %v1047 = vpop.f32.mrb[0].mxu0
        %v1048 = vpop.f32.mrb[0].mxu0
        %1049 = vdwg.mxu0
        %v1050 = vmul.f32 %v1045, 0.5
        %v1051 = vmul.f32 %v1045, 0.044715
        %v1052 = vmul.f32 %v1051, %v1045
        %v1053 = vmul.f32 %v1052, %v1045
        %v1054 = vadd.f32 %v1045, %v1053
        %v1055 = vmul.f32 %v1054, 0.7978846
        %v1056 = vtanh.pop %v1055
        %v1057 = vadd.f32 %v1056, 1.0
        %v1058 = vmul.f32 %v1050, %v1057
        %v1059 = vpack.c.bf16 %v1058, %v1058
        %v1060 = vld [vmem:[%s10] sm:$0xf]
        %v1061 = vld [vmem:[%s10 + $0x4] sm:$0xf]
        %v1062 = vld [vmem:[%s10 + $0x8] sm:$0xf]
        %v1063 = vld [vmem:[%s10 + $0xc] sm:$0xf]
        %v1064 = vld [vmem:[%s10 + $0x10] sm:$0xf]
        %v1065 = vld [vmem:[%s10 + $0x14] sm:$0xf]
        %v1066 = vld [vmem:[%s10 + $0x18] sm:$0xf]
        %v1067 = vld [vmem:[%s10 + $0x1c] sm:$0xf]
        %v1068 = vld [vmem:[%s10 + $0x20] sm:$0xf]
        %v1069 = vld [vmem:[%s10 + $0x24] sm:$0xf]
        %v1070 = vld [vmem:[%s10 + $0x28] sm:$0xf]
        %v1071 = vld [vmem:[%s10 + $0x2c] sm:$0xf]
        %v1072 = vld [vmem:[%s10 + $0x30] sm:$0xf]
        %v1073 = vld [vmem:[%s10 + $0x34] sm:$0xf]
        %v1074 = vld [vmem:[%s10 + $0x38] sm:$0xf]
        %v1075 = vld [vmem:[%s10 + $0x3c] sm:$0xf]
        %v1076 = vld [vmem:[#allocation10] sm:$0x1]
        %v1078 = vlaneseq
        %v1079 = vshrl.u32 %v1078, 7
        %v1080 = vsub.s32 0, %v1079
        %v1081 = vrot.slane %v1076, %v1080
        %v1099 = vunpack.c.l.b16 %v1060
        %v1100 = vunpack.c.l.b16 %v1061
        %v1101 = vunpack.c.l.b16 %v1062
        %v1102 = vunpack.c.l.b16 %v1063
        %v1103 = vunpack.c.l.b16 %v1064
        %v1104 = vunpack.c.l.b16 %v1065
        %v1105 = vunpack.c.l.b16 %v1066
        %v1106 = vunpack.c.l.b16 %v1067
        %v1107 = vunpack.c.l.b16 %v1068
        %v1108 = vunpack.c.l.b16 %v1069
        %v1109 = vunpack.c.l.b16 %v1070
        %v1110 = vunpack.c.l.b16 %v1071
        %v1111 = vunpack.c.l.b16 %v1072
        %v1112 = vunpack.c.l.b16 %v1073
        %v1113 = vunpack.c.l.b16 %v1074
        %v1114 = vunpack.c.l.b16 %v1075
        %v1115 = vpack.c.b16 %v1100, %v1099
        %v1116 = vpack.c.b16 %v1102, %v1101
        %v1117 = vpack.c.b16 %v1104, %v1103
        %v1118 = vpack.c.b16 %v1106, %v1105
        %v1119 = vpack.c.b16 %v1108, %v1107
        %v1120 = vpack.c.b16 %v1110, %v1109
        %v1121 = vpack.c.b16 %v1112, %v1111
        %v1122 = vpack.c.b16 %v1114, %v1113
        %1131 = vmatprep.subr.bf16.mxu0 0
        %1132 = vmatpush1.bf16.msra.mxu0 %v1115
        %1133 = vmatprep.subr.bf16.mxu0 0
        %1134 = vmatpush1.bf16.msra.mxu0 %v1116
        %1135 = vmatprep.subr.bf16.mxu0 0
        %1136 = vmatpush1.bf16.msra.mxu0 %v1117
        %1137 = vmatprep.subr.bf16.mxu0 0
        %1138 = vmatpush1.bf16.msra.mxu0 %v1118
        %1139 = vmatprep.subr.bf16.mxu0 0
        %1140 = vmatpush1.bf16.msra.mxu0 %v1119
        %1141 = vmatprep.subr.bf16.mxu0 0
        %1142 = vmatpush1.bf16.msra.mxu0 %v1120
        %1143 = vmatprep.subr.bf16.mxu0 0
        %1144 = vmatpush1.bf16.msra.mxu0 %v1121
        %1145 = vmatprep.subr.bf16.mxu0 0
        %1146 = vmatpush1.bf16.msra.mxu0 %v1122
        %1147 = vmatprep.subr.bf16.mxu0 0
        %1148 = vmatpush1.bf16.msra.mxu0 0
        %1149 = vmatprep.subr.bf16.mxu0 0
        %1150 = vmatpush1.bf16.msra.mxu0 0
        %1151 = vmatprep.subr.bf16.mxu0 0
        %1152 = vmatpush1.bf16.msra.mxu0 0
        %1153 = vmatprep.subr.bf16.mxu0 0
        %1154 = vmatpush1.bf16.msra.mxu0 0
        %1155 = vmatprep.subr.bf16.mxu0 0
        %1156 = vmatpush1.bf16.msra.mxu0 0
        %1157 = vmatprep.subr.bf16.mxu0 0
        %1158 = vmatpush1.bf16.msra.mxu0 0
        %1159 = vmatprep.subr.bf16.mxu0 0
        %1160 = vmatpush1.bf16.msra.mxu0 0
        %1161 = vmatprep.subr.bf16.mxu0 0
        %1162 = vmatpush1.bf16.msra.mxu0 0
        %1163 = vmatprep.mubr.bf16.mxu0 0
        %1164 = vmatmul.mubr.bf16.gmra.mrb[0].mxu0 %v1059
        %v1165 = vpop.f32.mrb[0].mxu0
        %v1166 = vadd.f32 %v1081, %v1165
        %v1167 = vpop.f32.mrb[0].mxu0
        %v1168 = vpop.f32.mrb[0].mxu0
        %v1169 = vpop.f32.mrb[0].mxu0
        %1170 = vdwg.mxu0
        %v1171 = vadd.f32 %v1166, %v982
        %v1172 = vld [vmem:[#allocation11] sm:$0x1]
        %v1173 = vld [vmem:[#allocation13] sm:$0x1]
        %v1174 = vsel %vm596, %v1171, 0.0
        %1175 = vadd.xlane.f32.xlu0 %v1174
        %v1176 = vpop.xlane.xlu0 %1175
        %v1177 = vmul.f32 %v1176, %v958
        %v1178 = vsub.f32 %v1171, %v1177
        %v1179 = vmul.f32 %v1178, %v1178
        %v1180 = vsel %vm596, %v1179, 0.0
        %1181 = vadd.xlane.f32.xlu0 %v1180
        %v1182 = vpop.xlane.xlu0 %1181
        %v1183 = vmul.f32 %v1182, %v958
        %v1184 = vadd.f32 %v1183, 1e-12
        %v1185 = vrsqrt.pop %v1184
        %v1186 = vmul.f32 %v1178, %v1185
        %v1188 = vlaneseq
        %v1189 = vshrl.u32 %v1188, 7
        %v1190 = vsub.s32 0, %v1189
        %v1191 = vrot.slane %v1172, %v1190
        %v1193 = vmul.f32 %v1186, %v1191
        %v1195 = vlaneseq
        %v1196 = vshrl.u32 %v1195, 7
        %v1197 = vsub.s32 0, %v1196
        %v1198 = vrot.slane %v1173, %v1197
        %v1200 = vadd.f32 %v1193, %v1198
        %v1201 = vpack.c.bf16 %v1200, %v1200
        %vm1202 = vcmask 257024
        %1203 = vst.msk [vmem:[%s568] sm:$0xf] %vm1202, %v1201
        %p1204 = scmp.lt.s32.totalorder %s29, 1
        %s1205 = scalar_select %p1204, %s29, 1
        %s1206 = smul.addr %s1205, 4
        %s1207 = scalar_lea.vmem %s14, %s1206
        // Predicated region
        $region105: #{bert_classifier_forward.6} parent=75 // pred_check
          %p1208 = pneg %p351
        $region106: #{bert_classifier_forward.6} parent=75 // pred_check_branch
          %1210 = sbr.rel (%p1208) target = $region108
        $region107: #{bert_classifier_forward.6} parent=75 // pred_region
          _
        $region108: #{bert_classifier_forward.6} parent=75 // pred_fallthru
          _
      $region76: #{bert_classifier_forward.6} parent=5 // pred_fallthru
        _
      %p1211 = scmp.le.s32.totalorder 2, %s24
      // Predicated region
      $region109: #{bert_classifier_forward.6} parent=5 // pred_check
        %p1212 = pneg %p1211
      $region110: #{bert_classifier_forward.6} parent=5 // pred_check_branch
        %1214 = sbr.rel (%p1212) target = $region112
      $region111: #{bert_classifier_forward.6} parent=5 // pred_region
        %s1215 = ssub.s32 %s24, 2
        // Predicated region
        $region113: #{bert_classifier_forward.6} parent=111 // pred_check
          %p1216 = pneg %p357
        $region114: #{bert_classifier_forward.6} parent=111 // pred_check_branch
          %1218 = sbr.rel (%p1216) target = $region116
        $region115: #{bert_classifier_forward.6} parent=111 // pred_region
          %p1219 = scmp.lt.s32.totalorder %s30, 1
          %s1220 = scalar_select %p1219, %s30, 1
          %s1221 = smul.addr %s1220, 4
          %s1222 = scalar_lea.vmem %s14, %s1221
        $region116: #{bert_classifier_forward.6} parent=111 // pred_fallthru
          _
      $region112: #{bert_classifier_forward.6} parent=5 // pred_fallthru
        _
    $region6: #{bert_classifier_forward.6} parent=1 // loop_footer
      %s28 = sadd.s32 1, %s24
    $region7: #{bert_classifier_forward.6} parent=1 // loop_footer_branch
      %23 = sbr.rel target = $region3
    $region8: #{bert_classifier_forward.6} parent=1 // loop_exit
      _
    %1223 = vsyncpa [#allocation4], 1
    %s1224 = scalar_lea.sflag [#allocation4], 1
    %1225 = vsyncpa %s1224, 1
    %1226 = vsyncpa [#allocation6], 1
    %1227 = vsyncpa [#allocation9], 1
    %1228 = vsyncpa [#allocation12], 1

// kernel: bert_classifier_forward.7
$region0: #{bert_classifier_forward.7}
  #allocation0 [shape = 'u32[]', space=smem, size = 0x4, offset = 0x4, fixed_abs, tag = 'smem constant byte address 0x4 - core index']
  #allocation1 [shape = 'u32[144,128]{1,0:T(1,128)}', space=vmem, size = 0x12000, scoped, tag = 'internal scratch']
  %s0 = inlined_call_operand.vmem [shape: bf16[2,32], index: 0, kind: input, shape index: {}]
  %s1 = inlined_call_operand.hbm [shape: bf16[32,32], index: 1, kind: input, shape index: {}]
  %s2 = inlined_call_operand.hbm [shape: f32[1,32], index: 2, kind: input, shape index: {}]
  %s3 = inlined_call_operand.vmem [shape: bf16[32,512], index: 3, kind: input, shape index: {}]
  %s4 = inlined_call_operand.vmem [shape: f32[1,512], index: 4, kind: input, shape index: {}]
  %s5 = inlined_call_operand.vmem [shape: bf16[512,256], index: 5, kind: input, shape index: {}]
  %s6 = inlined_call_operand.hbm [shape: f32[1,256], index: 6, kind: input, shape index: {}]
  %s7 = inlined_call_operand.vmem [shape: bf16[256,128], index: 7, kind: input, shape index: {}]
  %s8 = inlined_call_operand.hbm [shape: f32[1,128], index: 8, kind: input, shape index: {}]
  %s9 = inlined_call_operand.hbm [shape: f32[2,128], index: 9, kind: output, shape index: {}]
  %s10 = sld [smem:[#allocation0]]
  $region62: #{bert_classifier_forward.7} parent=0
    _
  %s12 = ssub.s32 1, %s10
  %s13 = scalar_select 0, %s12, %s10
  $region1: #{bert_classifier_forward.7} parent=0
    #allocation2 [shape = 'u8[8192]{0}', space=vmem, size = 0x2000, scoped, tag = 'input window, operand 1, single buffered']
    #allocation3 [shape = 's32[1]{0}', space=sflag, size = 0x4, scoped, tag = 'scoped memory for bert_classifier_forward.7']
    #allocation4 [shape = 's32[1]{0}', space=sflag, size = 0x4, scoped, tag = 'scoped memory for bert_classifier_forward.7']
    #allocation5 [shape = 'u8[512]{0}', space=vmem, size = 0x400, scoped, tag = 'input window, operand 2, single buffered']
    #allocation6 [shape = 's32[1]{0}', space=sflag, size = 0x4, scoped, tag = 'scoped memory for bert_classifier_forward.7']
    #allocation7 [shape = 'u8[1024]{0}', space=vmem, size = 0x400, scoped, tag = 'input window, operand 6, single buffered']
    #allocation8 [shape = 'u8[512]{0}', space=vmem, size = 0x400, scoped, tag = 'input window, operand 8, single buffered']
    #allocation9 [shape = 's32[1]{0}', space=sflag, size = 0x4, scoped, tag = 'scoped memory for bert_classifier_forward.7']
    #allocation10 [shape = 'u8[1024]{0}', space=vmem, size = 0x400, scoped, tag = 'output window, operand 0, single buffered']
    %14 = vsyncpa [#allocation3], 0
    %15 = vsyncpa [#allocation6], 0
    %16 = vsyncpa [#allocation9], 0
    %17 = vsyncpa [#allocation4], 0
    // Predicated region
    $region2: #{bert_classifier_forward.7} parent=1 // pred_check
      _
    $region3: #{bert_classifier_forward.7} parent=1 // pred_check_branch
      %19 = sbr.rel (0) target = $region5
    $region4: #{bert_classifier_forward.7} parent=1 // pred_region
      _
    $region5: #{bert_classifier_forward.7} parent=1 // pred_fallthru
      _
    // Predicated region
    $region6: #{bert_classifier_forward.7} parent=1 // pred_check
      _
    $region7: #{bert_classifier_forward.7} parent=1 // pred_check_branch
      %21 = sbr.rel (0) target = $region9
    $region8: #{bert_classifier_forward.7} parent=1 // pred_region
      %s23 = ssub.s32 256, 256
      %24 = vsyncadd [#allocation3], %s23
      %s25 = sshll.u32 [#allocation2], 4
      %s26 = int_to_ptr.vmem [resolvable:$true] %s25
      %31 = dma.hbm_to_vmem [thread:$0]  %s1, 256, %s26, [#allocation3], 64, 64, 4
    $region9: #{bert_classifier_forward.7} parent=1 // pred_fallthru
      _
    // Predicated region
    $region10: #{bert_classifier_forward.7} parent=1 // pred_check
      _
    $region11: #{bert_classifier_forward.7} parent=1 // pred_check_branch
      %33 = sbr.rel (0) target = $region13
    $region12: #{bert_classifier_forward.7} parent=1 // pred_region
      %s35 = ssub.s32 16, 16
      %36 = vsyncadd [#allocation6], %s35
      %s38 = sshll.u32 [#allocation5], 4
      %s39 = int_to_ptr.vmem [resolvable:$true] %s38
      %41 = dma.hbm_to_vmem [thread:$0]  %s2, 16, %s39, [#allocation6]
    $region13: #{bert_classifier_forward.7} parent=1 // pred_fallthru
      _
    // Predicated region
    $region14: #{bert_classifier_forward.7} parent=1 // pred_check
      _
    $region15: #{bert_classifier_forward.7} parent=1 // pred_check_branch
      %43 = sbr.rel (0) target = $region17
    $region16: #{bert_classifier_forward.7} parent=1 // pred_region
      _
    $region17: #{bert_classifier_forward.7} parent=1 // pred_fallthru
      _
    // Predicated region
    $region18: #{bert_classifier_forward.7} parent=1 // pred_check
      _
    $region19: #{bert_classifier_forward.7} parent=1 // pred_check_branch
      %45 = sbr.rel (0) target = $region21
    $region20: #{bert_classifier_forward.7} parent=1 // pred_region
      _
    $region21: #{bert_classifier_forward.7} parent=1 // pred_fallthru
      _
    // Predicated region
    $region22: #{bert_classifier_forward.7} parent=1 // pred_check
      _
    $region23: #{bert_classifier_forward.7} parent=1 // pred_check_branch
      %47 = sbr.rel (0) target = $region25
    $region24: #{bert_classifier_forward.7} parent=1 // pred_region
      _
    $region25: #{bert_classifier_forward.7} parent=1 // pred_fallthru
      _
    // Predicated region
    $region26: #{bert_classifier_forward.7} parent=1 // pred_check
      _
    $region27: #{bert_classifier_forward.7} parent=1 // pred_check_branch
      %49 = sbr.rel (0) target = $region29
    $region28: #{bert_classifier_forward.7} parent=1 // pred_region
      %s51 = ssub.s32 32, 32
      %52 = vsyncadd [#allocation6], %s51
      %s54 = sshll.u32 [#allocation7], 4
      %s55 = int_to_ptr.vmem [resolvable:$true] %s54
      %57 = dma.hbm_to_vmem [thread:$0]  %s6, 32, %s55, [#allocation6]
    $region29: #{bert_classifier_forward.7} parent=1 // pred_fallthru
      _
    // Predicated region
    $region30: #{bert_classifier_forward.7} parent=1 // pred_check
      _
    $region31: #{bert_classifier_forward.7} parent=1 // pred_check_branch
      %59 = sbr.rel (0) target = $region33
    $region32: #{bert_classifier_forward.7} parent=1 // pred_region
      _
    $region33: #{bert_classifier_forward.7} parent=1 // pred_fallthru
      _
    // Predicated region
    $region34: #{bert_classifier_forward.7} parent=1 // pred_check
      _
    $region35: #{bert_classifier_forward.7} parent=1 // pred_check_branch
      %61 = sbr.rel (0) target = $region37
    $region36: #{bert_classifier_forward.7} parent=1 // pred_region
      %s63 = ssub.s32 16, 16
      %64 = vsyncadd [#allocation9], %s63
      %s66 = sshll.u32 [#allocation8], 4
      %s67 = int_to_ptr.vmem [resolvable:$true] %s66
      %69 = dma.hbm_to_vmem [thread:$0]  %s8, 16, %s67, [#allocation9]
    $region37: #{bert_classifier_forward.7} parent=1 // pred_fallthru
      _
    // Predicated region
    $region38: #{bert_classifier_forward.7} parent=1 // pred_check
      _
    $region39: #{bert_classifier_forward.7} parent=1 // pred_check_branch
      %71 = sbr.rel (0) target = $region41
    $region40: #{bert_classifier_forward.7} parent=1 // pred_region
      %72 = dma.done [#allocation3], 256
    $region41: #{bert_classifier_forward.7} parent=1 // pred_fallthru
      _
    // Predicated region
    $region42: #{bert_classifier_forward.7} parent=1 // pred_check
      _
    $region43: #{bert_classifier_forward.7} parent=1 // pred_check_branch
      %74 = sbr.rel (0) target = $region45
    $region44: #{bert_classifier_forward.7} parent=1 // pred_region
      %75 = dma.done [#allocation6], 16
    $region45: #{bert_classifier_forward.7} parent=1 // pred_fallthru
      _
    // Predicated region
    $region46: #{bert_classifier_forward.7} parent=1 // pred_check
      _
    $region47: #{bert_classifier_forward.7} parent=1 // pred_check_branch
      %77 = sbr.rel (0) target = $region49
    $region48: #{bert_classifier_forward.7} parent=1 // pred_region
      %78 = dma.done [#allocation6], 32
    $region49: #{bert_classifier_forward.7} parent=1 // pred_fallthru
      _
    // Predicated region
    $region50: #{bert_classifier_forward.7} parent=1 // pred_check
      _
    $region51: #{bert_classifier_forward.7} parent=1 // pred_check_branch
      %80 = sbr.rel (0) target = $region53
    $region52: #{bert_classifier_forward.7} parent=1 // pred_region
      %81 = dma.done [#allocation9], 16
    $region53: #{bert_classifier_forward.7} parent=1 // pred_fallthru
      _
    %v83 = vld [vmem:[%s0] sm:$0x1]
    %v84 = vld [vmem:[#allocation2] sm:$0xf]
    %v85 = vld [vmem:[#allocation2 + $0x4] sm:$0xf]
    %v86 = vld [vmem:[#allocation2 + $0x8] sm:$0xf]
    %v87 = vld [vmem:[#allocation2 + $0xc] sm:$0xf]
    %v88 = vld [vmem:[#allocation5] sm:$0x1]
    %v90 = vlaneseq
    %v91 = vshrl.u32 %v90, 7
    %v92 = vsub.s32 0, %v91
    %v93 = vrot.slane %v88, %v92
    %v99 = vunpack.c.l.b16 %v84
    %v100 = vunpack.c.l.b16 %v85
    %v101 = vunpack.c.l.b16 %v86
    %v102 = vunpack.c.l.b16 %v87
    %v103 = vpack.c.b16 %v100, %v99
    %v104 = vpack.c.b16 %v102, %v101
    %vm107 = vcmask 261120
    %v109 = vsel %vm107, %v83, 0
    %111 = vmatprep.subr.bf16.mxu0 0
    %112 = vmatpush1.bf16.msra.mxu0 %v103
    %113 = vmatprep.subr.bf16.mxu0 0
    %114 = vmatpush1.bf16.msra.mxu0 %v104
    %115 = vmatprep.subr.bf16.mxu0 0
    %116 = vmatpush1.bf16.msra.mxu0 0
    %117 = vmatprep.subr.bf16.mxu0 0
    %118 = vmatpush1.bf16.msra.mxu0 0
    %119 = vmatprep.subr.bf16.mxu0 0
    %120 = vmatpush1.bf16.msra.mxu0 0
    %121 = vmatprep.subr.bf16.mxu0 0
    %122 = vmatpush1.bf16.msra.mxu0 0
    %123 = vmatprep.subr.bf16.mxu0 0
    %124 = vmatpush1.bf16.msra.mxu0 0
    %125 = vmatprep.subr.bf16.mxu0 0
    %126 = vmatpush1.bf16.msra.mxu0 0
    %127 = vmatprep.subr.bf16.mxu0 0
    %128 = vmatpush1.bf16.msra.mxu0 0
    %129 = vmatprep.subr.bf16.mxu0 0
    %130 = vmatpush1.bf16.msra.mxu0 0
    %131 = vmatprep.subr.bf16.mxu0 0
    %132 = vmatpush1.bf16.msra.mxu0 0
    %133 = vmatprep.subr.bf16.mxu0 0
    %134 = vmatpush1.bf16.msra.mxu0 0
    %135 = vmatprep.subr.bf16.mxu0 0
    %136 = vmatpush1.bf16.msra.mxu0 0
    %137 = vmatprep.subr.bf16.mxu0 0
    %138 = vmatpush1.bf16.msra.mxu0 0
    %139 = vmatprep.subr.bf16.mxu0 0
    %140 = vmatpush1.bf16.msra.mxu0 0
    %141 = vmatprep.subr.bf16.mxu0 0
    %142 = vmatpush1.bf16.msra.mxu0 0
    %143 = vmatprep.mubr.bf16.mxu0 0
    %144 = vmatmul.mubr.bf16.gmra.mrb[0].mxu0 %v109
    %v145 = vpop.f32.mrb[0].mxu0
    %v146 = vadd.f32 %v93, %v145
    %v147 = vpop.f32.mrb[0].mxu0
    %v148 = vpop.f32.mrb[0].mxu0
    %v149 = vpop.f32.mrb[0].mxu0
    %150 = vdwg.mxu0
    %v151 = vtanh.pop %v146
    %v152 = vpack.c.bf16 %v151, %v151
    %v153 = vld [vmem:[%s3] sm:$0xff]
    %v154 = vld [vmem:[%s3 + $0x8] sm:$0xff]
    %v155 = vld [vmem:[%s3 + $0x10] sm:$0xff]
    %v156 = vld [vmem:[%s3 + $0x18] sm:$0xff]
    %v157 = vld [vmem:[%s3 + $0x20] sm:$0xff]
    %v158 = vld [vmem:[%s3 + $0x28] sm:$0xff]
    %v159 = vld [vmem:[%s3 + $0x30] sm:$0xff]
    %v160 = vld [vmem:[%s3 + $0x38] sm:$0xff]
    %v161 = vld [vmem:[%s4] sm:$0xf]
    %v163 = vlaneseq
    %v164 = vshrl.u32 %v163, 7
    %v165 = vsub.s32 0, %v164
    %v166 = vrot.slane %v161, %v165
    %v167 = vlaneseq
    %v168 = vshrl.u32 %v167, 7
    %v169 = vsub.s32 1, %v168
    %v170 = vrot.slane %v161, %v169
    %v171 = vlaneseq
    %v172 = vshrl.u32 %v171, 7
    %v173 = vsub.s32 2, %v172
    %v174 = vrot.slane %v161, %v173
    %v175 = vlaneseq
    %v176 = vshrl.u32 %v175, 7
    %v177 = vsub.s32 3, %v176
    %v178 = vrot.slane %v161, %v177
    %v191 = vunpack.c.l.b16 %v153
    %v192 = vunpack.c.h.b16 %v153
    %v193 = vunpack.c.l.b16 %v154
    %v194 = vunpack.c.h.b16 %v154
    %v195 = vunpack.c.l.b16 %v155
    %v196 = vunpack.c.h.b16 %v155
    %v197 = vunpack.c.l.b16 %v156
    %v198 = vunpack.c.h.b16 %v156
    %v199 = vunpack.c.l.b16 %v157
    %v200 = vunpack.c.h.b16 %v157
    %v201 = vunpack.c.l.b16 %v158
    %v202 = vunpack.c.h.b16 %v158
    %v203 = vunpack.c.l.b16 %v159
    %v204 = vunpack.c.h.b16 %v159
    %v205 = vunpack.c.l.b16 %v160
    %v206 = vunpack.c.h.b16 %v160
    %v207 = vpack.c.b16 %v195, %v191
    %v208 = vpack.c.b16 %v196, %v192
    %v209 = vpack.c.b16 %v197, %v193
    %v210 = vpack.c.b16 %v198, %v194
    %v211 = vpack.c.b16 %v203, %v199
    %v212 = vpack.c.b16 %v204, %v200
    %v213 = vpack.c.b16 %v205, %v201
    %v214 = vpack.c.b16 %v206, %v202
    %v224 = vsel %vm107, %v152, 0
    %226 = vmatprep.subr.bf16.mxu0 %v208
    %227 = vmatpush1.bf16.msra.mxu0 %v207
    %228 = vmatprep.subr.bf16.mxu0 %v212
    %229 = vmatpush1.bf16.msra.mxu0 %v211
    %230 = vmatprep.subr.bf16.mxu0 0
    %231 = vmatpush1.bf16.msra.mxu0 0
    %232 = vmatprep.subr.bf16.mxu0 0
    %233 = vmatpush1.bf16.msra.mxu0 0
    %234 = vmatprep.subr.bf16.mxu0 0
    %235 = vmatpush1.bf16.msra.mxu0 0
    %236 = vmatprep.subr.bf16.mxu0 0
    %237 = vmatpush1.bf16.msra.mxu0 0
    %238 = vmatprep.subr.bf16.mxu0 0
    %239 = vmatpush1.bf16.msra.mxu0 0
    %240 = vmatprep.subr.bf16.mxu0 0
    %241 = vmatpush1.bf16.msra.mxu0 0
    %242 = vmatprep.subr.bf16.mxu0 0
    %243 = vmatpush1.bf16.msra.mxu0 0
    %244 = vmatprep.subr.bf16.mxu0 0
    %245 = vmatpush1.bf16.msra.mxu0 0
    %246 = vmatprep.subr.bf16.mxu0 0
    %247 = vmatpush1.bf16.msra.mxu0 0
    %248 = vmatprep.subr.bf16.mxu0 0
    %249 = vmatpush1.bf16.msra.mxu0 0
    %250 = vmatprep.subr.bf16.mxu0 0
    %251 = vmatpush1.bf16.msra.mxu0 0
    %252 = vmatprep.subr.bf16.mxu0 0
    %253 = vmatpush1.bf16.msra.mxu0 0
    %254 = vmatprep.subr.bf16.mxu0 0
    %255 = vmatpush1.bf16.msra.mxu0 0
    %256 = vmatprep.subr.bf16.mxu0 0
    %257 = vmatpush1.bf16.msra.mxu0 0
    %258 = vmatprep.mubr.bf16.mxu0 0
    %259 = vmatmul.mubr.bf16.gmra.mrb[0].mxu0 %v224
    %v260 = vpop.f32.mrb[0].mxu0
    %v261 = vadd.f32 %v166, %v260
    %v262 = vpop.f32.mrb[0].mxu0
    %v263 = vadd.f32 %v170, %v262
    %v264 = vpop.f32.mrb[0].mxu0
    %v265 = vpop.f32.mrb[0].mxu0
    %266 = vdwg.mxu0
    %267 = vmatprep.subr.bf16.mxu0 %v210
    %268 = vmatpush1.bf16.msra.mxu0 %v209
    %269 = vmatprep.subr.bf16.mxu0 %v214
    %270 = vmatpush1.bf16.msra.mxu0 %v213
    %271 = vmatprep.subr.bf16.mxu0 0
    %272 = vmatpush1.bf16.msra.mxu0 0
    %273 = vmatprep.subr.bf16.mxu0 0
    %274 = vmatpush1.bf16.msra.mxu0 0
    %275 = vmatprep.subr.bf16.mxu0 0
    %276 = vmatpush1.bf16.msra.mxu0 0
    %277 = vmatprep.subr.bf16.mxu0 0
    %278 = vmatpush1.bf16.msra.mxu0 0
    %279 = vmatprep.subr.bf16.mxu0 0
    %280 = vmatpush1.bf16.msra.mxu0 0
    %281 = vmatprep.subr.bf16.mxu0 0
    %282 = vmatpush1.bf16.msra.mxu0 0
    %283 = vmatprep.subr.bf16.mxu0 0
    %284 = vmatpush1.bf16.msra.mxu0 0
    %285 = vmatprep.subr.bf16.mxu0 0
    %286 = vmatpush1.bf16.msra.mxu0 0
    %287 = vmatprep.subr.bf16.mxu0 0
    %288 = vmatpush1.bf16.msra.mxu0 0
    %289 = vmatprep.subr.bf16.mxu0 0
    %290 = vmatpush1.bf16.msra.mxu0 0
    %291 = vmatprep.subr.bf16.mxu0 0
    %292 = vmatpush1.bf16.msra.mxu0 0
    %293 = vmatprep.subr.bf16.mxu0 0
    %294 = vmatpush1.bf16.msra.mxu0 0
    %295 = vmatprep.subr.bf16.mxu0 0
    %296 = vmatpush1.bf16.msra.mxu0 0
    %297 = vmatprep.subr.bf16.mxu0 0
    %298 = vmatpush1.bf16.msra.mxu0 0
    %299 = vmatprep.mubr.bf16.mxu0 0
    %300 = vmatmul.mubr.bf16.gmra.mrb[0].mxu0 %v224
    %v301 = vpop.f32.mrb[0].mxu0
    %v302 = vadd.f32 %v174, %v301
    %v303 = vpop.f32.mrb[0].mxu0
    %v304 = vadd.f32 %v178, %v303
    %v305 = vpop.f32.mrb[0].mxu0
    %v306 = vpop.f32.mrb[0].mxu0
    %307 = vdwg.mxu0
    %v308 = vmax.f32 %v261, 0.0
    %v309 = vmax.f32 %v263, 0.0
    %v310 = vmax.f32 %v302, 0.0
    %v311 = vmax.f32 %v304, 0.0
    %v312 = vpack.c.bf16 %v308, %v308
    %v313 = vpack.c.bf16 %v309, %v309
    %v314 = vpack.c.bf16 %v310, %v310
    %v315 = vpack.c.bf16 %v311, %v311
    %v316 = vld [vmem:[%s5] sm:$0xff]
    %v317 = vld [vmem:[%s5 + $0x8] sm:$0xff]
    %v318 = vld [vmem:[%s5 + $0x10] sm:$0xff]
    %v319 = vld [vmem:[%s5 + $0x18] sm:$0xff]
    %v320 = vld [vmem:[%s5 + $0x20] sm:$0xff]
    %v321 = vld [vmem:[%s5 + $0x28] sm:$0xff]
    %v322 = vld [vmem:[%s5 + $0x30] sm:$0xff]
    %v323 = vld [vmem:[%s5 + $0x38] sm:$0xff]
    %v324 = vld [vmem:[%s5 + $0x40] sm:$0xff]
    %v325 = vld [vmem:[%s5 + $0x48] sm:$0xff]
    %v326 = vld [vmem:[%s5 + $0x50] sm:$0xff]
    %v327 = vld [vmem:[%s5 + $0x58] sm:$0xff]
    %v328 = vld [vmem:[%s5 + $0x60] sm:$0xff]
    %v329 = vld [vmem:[%s5 + $0x68] sm:$0xff]
    %v330 = vld [vmem:[%s5 + $0x70] sm:$0xff]
    %v331 = vld [vmem:[%s5 + $0x78] sm:$0xff]
    %v332 = vld [vmem:[%s5 + $0x80] sm:$0xff]
    %v333 = vld [vmem:[%s5 + $0x88] sm:$0xff]
    %v334 = vld [vmem:[%s5 + $0x90] sm:$0xff]
    %v335 = vld [vmem:[%s5 + $0x98] sm:$0xff]
    %v336 = vld [vmem:[%s5 + $0xa0] sm:$0xff]
    %v337 = vld [vmem:[%s5 + $0xa8] sm:$0xff]
    %v338 = vld [vmem:[%s5 + $0xb0] sm:$0xff]
    %v339 = vld [vmem:[%s5 + $0xb8] sm:$0xff]
    %v340 = vld [vmem:[%s5 + $0xc0] sm:$0xff]
    %v341 = vld [vmem:[%s5 + $0xc8] sm:$0xff]
    %v342 = vld [vmem:[%s5 + $0xd0] sm:$0xff]
    %v343 = vld [vmem:[%s5 + $0xd8] sm:$0xff]
    %v344 = vld [vmem:[%s5 + $0xe0] sm:$0xff]
    %v345 = vld [vmem:[%s5 + $0xe8] sm:$0xff]
    %v346 = vld [vmem:[%s5 + $0xf0] sm:$0xff]
    %v347 = vld [vmem:[%s5 + $0xf8] sm:$0xff]
    %v348 = vld [vmem:[%s5 + $0x100] sm:$0xff]
    %v349 = vld [vmem:[%s5 + $0x108] sm:$0xff]
    %v350 = vld [vmem:[%s5 + $0x110] sm:$0xff]
    %v351 = vld [vmem:[%s5 + $0x118] sm:$0xff]
    %v352 = vld [vmem:[%s5 + $0x120] sm:$0xff]
    %v353 = vld [vmem:[%s5 + $0x128] sm:$0xff]
    %v354 = vld [vmem:[%s5 + $0x130] sm:$0xff]
    %v355 = vld [vmem:[%s5 + $0x138] sm:$0xff]
    %v356 = vld [vmem:[%s5 + $0x140] sm:$0xff]
    %v357 = vld [vmem:[%s5 + $0x148] sm:$0xff]
    %v358 = vld [vmem:[%s5 + $0x150] sm:$0xff]
    %v359 = vld [vmem:[%s5 + $0x158] sm:$0xff]
    %v360 = vld [vmem:[%s5 + $0x160] sm:$0xff]
    %v361 = vld [vmem:[%s5 + $0x168] sm:$0xff]
    %v362 = vld [vmem:[%s5 + $0x170] sm:$0xff]
    %v363 = vld [vmem:[%s5 + $0x178] sm:$0xff]
    %v364 = vld [vmem:[%s5 + $0x180] sm:$0xff]
    %v365 = vld [vmem:[%s5 + $0x188] sm:$0xff]
    %v366 = vld [vmem:[%s5 + $0x190] sm:$0xff]
    %v367 = vld [vmem:[%s5 + $0x198] sm:$0xff]
    %v368 = vld [vmem:[%s5 + $0x1a0] sm:$0xff]
    %v369 = vld [vmem:[%s5 + $0x1a8] sm:$0xff]
    %v370 = vld [vmem:[%s5 + $0x1b0] sm:$0xff]
    %v371 = vld [vmem:[%s5 + $0x1b8] sm:$0xff]
    %v372 = vld [vmem:[%s5 + $0x1c0] sm:$0xff]
    %v373 = vld [vmem:[%s5 + $0x1c8] sm:$0xff]
    %v374 = vld [vmem:[%s5 + $0x1d0] sm:$0xff]
    %v375 = vld [vmem:[%s5 + $0x1d8] sm:$0xff]
    %v376 = vld [vmem:[%s5 + $0x1e0] sm:$0xff]
    %v377 = vld [vmem:[%s5 + $0x1e8] sm:$0xff]
    %v378 = vld [vmem:[%s5 + $0x1f0] sm:$0xff]
    %v379 = vld [vmem:[%s5 + $0x1f8] sm:$0xff]
    %v380 = vld [vmem:[#allocation7] sm:$0x3]
    %v382 = vlaneseq
    %v383 = vshrl.u32 %v382, 7
    %v384 = vsub.s32 0, %v383
    %v385 = vrot.slane %v380, %v384
    %v386 = vlaneseq
    %v387 = vshrl.u32 %v386, 7
    %v388 = vsub.s32 1, %v387
    %v389 = vrot.slane %v380, %v388
    %v456 = vunpack.c.l.b16 %v316
    %v457 = vunpack.c.h.b16 %v316
    %v458 = vunpack.c.l.b16 %v317
    %v459 = vunpack.c.h.b16 %v317
    %v460 = vunpack.c.l.b16 %v318
    %v461 = vunpack.c.h.b16 %v318
    %v462 = vunpack.c.l.b16 %v319
    %v463 = vunpack.c.h.b16 %v319
    %v464 = vunpack.c.l.b16 %v320
    %v465 = vunpack.c.h.b16 %v320
    %v466 = vunpack.c.l.b16 %v321
    %v467 = vunpack.c.h.b16 %v321
    %v468 = vunpack.c.l.b16 %v322
    %v469 = vunpack.c.h.b16 %v322
    %v470 = vunpack.c.l.b16 %v323
    %v471 = vunpack.c.h.b16 %v323
    %v472 = vunpack.c.l.b16 %v324
    %v473 = vunpack.c.h.b16 %v324
    %v474 = vunpack.c.l.b16 %v325
    %v475 = vunpack.c.h.b16 %v325
    %v476 = vunpack.c.l.b16 %v326
    %v477 = vunpack.c.h.b16 %v326
    %v478 = vunpack.c.l.b16 %v327
    %v479 = vunpack.c.h.b16 %v327
    %v480 = vunpack.c.l.b16 %v328
    %v481 = vunpack.c.h.b16 %v328
    %v482 = vunpack.c.l.b16 %v329
    %v483 = vunpack.c.h.b16 %v329
    %v484 = vunpack.c.l.b16 %v330
    %v485 = vunpack.c.h.b16 %v330
    %v486 = vunpack.c.l.b16 %v331
    %v487 = vunpack.c.h.b16 %v331
    %v488 = vunpack.c.l.b16 %v332
    %v489 = vunpack.c.h.b16 %v332
    %v490 = vunpack.c.l.b16 %v333
    %v491 = vunpack.c.h.b16 %v333
    %v492 = vunpack.c.l.b16 %v334
    %v493 = vunpack.c.h.b16 %v334
    %v494 = vunpack.c.l.b16 %v335
    %v495 = vunpack.c.h.b16 %v335
    %v496 = vunpack.c.l.b16 %v336
    %v497 = vunpack.c.h.b16 %v336
    %v498 = vunpack.c.l.b16 %v337
    %v499 = vunpack.c.h.b16 %v337
    %v500 = vunpack.c.l.b16 %v338
    %v501 = vunpack.c.h.b16 %v338
    %v502 = vunpack.c.l.b16 %v339
    %v503 = vunpack.c.h.b16 %v339
    %v504 = vunpack.c.l.b16 %v340
    %v505 = vunpack.c.h.b16 %v340
    %v506 = vunpack.c.l.b16 %v341
    %v507 = vunpack.c.h.b16 %v341
    %v508 = vunpack.c.l.b16 %v342
    %v509 = vunpack.c.h.b16 %v342
    %v510 = vunpack.c.l.b16 %v343
    %v511 = vunpack.c.h.b16 %v343
    %v512 = vunpack.c.l.b16 %v344
    %v513 = vunpack.c.h.b16 %v344
    %v514 = vunpack.c.l.b16 %v345
    %v515 = vunpack.c.h.b16 %v345
    %v516 = vunpack.c.l.b16 %v346
    %v517 = vunpack.c.h.b16 %v346
    %v518 = vunpack.c.l.b16 %v347
    %v519 = vunpack.c.h.b16 %v347
    %v520 = vunpack.c.l.b16 %v348
    %v521 = vunpack.c.h.b16 %v348
    %v522 = vunpack.c.l.b16 %v349
    %v523 = vunpack.c.h.b16 %v349
    %v524 = vunpack.c.l.b16 %v350
    %v525 = vunpack.c.h.b16 %v350
    %v526 = vunpack.c.l.b16 %v351
    %v527 = vunpack.c.h.b16 %v351
    %v528 = vunpack.c.l.b16 %v352
    %v529 = vunpack.c.h.b16 %v352
    %v530 = vunpack.c.l.b16 %v353
    %v531 = vunpack.c.h.b16 %v353
    %v532 = vunpack.c.l.b16 %v354
    %v533 = vunpack.c.h.b16 %v354
    %v534 = vunpack.c.l.b16 %v355
    %v535 = vunpack.c.h.b16 %v355
    %v536 = vunpack.c.l.b16 %v356
    %v537 = vunpack.c.h.b16 %v356
    %v538 = vunpack.c.l.b16 %v357
    %v539 = vunpack.c.h.b16 %v357
    %v540 = vunpack.c.l.b16 %v358
    %v541 = vunpack.c.h.b16 %v358
    %v542 = vunpack.c.l.b16 %v359
    %v543 = vunpack.c.h.b16 %v359
    %v544 = vunpack.c.l.b16 %v360
    %v545 = vunpack.c.h.b16 %v360
    %v546 = vunpack.c.l.b16 %v361
    %v547 = vunpack.c.h.b16 %v361
    %v548 = vunpack.c.l.b16 %v362
    %v549 = vunpack.c.h.b16 %v362
    %v550 = vunpack.c.l.b16 %v363
    %v551 = vunpack.c.h.b16 %v363
    %v552 = vunpack.c.l.b16 %v364
    %v553 = vunpack.c.h.b16 %v364
    %v554 = vunpack.c.l.b16 %v365
    %v555 = vunpack.c.h.b16 %v365
    %v556 = vunpack.c.l.b16 %v366
    %v557 = vunpack.c.h.b16 %v366
    %v558 = vunpack.c.l.b16 %v367
    %v559 = vunpack.c.h.b16 %v367
    %v560 = vunpack.c.l.b16 %v368
    %v561 = vunpack.c.h.b16 %v368
    %v562 = vunpack.c.l.b16 %v369
    %v563 = vunpack.c.h.b16 %v369
    %v564 = vunpack.c.l.b16 %v370
    %v565 = vunpack.c.h.b16 %v370
    %v566 = vunpack.c.l.b16 %v371
    %v567 = vunpack.c.h.b16 %v371
    %v568 = vunpack.c.l.b16 %v372
    %v569 = vunpack.c.h.b16 %v372
    %v570 = vunpack.c.l.b16 %v373
    %v571 = vunpack.c.h.b16 %v373
    %v572 = vunpack.c.l.b16 %v374
    %v573 = vunpack.c.h.b16 %v374
    %v574 = vunpack.c.l.b16 %v375
    %v575 = vunpack.c.h.b16 %v375
    %v576 = vunpack.c.l.b16 %v376
    %v577 = vunpack.c.h.b16 %v376
    %v578 = vunpack.c.l.b16 %v377
    %v579 = vunpack.c.h.b16 %v377
    %v580 = vunpack.c.l.b16 %v378
    %v581 = vunpack.c.h.b16 %v378
    %v582 = vunpack.c.l.b16 %v379
    %v583 = vunpack.c.h.b16 %v379
    %v584 = vpack.c.b16 %v458, %v456
    %v585 = vpack.c.b16 %v459, %v457
    %v586 = vpack.c.b16 %v462, %v460
    %v587 = vpack.c.b16 %v463, %v461
    %v588 = vpack.c.b16 %v466, %v464
    %v589 = vpack.c.b16 %v467, %v465
    %v590 = vpack.c.b16 %v470, %v468
    %v591 = vpack.c.b16 %v471, %v469
    %v592 = vpack.c.b16 %v474, %v472
    %v593 = vpack.c.b16 %v475, %v473
    %v594 = vpack.c.b16 %v478, %v476
    %v595 = vpack.c.b16 %v479, %v477
    %v596 = vpack.c.b16 %v482, %v480
    %v597 = vpack.c.b16 %v483, %v481
    %v598 = vpack.c.b16 %v486, %v484
    %v599 = vpack.c.b16 %v487, %v485
    %v600 = vpack.c.b16 %v490, %v488
    %v601 = vpack.c.b16 %v491, %v489
    %v602 = vpack.c.b16 %v494, %v492
    %v603 = vpack.c.b16 %v495, %v493
    %v604 = vpack.c.b16 %v498, %v496
    %v605 = vpack.c.b16 %v499, %v497
    %v606 = vpack.c.b16 %v502, %v500
    %v607 = vpack.c.b16 %v503, %v501
    %v608 = vpack.c.b16 %v506, %v504
    %v609 = vpack.c.b16 %v507, %v505
    %v610 = vpack.c.b16 %v510, %v508
    %v611 = vpack.c.b16 %v511, %v509
    %v612 = vpack.c.b16 %v514, %v512
    %v613 = vpack.c.b16 %v515, %v513
    %v614 = vpack.c.b16 %v518, %v516
    %v615 = vpack.c.b16 %v519, %v517
    %v616 = vpack.c.b16 %v522, %v520
    %v617 = vpack.c.b16 %v523, %v521
    %v618 = vpack.c.b16 %v526, %v524
    %v619 = vpack.c.b16 %v527, %v525
    %v620 = vpack.c.b16 %v530, %v528
    %v621 = vpack.c.b16 %v531, %v529
    %v622 = vpack.c.b16 %v534, %v532
    %v623 = vpack.c.b16 %v535, %v533
    %v624 = vpack.c.b16 %v538, %v536
    %v625 = vpack.c.b16 %v539, %v537
    %v626 = vpack.c.b16 %v542, %v540
    %v627 = vpack.c.b16 %v543, %v541
    %v628 = vpack.c.b16 %v546, %v544
    %v629 = vpack.c.b16 %v547, %v545
    %v630 = vpack.c.b16 %v550, %v548
    %v631 = vpack.c.b16 %v551, %v549
    %v632 = vpack.c.b16 %v554, %v552
    %v633 = vpack.c.b16 %v555, %v553
    %v634 = vpack.c.b16 %v558, %v556
    %v635 = vpack.c.b16 %v559, %v557
    %v636 = vpack.c.b16 %v562, %v560
    %v637 = vpack.c.b16 %v563, %v561
    %v638 = vpack.c.b16 %v566, %v564
    %v639 = vpack.c.b16 %v567, %v565
    %v640 = vpack.c.b16 %v570, %v568
    %v641 = vpack.c.b16 %v571, %v569
    %v642 = vpack.c.b16 %v574, %v572
    %v643 = vpack.c.b16 %v575, %v573
    %v644 = vpack.c.b16 %v578, %v576
    %v645 = vpack.c.b16 %v579, %v577
    %v646 = vpack.c.b16 %v582, %v580
    %v647 = vpack.c.b16 %v583, %v581
    %712 = vmatprep.subr.bf16.mxu0 %v585
    %713 = vmatpush1.bf16.msra.mxu0 %v584
    %714 = vmatprep.subr.bf16.mxu0 %v587
    %715 = vmatpush1.bf16.msra.mxu0 %v586
    %716 = vmatprep.subr.bf16.mxu0 %v589
    %717 = vmatpush1.bf16.msra.mxu0 %v588
    %718 = vmatprep.subr.bf16.mxu0 %v591
    %719 = vmatpush1.bf16.msra.mxu0 %v590
    %720 = vmatprep.subr.bf16.mxu0 %v593
    %721 = vmatpush1.bf16.msra.mxu0 %v592
    %722 = vmatprep.subr.bf16.mxu0 %v595
    %723 = vmatpush1.bf16.msra.mxu0 %v594
    %724 = vmatprep.subr.bf16.mxu0 %v597
    %725 = vmatpush1.bf16.msra.mxu0 %v596
    %726 = vmatprep.subr.bf16.mxu0 %v599
    %727 = vmatpush1.bf16.msra.mxu0 %v598
    %728 = vmatprep.subr.bf16.mxu0 %v601
    %729 = vmatpush1.bf16.msra.mxu0 %v600
    %730 = vmatprep.subr.bf16.mxu0 %v603
    %731 = vmatpush1.bf16.msra.mxu0 %v602
    %732 = vmatprep.subr.bf16.mxu0 %v605
    %733 = vmatpush1.bf16.msra.mxu0 %v604
    %734 = vmatprep.subr.bf16.mxu0 %v607
    %735 = vmatpush1.bf16.msra.mxu0 %v606
    %736 = vmatprep.subr.bf16.mxu0 %v609
    %737 = vmatpush1.bf16.msra.mxu0 %v608
    %738 = vmatprep.subr.bf16.mxu0 %v611
    %739 = vmatpush1.bf16.msra.mxu0 %v610
    %740 = vmatprep.subr.bf16.mxu0 %v613
    %741 = vmatpush1.bf16.msra.mxu0 %v612
    %742 = vmatprep.subr.bf16.mxu0 %v615
    %743 = vmatpush1.bf16.msra.mxu0 %v614
    %744 = vmatprep.mubr.bf16.mxu0 %v313
    %745 = vmatmul.mubr.bf16.gmra.mrb[0].mxu0 %v312
    %v746 = vpop.f32.mrb[0].mxu0
    %v747 = vadd.f32 %v385, %v746
    %v748 = vpop.f32.mrb[0].mxu0
    %v749 = vadd.f32 %v389, %v748
    %v750 = vpop.f32.mrb[0].mxu0
    %v751 = vpop.f32.mrb[0].mxu0
    %752 = vdwg.mxu0
    %753 = vmatprep.subr.bf16.mxu0 %v617
    %754 = vmatpush1.bf16.msra.mxu0 %v616
    %755 = vmatprep.subr.bf16.mxu0 %v619
    %756 = vmatpush1.bf16.msra.mxu0 %v618
    %757 = vmatprep.subr.bf16.mxu0 %v621
    %758 = vmatpush1.bf16.msra.mxu0 %v620
    %759 = vmatprep.subr.bf16.mxu0 %v623
    %760 = vmatpush1.bf16.msra.mxu0 %v622
    %761 = vmatprep.subr.bf16.mxu0 %v625
    %762 = vmatpush1.bf16.msra.mxu0 %v624
    %763 = vmatprep.subr.bf16.mxu0 %v627
    %764 = vmatpush1.bf16.msra.mxu0 %v626
    %765 = vmatprep.subr.bf16.mxu0 %v629
    %766 = vmatpush1.bf16.msra.mxu0 %v628
    %767 = vmatprep.subr.bf16.mxu0 %v631
    %768 = vmatpush1.bf16.msra.mxu0 %v630
    %769 = vmatprep.subr.bf16.mxu0 %v633
    %770 = vmatpush1.bf16.msra.mxu0 %v632
    %771 = vmatprep.subr.bf16.mxu0 %v635
    %772 = vmatpush1.bf16.msra.mxu0 %v634
    %773 = vmatprep.subr.bf16.mxu0 %v637
    %774 = vmatpush1.bf16.msra.mxu0 %v636
    %775 = vmatprep.subr.bf16.mxu0 %v639
    %776 = vmatpush1.bf16.msra.mxu0 %v638
    %777 = vmatprep.subr.bf16.mxu0 %v641
    %778 = vmatpush1.bf16.msra.mxu0 %v640
    %779 = vmatprep.subr.bf16.mxu0 %v643
    %780 = vmatpush1.bf16.msra.mxu0 %v642
    %781 = vmatprep.subr.bf16.mxu0 %v645
    %782 = vmatpush1.bf16.msra.mxu0 %v644
    %783 = vmatprep.subr.bf16.mxu0 %v647
    %784 = vmatpush1.bf16.msra.mxu0 %v646
    %785 = vmatprep.mubr.bf16.mxu0 %v315
    %786 = vmatmul.mubr.bf16.gmra.mrb[0].mxu0 %v314
    %v787 = vpop.f32.mrb[0].mxu0
    %v788 = vadd.f32 %v747, %v787
    %v789 = vpop.f32.mrb[0].mxu0
    %v790 = vadd.f32 %v749, %v789
    %v791 = vpop.f32.mrb[0].mxu0
    %v792 = vpop.f32.mrb[0].mxu0
    %793 = vdwg.mxu0
    %v794 = vmax.f32 %v788, 0.0
    %v795 = vmax.f32 %v790, 0.0
    %v796 = vpack.c.bf16 %v794, %v794
    %v797 = vpack.c.bf16 %v795, %v795
    %v798 = vld [vmem:[%s7] sm:$0xf]
    %v799 = vld [vmem:[%s7 + $0x4] sm:$0xf]
    %v800 = vld [vmem:[%s7 + $0x8] sm:$0xf]
    %v801 = vld [vmem:[%s7 + $0xc] sm:$0xf]
    %v802 = vld [vmem:[%s7 + $0x10] sm:$0xf]
    %v803 = vld [vmem:[%s7 + $0x14] sm:$0xf]
    %v804 = vld [vmem:[%s7 + $0x18] sm:$0xf]
    %v805 = vld [vmem:[%s7 + $0x1c] sm:$0xf]
    %v806 = vld [vmem:[%s7 + $0x20] sm:$0xf]
    %v807 = vld [vmem:[%s7 + $0x24] sm:$0xf]
    %v808 = vld [vmem:[%s7 + $0x28] sm:$0xf]
    %v809 = vld [vmem:[%s7 + $0x2c] sm:$0xf]
    %v810 = vld [vmem:[%s7 + $0x30] sm:$0xf]
    %v811 = vld [vmem:[%s7 + $0x34] sm:$0xf]
    %v812 = vld [vmem:[%s7 + $0x38] sm:$0xf]
    %v813 = vld [vmem:[%s7 + $0x3c] sm:$0xf]
    %v814 = vld [vmem:[%s7 + $0x40] sm:$0xf]
    %v815 = vld [vmem:[%s7 + $0x44] sm:$0xf]
    %v816 = vld [vmem:[%s7 + $0x48] sm:$0xf]
    %v817 = vld [vmem:[%s7 + $0x4c] sm:$0xf]
    %v818 = vld [vmem:[%s7 + $0x50] sm:$0xf]
    %v819 = vld [vmem:[%s7 + $0x54] sm:$0xf]
    %v820 = vld [vmem:[%s7 + $0x58] sm:$0xf]
    %v821 = vld [vmem:[%s7 + $0x5c] sm:$0xf]
    %v822 = vld [vmem:[%s7 + $0x60] sm:$0xf]
    %v823 = vld [vmem:[%s7 + $0x64] sm:$0xf]
    %v824 = vld [vmem:[%s7 + $0x68] sm:$0xf]
    %v825 = vld [vmem:[%s7 + $0x6c] sm:$0xf]
    %v826 = vld [vmem:[%s7 + $0x70] sm:$0xf]
    %v827 = vld [vmem:[%s7 + $0x74] sm:$0xf]
    %v828 = vld [vmem:[%s7 + $0x78] sm:$0xf]
    %v829 = vld [vmem:[%s7 + $0x7c] sm:$0xf]
    %v830 = vld [vmem:[#allocation8] sm:$0x1]
    %v832 = vlaneseq
    %v833 = vshrl.u32 %v832, 7
    %v834 = vsub.s32 0, %v833
    %v835 = vrot.slane %v830, %v834
    %v869 = vunpack.c.l.b16 %v798
    %v870 = vunpack.c.l.b16 %v799
    %v871 = vunpack.c.l.b16 %v800
    %v872 = vunpack.c.l.b16 %v801
    %v873 = vunpack.c.l.b16 %v802
    %v874 = vunpack.c.l.b16 %v803
    %v875 = vunpack.c.l.b16 %v804
    %v876 = vunpack.c.l.b16 %v805
    %v877 = vunpack.c.l.b16 %v806
    %v878 = vunpack.c.l.b16 %v807
    %v879 = vunpack.c.l.b16 %v808
    %v880 = vunpack.c.l.b16 %v809
    %v881 = vunpack.c.l.b16 %v810
    %v882 = vunpack.c.l.b16 %v811
    %v883 = vunpack.c.l.b16 %v812
    %v884 = vunpack.c.l.b16 %v813
    %v885 = vunpack.c.l.b16 %v814
    %v886 = vunpack.c.l.b16 %v815
    %v887 = vunpack.c.l.b16 %v816
    %v888 = vunpack.c.l.b16 %v817
    %v889 = vunpack.c.l.b16 %v818
    %v890 = vunpack.c.l.b16 %v819
    %v891 = vunpack.c.l.b16 %v820
    %v892 = vunpack.c.l.b16 %v821
    %v893 = vunpack.c.l.b16 %v822
    %v894 = vunpack.c.l.b16 %v823
    %v895 = vunpack.c.l.b16 %v824
    %v896 = vunpack.c.l.b16 %v825
    %v897 = vunpack.c.l.b16 %v826
    %v898 = vunpack.c.l.b16 %v827
    %v899 = vunpack.c.l.b16 %v828
    %v900 = vunpack.c.l.b16 %v829
    %v901 = vpack.c.b16 %v870, %v869
    %v902 = vpack.c.b16 %v872, %v871
    %v903 = vpack.c.b16 %v874, %v873
    %v904 = vpack.c.b16 %v876, %v875
    %v905 = vpack.c.b16 %v878, %v877
    %v906 = vpack.c.b16 %v880, %v879
    %v907 = vpack.c.b16 %v882, %v881
    %v908 = vpack.c.b16 %v884, %v883
    %v909 = vpack.c.b16 %v886, %v885
    %v910 = vpack.c.b16 %v888, %v887
    %v911 = vpack.c.b16 %v890, %v889
    %v912 = vpack.c.b16 %v892, %v891
    %v913 = vpack.c.b16 %v894, %v893
    %v914 = vpack.c.b16 %v896, %v895
    %v915 = vpack.c.b16 %v898, %v897
    %v916 = vpack.c.b16 %v900, %v899
    %933 = vmatprep.subr.bf16.mxu0 0
    %934 = vmatpush1.bf16.msra.mxu0 %v901
    %935 = vmatprep.subr.bf16.mxu0 0
    %936 = vmatpush1.bf16.msra.mxu0 %v902
    %937 = vmatprep.subr.bf16.mxu0 0
    %938 = vmatpush1.bf16.msra.mxu0 %v903
    %939 = vmatprep.subr.bf16.mxu0 0
    %940 = vmatpush1.bf16.msra.mxu0 %v904
    %941 = vmatprep.subr.bf16.mxu0 0
    %942 = vmatpush1.bf16.msra.mxu0 %v905
    %943 = vmatprep.subr.bf16.mxu0 0
    %944 = vmatpush1.bf16.msra.mxu0 %v906
    %945 = vmatprep.subr.bf16.mxu0 0
    %946 = vmatpush1.bf16.msra.mxu0 %v907
    %947 = vmatprep.subr.bf16.mxu0 0
    %948 = vmatpush1.bf16.msra.mxu0 %v908
    %949 = vmatprep.subr.bf16.mxu0 0
    %950 = vmatpush1.bf16.msra.mxu0 %v909
    %951 = vmatprep.subr.bf16.mxu0 0
    %952 = vmatpush1.bf16.msra.mxu0 %v910
    %953 = vmatprep.subr.bf16.mxu0 0
    %954 = vmatpush1.bf16.msra.mxu0 %v911
    %955 = vmatprep.subr.bf16.mxu0 0
    %956 = vmatpush1.bf16.msra.mxu0 %v912
    %957 = vmatprep.subr.bf16.mxu0 0
    %958 = vmatpush1.bf16.msra.mxu0 %v913
    %959 = vmatprep.subr.bf16.mxu0 0
    %960 = vmatpush1.bf16.msra.mxu0 %v914
    %961 = vmatprep.subr.bf16.mxu0 0
    %962 = vmatpush1.bf16.msra.mxu0 %v915
    %963 = vmatprep.subr.bf16.mxu0 0
    %964 = vmatpush1.bf16.msra.mxu0 %v916
    %965 = vmatprep.mubr.bf16.mxu0 %v797
    %966 = vmatmul.mubr.bf16.gmra.mrb[0].mxu0 %v796
    %v967 = vpop.f32.mrb[0].mxu0
    %v968 = vadd.f32 %v835, %v967
    %v969 = vpop.f32.mrb[0].mxu0
    %v970 = vpop.f32.mrb[0].mxu0
    %v971 = vpop.f32.mrb[0].mxu0
    %972 = vdwg.mxu0
    %973 = vst [vmem:[#allocation10] sm:$0x3] %v968
    // Predicated region
    $region54: #{bert_classifier_forward.7} parent=1 // pred_check
      _
    $region55: #{bert_classifier_forward.7} parent=1 // pred_check_branch
      %975 = sbr.rel (0) target = $region57
    $region56: #{bert_classifier_forward.7} parent=1 // pred_region
      %s977 = ssub.s32 32, 32
      %978 = vsyncadd [#allocation4], %s977
      %s980 = sshll.u32 [#allocation10], 4
      %s981 = int_to_ptr.vmem [resolvable:$true] %s980
      %983 = dma.vmem_to_hbm [thread:$0]  %s981, 32, %s9, [#allocation4]
    $region57: #{bert_classifier_forward.7} parent=1 // pred_fallthru
      _
    // Predicated region
    $region58: #{bert_classifier_forward.7} parent=1 // pred_check
      _
    $region59: #{bert_classifier_forward.7} parent=1 // pred_check_branch
      %985 = sbr.rel (0) target = $region61
    $region60: #{bert_classifier_forward.7} parent=1 // pred_region
      %986 = dma.done [#allocation4], 32
    $region61: #{bert_classifier_forward.7} parent=1 // pred_fallthru
      _
    %987 = vsyncpa [#allocation3], 1
    %988 = vsyncpa [#allocation6], 1
    %989 = vsyncpa [#allocation9], 1
    %990 = vsyncpa [#allocation4], 1

</llo_original>
